<compile_context>
chip_gen: v7x
topology: tpu7x:2x2x1
jax: 0.10.0
libtpu: 0.0.40
codegen_flags: <defaults>
</compile_context>

<pallas_src>
import jax
import jax.numpy as jnp
from jax import lax
from jax.experimental import pallas as pl
from jax.experimental.pallas import tpu as pltpu

# ----------------------------- hyper-params (opt) ----------------------------
TEMPERATURE = 0.07
INV_TEMP = 1.0 / TEMPERATURE
A_COEF = 1.0              # opt.a
D_COEF = 1.0              # opt.d
EPS = 1e-6                # self.esp
ONLY_CLASSIFIER = False   # opt.only_classifier
# objective != 'soft-boundary'  ->  loss_DeepSVDD = avg_dist_machine - avg_dist_human

B = 8          # batch
S = 16         # sequence length
V = 64         # vocab (synthetic)
H = 128        # hidden size of the stand-in encoder
OUT_DIM = 128  # opt.out_dim


# ---------------- fused encoder + projection + SCL + DeepSVDD kernel ---------
def _fused_kernel(tok_ref, attn_ref, lab_ref, emb_ref, w_ref, bc_ref,
                  q_ref, scal_ref, pooled_ref):
    # TODO(synk): TextEmbeddingModel is a pretrained HF transformer; it is
    # replaced by embedding lookup + masked mean-pool + linear projection,
    # all fused here.
    Bq, D = q_ref.shape
    NB = lab_ref.shape[0]              # world_size == 1 -> gathered N == B
    Sk = tok_ref.shape[0] // Bq
    Hk = emb_ref.shape[1]

    # ---- encoder pooling: masked mean of embedding rows (dynamic row loads)
    for b in range(Bq):
        acc = jnp.zeros((1, Hk), jnp.float32)
        cnt = jnp.zeros((1, 1), jnp.float32)
        for s in range(Sk):
            idx = b * Sk + s
            m = attn_ref[idx]                                  # f32 scalar (SMEM)
            acc = acc + m * emb_ref[pl.ds(tok_ref[idx], 1), :]  # (1, H)
            cnt = cnt + m
        pooled_ref[b:b + 1, :] = acc / jnp.maximum(cnt, 1.0)

    pooled = pooled_ref[...]                                    # (B, H) f32

    # ---- projection: q = pooled @ W + b  (MXU bf16 operands, f32 accumulate)
    q = jnp.dot(pooled.astype(jnp.bfloat16), w_ref[...],
                preferred_element_type=jnp.float32) + bc_ref[0:1, :]
    q_ref[...] = q                                              # lane-dense store

    # ---- label masks rebuilt in-kernel from SMEM labels
    # (fabric.all_gather at world_size == 1 -> k == stop_grad(q), k_label == label)
    col_iota = lax.broadcasted_iota(jnp.int32, (1, NB), 1)
    row_iota = lax.broadcasted_iota(jnp.int32, (NB, 1), 0)
    lab_row = jnp.zeros((1, NB), jnp.int32)
    lab_col = jnp.zeros((NB, 1), jnp.int32)
    for i in range(NB):
        li = lab_ref[i]
        lab_row = lab_row + jnp.where(col_iota == i, li, 0)
        lab_col = lab_col + jnp.where(row_iota == i, li, 0)
    same = (lab_col == lab_row).astype(jnp.float32)             # (B, N), incl. diag

    # ---- supervised-contrastive (SCL) loss
    # F.normalize(dim=-1): x / max(||x||, 1e-12) == x * rsqrt(max(||x||^2, 1e-24))
    qn = q * lax.rsqrt(jnp.maximum(jnp.sum(q * q, axis=-1, keepdims=True), 1e-24))
    # contract last dims of both operands -> no transpose materialized
    logits = lax.dot_general(qn, qn, (((1,), (1,)), ((), ())),
                             preferred_element_type=jnp.float32) * INV_TEMP
    pos = jnp.sum(logits * same, axis=1, keepdims=True) / jnp.maximum(
        jnp.sum(same, axis=1, keepdims=True), EPS)              # (B, 1)
    neg = logits * (1.0 - same)                                 # (B, N), zeros kept (matches torch)
    # F.cross_entropy(cat([pos, neg], 1), 0) == mean(logsumexp(row) - pos)
    m = jnp.maximum(pos, jnp.max(neg, axis=1, keepdims=True))
    lse = m + jnp.log(jnp.exp(pos - m)
                      + jnp.sum(jnp.exp(neg - m), axis=1, keepdims=True))
    loss_label = jnp.sum(lse - pos, axis=0, keepdims=True) * (1.0 / Bq)   # (1,1)
    if ONLY_CLASSIFIER:                                         # static flag
        loss_label = jnp.zeros((1, 1), jnp.float32)

    # ---- DeepSVDD loss on the raw (unnormalized) projection q
    c_row = bc_ref[1:2, :]                                      # (1, D)
    sq = (q - c_row) * (q - c_row)                              # (B, D)
    d2 = jnp.sum(sq, axis=1, keepdims=True)                     # (B, 1)
    mach = (lab_col == 0).astype(jnp.float32)                   # (B, 1)
    hum = (lab_col == 1).astype(jnp.float32)                    # (B, 1)
    # guarded denominators: torch's .mean() on an empty class would be NaN;
    # numerator is 0 there, so normal batches are unchanged.
    n_mach = jnp.maximum(jnp.sum(mach, axis=0, keepdims=True), 1.0)
    n_hum = jnp.maximum(jnp.sum(hum, axis=0, keepdims=True), 1.0)
    avg_m = jnp.sum(d2 * mach, axis=0, keepdims=True) / n_mach
    avg_h = jnp.sum(jnp.minimum(d2, 1e6) * hum, axis=0, keepdims=True) / n_hum
    loss_svdd = avg_m - avg_h                                   # (1,1)

    loss = A_COEF * loss_label + D_COEF * loss_svdd             # (1,1)

    # ---- pack the three scalars into one lane-dense (1, D) row (unmasked vst)
    lane = lax.broadcasted_iota(jnp.int32, (1, D), 1)
    scal_ref[...] = (jnp.where(lane == 0, loss, 0.0)
                     + jnp.where(lane == 1, loss_label, 0.0)
                     + jnp.where(lane == 2, loss_svdd, 0.0))


# ------------------------------- wrapper --------------------------------------
def simclr_scl_forward(input_ids, attention_mask, label, emb_table, w_bf16, b, c):
    """Training-mode forward: (loss, loss_label, loss_DeepSVDD, k, k_label).
    Eval-mode `dist` (= sum((k - c)^2, 1)) can be computed from k in plain JAX."""
    B_, S_ = input_ids.shape
    V_, H_ = emb_table.shape
    D_ = w_bf16.shape[1]
    NB = B_                                       # world_size == 1

    tok = input_ids.reshape(-1).astype(jnp.int32)              # (B*S,) SMEM
    attn = attention_mask.reshape(-1).astype(jnp.float32)      # (B*S,) SMEM
    lab = label.astype(jnp.int32)                              # (B,)   SMEM
    bc = jnp.stack([b.astype(jnp.float32), c.astype(jnp.float32)], axis=0)  # (2, D)

    smem = pl.BlockSpec(memory_space=pltpu.MemorySpace.SMEM)
    vmem = pl.BlockSpec(memory_space=pltpu.MemorySpace.VMEM)

    cost = pl.CostEstimate(
        flops=2 * B_ * S_ * H_ + 2 * B_ * H_ * D_ + 2 * B_ * NB * D_ + 4 * B_ * D_,
        transcendentals=B_ * (NB + 3),
        bytes_accessed=(V_ * H_ * 4 + H_ * D_ * 2 + 2 * D_ * 4
                        + tok.size * 4 + attn.size * 4 + lab.size * 4
                        + B_ * D_ * 4 + D_ * 4),
    )

    q, scal = pl.pallas_call(
        _fused_kernel,
        out_shape=(
            jax.ShapeDtypeStruct((B_, D_), jnp.float32),   # q (== k up to detach)
            jax.ShapeDtypeStruct((1, D_), jnp.float32),    # [loss, loss_label, loss_svdd, 0...]
        ),
        in_specs=[smem, smem, smem, vmem, vmem, vmem],
        out_specs=(vmem, vmem),
        scratch_shapes=[pltpu.VMEM((B_, H_), jnp.float32)],
        cost_estimate=cost,
    )(tok, attn, lab, emb_table, w_bf16, bc)

    loss, loss_label, loss_svdd = scal[0, 0], scal[0, 1], scal[0, 2]
    k = lax.stop_gradient(q)       # k = q.clone().detach(); all_gather is identity
    k_label = lab
    return loss, loss_label, loss_svdd, k, k_label


@jax.jit
def forward(input_ids, attention_mask, label, emb_table, w_bf16, b, c):
    return simclr_scl_forward(input_ids, attention_mask, label, emb_table, w_bf16, b, c)


# ------------------------ pure-JAX reference (same bf16 proj) -----------------
def reference_forward(input_ids, attention_mask, label, emb_table, w_bf16, b, c):
    emb = jnp.take(emb_table, input_ids, axis=0)                     # (B, S, H)
    mask = attention_mask.astype(jnp.float32)[..., None]
    pooled = jnp.sum(emb * mask, axis=1) / jnp.maximum(jnp.sum(mask, axis=1), 1.0)
    q = jnp.dot(pooled.astype(jnp.bfloat16), w_bf16,
                preferred_element_type=jnp.float32) + b
    qn = q / jnp.maximum(jnp.linalg.norm(q, axis=-1, keepdims=True), 1e-12)
    logits = (qn @ qn.T) / TEMPERATURE
    lab = label.astype(jnp.int32)
    same = (lab[:, None] == lab[None, :]).astype(jnp.float32)
    pos = jnp.sum(logits * same, axis=1) / jnp.maximum(jnp.sum(same, axis=1), EPS)
    neg = logits * (1.0 - same)
    full = jnp.concatenate([pos[:, None], neg], axis=1)
    loss_label = jnp.mean(jax.nn.logsumexp(full, axis=1) - pos)
    d2 = jnp.sum((q - c) ** 2, axis=1)
    mach, hum = lab == 0, lab == 1
    avg_m = jnp.sum(jnp.where(mach, d2, 0.0)) / jnp.maximum(jnp.sum(mach), 1)
    avg_h = jnp.sum(jnp.where(hum, jnp.minimum(d2, 1e6), 0.0)) / jnp.maximum(jnp.sum(hum), 1)
    loss_svdd = avg_m - avg_h
    return A_COEF * loss_label + D_COEF * loss_svdd, loss_label, loss_svdd, q


# ------------------------------------ main -------------------------------------
if __name__ == "__main__":
    key = jax.random.PRNGKey(0)
    k_ids, k_emb, k_w, k_b = jax.random.split(key, 4)

    # synthetic tokenized batch (variable-length rows exercise masked pooling)
    input_ids = jax.random.randint(k_ids, (B, S), 0, V, dtype=jnp.int32)
    lengths = jnp.array([16, 12, 16, 8, 16, 10, 16, 16], dtype=jnp.int32)
    attention_mask = (jnp.arange(S)[None, :] < lengths[:, None]).astype(jnp.int32)
    label = jnp.array([0, 1, 0, 1, 0, 1, 0, 1], dtype=jnp.int32)   # machine=0, human=1

    # deterministic encoder parameters (W stored bf16 host-side for the MXU)
    emb_table = jax.random.normal(k_emb, (V, H), dtype=jnp.float32) * 0.02
    w_proj = (jax.random.normal(k_w, (H, OUT_DIM), dtype=jnp.float32) * 0.02
              ).astype(jnp.bfloat16)
    b_proj = jax.random.normal(k_b, (OUT_DIM,), dtype=jnp.float32) * 0.02
    center_c = jnp.zeros((OUT_DIM,), dtype=jnp.float32)   # nn.Parameter(zeros)

    outs = forward(input_ids, attention_mask, label, emb_table, w_proj, b_proj, center_c)
    loss, loss_label, loss_svdd, k, k_label = jax.block_until_ready(outs)

    ref_loss, ref_ll, ref_svdd, ref_q = reference_forward(
        input_ids, attention_mask, label, emb_table, w_proj, b_proj, center_c)

    assert jnp.isfinite(loss) and jnp.isfinite(loss_label) and jnp.isfinite(loss_svdd)
    assert bool(jnp.all(jnp.isfinite(k)))
    assert jnp.allclose(k, ref_q, rtol=1e-3, atol=1e-3)
    assert jnp.allclose(loss, ref_loss, rtol=2e-3, atol=2e-3)
    assert jnp.allclose(loss_label, ref_ll, rtol=2e-3, atol=2e-3)
    assert jnp.allclose(loss_svdd, ref_svdd, rtol=2e-3, atol=2e-3)
    print("KERNEL_OK")
</pallas_src>

<mosaic_0001>
module attributes {stable_mosaic.version = 11 : i64} {
  func.func @_fused_kernel(%arg0: memref<128xi32, #tpu.memory_space<smem>>, %arg1: memref<128xf32, #tpu.memory_space<smem>>, %arg2: memref<8xi32, #tpu.memory_space<smem>>, %arg3: memref<64x128xf32, #tpu.memory_space<vmem>>, %arg4: memref<128x128xbf16, #tpu.memory_space<vmem>>, %arg5: memref<2x128xf32, #tpu.memory_space<vmem>>, %arg6: memref<8x128xf32, #tpu.memory_space<vmem>>, %arg7: memref<1x128xf32, #tpu.memory_space<vmem>>, %arg8: memref<8x128xf32, #tpu.memory_space<vmem>>) attributes {dimension_semantics = [], scalar_prefetch = 0 : i64, scratch_operands = 1 : i64, tpu.core_type = #tpu.core_type<tc>} {
    %cst = arith.constant 0.000000e+00 : f32
    %0 = vector.broadcast %cst : f32 to vector<1x128xf32>
    %cst_0 = arith.constant 0.000000e+00 : f32
    %1 = vector.broadcast %cst_0 : f32 to vector<1x1xf32>
    %c0 = arith.constant 0 : index
    %2 = memref.load %arg1[%c0] : memref<128xf32, #tpu.memory_space<smem>>
    %c0_1 = arith.constant 0 : index
    %3 = memref.load %arg0[%c0_1] : memref<128xi32, #tpu.memory_space<smem>>
    %4 = arith.index_cast %3 : i32 to index
    %c0_2 = arith.constant 0 : index
    %5 = vector.load %arg3[%4, %c0_2] : memref<64x128xf32, #tpu.memory_space<vmem>>, vector<1x128xf32>
    %6 = vector.broadcast %2 : f32 to vector<1x128xf32>
    %7 = arith.mulf %6, %5 : vector<1x128xf32>
    %8 = arith.addf %0, %7 : vector<1x128xf32>
    %9 = vector.broadcast %2 : f32 to vector<1x1xf32>
    %10 = arith.addf %1, %9 : vector<1x1xf32>
    %c1 = arith.constant 1 : index
    %11 = memref.load %arg1[%c1] : memref<128xf32, #tpu.memory_space<smem>>
    %c1_3 = arith.constant 1 : index
    %12 = memref.load %arg0[%c1_3] : memref<128xi32, #tpu.memory_space<smem>>
    %13 = arith.index_cast %12 : i32 to index
    %c0_4 = arith.constant 0 : index
    %14 = vector.load %arg3[%13, %c0_4] : memref<64x128xf32, #tpu.memory_space<vmem>>, vector<1x128xf32>
    %15 = vector.broadcast %11 : f32 to vector<1x128xf32>
    %16 = arith.mulf %15, %14 : vector<1x128xf32>
    %17 = arith.addf %8, %16 : vector<1x128xf32>
    %18 = vector.broadcast %11 : f32 to vector<1x1xf32>
    %19 = arith.addf %10, %18 : vector<1x1xf32>
    %c2 = arith.constant 2 : index
    %20 = memref.load %arg1[%c2] : memref<128xf32, #tpu.memory_space<smem>>
    %c2_5 = arith.constant 2 : index
    %21 = memref.load %arg0[%c2_5] : memref<128xi32, #tpu.memory_space<smem>>
    %22 = arith.index_cast %21 : i32 to index
    %c0_6 = arith.constant 0 : index
    %23 = vector.load %arg3[%22, %c0_6] : memref<64x128xf32, #tpu.memory_space<vmem>>, vector<1x128xf32>
    %24 = vector.broadcast %20 : f32 to vector<1x128xf32>
    %25 = arith.mulf %24, %23 : vector<1x128xf32>
    %26 = arith.addf %17, %25 : vector<1x128xf32>
    %27 = vector.broadcast %20 : f32 to vector<1x1xf32>
    %28 = arith.addf %19, %27 : vector<1x1xf32>
    %c3 = arith.constant 3 : index
    %29 = memref.load %arg1[%c3] : memref<128xf32, #tpu.memory_space<smem>>
    %c3_7 = arith.constant 3 : index
    %30 = memref.load %arg0[%c3_7] : memref<128xi32, #tpu.memory_space<smem>>
    %31 = arith.index_cast %30 : i32 to index
    %c0_8 = arith.constant 0 : index
    %32 = vector.load %arg3[%31, %c0_8] : memref<64x128xf32, #tpu.memory_space<vmem>>, vector<1x128xf32>
    %33 = vector.broadcast %29 : f32 to vector<1x128xf32>
    %34 = arith.mulf %33, %32 : vector<1x128xf32>
    %35 = arith.addf %26, %34 : vector<1x128xf32>
    %36 = vector.broadcast %29 : f32 to vector<1x1xf32>
    %37 = arith.addf %28, %36 : vector<1x1xf32>
    %c4 = arith.constant 4 : index
    %38 = memref.load %arg1[%c4] : memref<128xf32, #tpu.memory_space<smem>>
    %c4_9 = arith.constant 4 : index
    %39 = memref.load %arg0[%c4_9] : memref<128xi32, #tpu.memory_space<smem>>
    %40 = arith.index_cast %39 : i32 to index
    %c0_10 = arith.constant 0 : index
    %41 = vector.load %arg3[%40, %c0_10] : memref<64x128xf32, #tpu.memory_space<vmem>>, vector<1x128xf32>
    %42 = vector.broadcast %38 : f32 to vector<1x128xf32>
    %43 = arith.mulf %42, %41 : vector<1x128xf32>
    %44 = arith.addf %35, %43 : vector<1x128xf32>
    %45 = vector.broadcast %38 : f32 to vector<1x1xf32>
    %46 = arith.addf %37, %45 : vector<1x1xf32>
    %c5 = arith.constant 5 : index
    %47 = memref.load %arg1[%c5] : memref<128xf32, #tpu.memory_space<smem>>
    %c5_11 = arith.constant 5 : index
    %48 = memref.load %arg0[%c5_11] : memref<128xi32, #tpu.memory_space<smem>>
    %49 = arith.index_cast %48 : i32 to index
    %c0_12 = arith.constant 0 : index
    %50 = vector.load %arg3[%49, %c0_12] : memref<64x128xf32, #tpu.memory_space<vmem>>, vector<1x128xf32>
    %51 = vector.broadcast %47 : f32 to vector<1x128xf32>
    %52 = arith.mulf %51, %50 : vector<1x128xf32>
    %53 = arith.addf %44, %52 : vector<1x128xf32>
    %54 = vector.broadcast %47 : f32 to vector<1x1xf32>
    %55 = arith.addf %46, %54 : vector<1x1xf32>
    %c6 = arith.constant 6 : index
    %56 = memref.load %arg1[%c6] : memref<128xf32, #tpu.memory_space<smem>>
    %c6_13 = arith.constant 6 : index
    %57 = memref.load %arg0[%c6_13] : memref<128xi32, #tpu.memory_space<smem>>
    %58 = arith.index_cast %57 : i32 to index
    %c0_14 = arith.constant 0 : index
    %59 = vector.load %arg3[%58, %c0_14] : memref<64x128xf32, #tpu.memory_space<vmem>>, vector<1x128xf32>
    %60 = vector.broadcast %56 : f32 to vector<1x128xf32>
    %61 = arith.mulf %60, %59 : vector<1x128xf32>
    %62 = arith.addf %53, %61 : vector<1x128xf32>
    %63 = vector.broadcast %56 : f32 to vector<1x1xf32>
    %64 = arith.addf %55, %63 : vector<1x1xf32>
    %c7 = arith.constant 7 : index
    %65 = memref.load %arg1[%c7] : memref<128xf32, #tpu.memory_space<smem>>
    %c7_15 = arith.constant 7 : index
    %66 = memref.load %arg0[%c7_15] : memref<128xi32, #tpu.memory_space<smem>>
    %67 = arith.index_cast %66 : i32 to index
    %c0_16 = arith.constant 0 : index
    %68 = vector.load %arg3[%67, %c0_16] : memref<64x128xf32, #tpu.memory_space<vmem>>, vector<1x128xf32>
    %69 = vector.broadcast %65 : f32 to vector<1x128xf32>
    %70 = arith.mulf %69, %68 : vector<1x128xf32>
    %71 = arith.addf %62, %70 : vector<1x128xf32>
    %72 = vector.broadcast %65 : f32 to vector<1x1xf32>
    %73 = arith.addf %64, %72 : vector<1x1xf32>
    %c8 = arith.constant 8 : index
    %74 = memref.load %arg1[%c8] : memref<128xf32, #tpu.memory_space<smem>>
    %c8_17 = arith.constant 8 : index
    %75 = memref.load %arg0[%c8_17] : memref<128xi32, #tpu.memory_space<smem>>
    %76 = arith.index_cast %75 : i32 to index
    %c0_18 = arith.constant 0 : index
    %77 = vector.load %arg3[%76, %c0_18] : memref<64x128xf32, #tpu.memory_space<vmem>>, vector<1x128xf32>
    %78 = vector.broadcast %74 : f32 to vector<1x128xf32>
    %79 = arith.mulf %78, %77 : vector<1x128xf32>
    %80 = arith.addf %71, %79 : vector<1x128xf32>
    %81 = vector.broadcast %74 : f32 to vector<1x1xf32>
    %82 = arith.addf %73, %81 : vector<1x1xf32>
    %c9 = arith.constant 9 : index
    %83 = memref.load %arg1[%c9] : memref<128xf32, #tpu.memory_space<smem>>
    %c9_19 = arith.constant 9 : index
    %84 = memref.load %arg0[%c9_19] : memref<128xi32, #tpu.memory_space<smem>>
    %85 = arith.index_cast %84 : i32 to index
    %c0_20 = arith.constant 0 : index
    %86 = vector.load %arg3[%85, %c0_20] : memref<64x128xf32, #tpu.memory_space<vmem>>, vector<1x128xf32>
    %87 = vector.broadcast %83 : f32 to vector<1x128xf32>
    %88 = arith.mulf %87, %86 : vector<1x128xf32>
    %89 = arith.addf %80, %88 : vector<1x128xf32>
    %90 = vector.broadcast %83 : f32 to vector<1x1xf32>
    %91 = arith.addf %82, %90 : vector<1x1xf32>
    %c10 = arith.constant 10 : index
    %92 = memref.load %arg1[%c10] : memref<128xf32, #tpu.memory_space<smem>>
    %c10_21 = arith.constant 10 : index
    %93 = memref.load %arg0[%c10_21] : memref<128xi32, #tpu.memory_space<smem>>
    %94 = arith.index_cast %93 : i32 to index
    %c0_22 = arith.constant 0 : index
    %95 = vector.load %arg3[%94, %c0_22] : memref<64x128xf32, #tpu.memory_space<vmem>>, vector<1x128xf32>
    %96 = vector.broadcast %92 : f32 to vector<1x128xf32>
    %97 = arith.mulf %96, %95 : vector<1x128xf32>
    %98 = arith.addf %89, %97 : vector<1x128xf32>
    %99 = vector.broadcast %92 : f32 to vector<1x1xf32>
    %100 = arith.addf %91, %99 : vector<1x1xf32>
    %c11 = arith.constant 11 : index
    %101 = memref.load %arg1[%c11] : memref<128xf32, #tpu.memory_space<smem>>
    %c11_23 = arith.constant 11 : index
    %102 = memref.load %arg0[%c11_23] : memref<128xi32, #tpu.memory_space<smem>>
    %103 = arith.index_cast %102 : i32 to index
    %c0_24 = arith.constant 0 : index
    %104 = vector.load %arg3[%103, %c0_24] : memref<64x128xf32, #tpu.memory_space<vmem>>, vector<1x128xf32>
    %105 = vector.broadcast %101 : f32 to vector<1x128xf32>
    %106 = arith.mulf %105, %104 : vector<1x128xf32>
    %107 = arith.addf %98, %106 : vector<1x128xf32>
    %108 = vector.broadcast %101 : f32 to vector<1x1xf32>
    %109 = arith.addf %100, %108 : vector<1x1xf32>
    %c12 = arith.constant 12 : index
    %110 = memref.load %arg1[%c12] : memref<128xf32, #tpu.memory_space<smem>>
    %c12_25 = arith.constant 12 : index
    %111 = memref.load %arg0[%c12_25] : memref<128xi32, #tpu.memory_space<smem>>
    %112 = arith.index_cast %111 : i32 to index
    %c0_26 = arith.constant 0 : index
    %113 = vector.load %arg3[%112, %c0_26] : memref<64x128xf32, #tpu.memory_space<vmem>>, vector<1x128xf32>
    %114 = vector.broadcast %110 : f32 to vector<1x128xf32>
    %115 = arith.mulf %114, %113 : vector<1x128xf32>
    %116 = arith.addf %107, %115 : vector<1x128xf32>
    %117 = vector.broadcast %110 : f32 to vector<1x1xf32>
    %118 = arith.addf %109, %117 : vector<1x1xf32>
    %c13 = arith.constant 13 : index
    %119 = memref.load %arg1[%c13] : memref<128xf32, #tpu.memory_space<smem>>
    %c13_27 = arith.constant 13 : index
    %120 = memref.load %arg0[%c13_27] : memref<128xi32, #tpu.memory_space<smem>>
    %121 = arith.index_cast %120 : i32 to index
    %c0_28 = arith.constant 0 : index
    %122 = vector.load %arg3[%121, %c0_28] : memref<64x128xf32, #tpu.memory_space<vmem>>, vector<1x128xf32>
    %123 = vector.broadcast %119 : f32 to vector<1x128xf32>
    %124 = arith.mulf %123, %122 : vector<1x128xf32>
    %125 = arith.addf %116, %124 : vector<1x128xf32>
    %126 = vector.broadcast %119 : f32 to vector<1x1xf32>
    %127 = arith.addf %118, %126 : vector<1x1xf32>
    %c14 = arith.constant 14 : index
    %128 = memref.load %arg1[%c14] : memref<128xf32, #tpu.memory_space<smem>>
    %c14_29 = arith.constant 14 : index
    %129 = memref.load %arg0[%c14_29] : memref<128xi32, #tpu.memory_space<smem>>
    %130 = arith.index_cast %129 : i32 to index
    %c0_30 = arith.constant 0 : index
    %131 = vector.load %arg3[%130, %c0_30] : memref<64x128xf32, #tpu.memory_space<vmem>>, vector<1x128xf32>
    %132 = vector.broadcast %128 : f32 to vector<1x128xf32>
    %133 = arith.mulf %132, %131 : vector<1x128xf32>
    %134 = arith.addf %125, %133 : vector<1x128xf32>
    %135 = vector.broadcast %128 : f32 to vector<1x1xf32>
    %136 = arith.addf %127, %135 : vector<1x1xf32>
    %c15 = arith.constant 15 : index
    %137 = memref.load %arg1[%c15] : memref<128xf32, #tpu.memory_space<smem>>
    %c15_31 = arith.constant 15 : index
    %138 = memref.load %arg0[%c15_31] : memref<128xi32, #tpu.memory_space<smem>>
    %139 = arith.index_cast %138 : i32 to index
    %c0_32 = arith.constant 0 : index
    %140 = vector.load %arg3[%139, %c0_32] : memref<64x128xf32, #tpu.memory_space<vmem>>, vector<1x128xf32>
    %141 = vector.broadcast %137 : f32 to vector<1x128xf32>
    %142 = arith.mulf %141, %140 : vector<1x128xf32>
    %143 = arith.addf %134, %142 : vector<1x128xf32>
    %144 = vector.broadcast %137 : f32 to vector<1x1xf32>
    %145 = arith.addf %136, %144 : vector<1x1xf32>
    %cst_33 = arith.constant 1.000000e+00 : f32
    %146 = vector.broadcast %cst_33 : f32 to vector<1x1xf32>
    %147 = arith.maximumf %145, %146 : vector<1x1xf32>
    %148 = vector.broadcast %147 : vector<1x1xf32> to vector<1x128xf32>
    %149 = arith.divf %143, %148 : vector<1x128xf32>
    %c0_34 = arith.constant 0 : index
    %c0_35 = arith.constant 0 : index
    %150 = vector.load %arg8[%c0_34, %c0_35] : memref<8x128xf32, #tpu.memory_space<vmem>>, vector<1x128xf32>
    tpu.vector_store %arg8[%c0_34, %c0_35], %149 {strides = array<i32>} : memref<8x128xf32, #tpu.memory_space<vmem>>, vector<1x128xf32>,
    %cst_36 = arith.constant 0.000000e+00 : f32
    %151 = vector.broadcast %cst_36 : f32 to vector<1x128xf32>
    %cst_37 = arith.constant 0.000000e+00 : f32
    %152 = vector.broadcast %cst_37 : f32 to vector<1x1xf32>
    %c16 = arith.constant 16 : index
    %153 = memref.load %arg1[%c16] : memref<128xf32, #tpu.memory_space<smem>>
    %c16_38 = arith.constant 16 : index
    %154 = memref.load %arg0[%c16_38] : memref<128xi32, #tpu.memory_space<smem>>
    %155 = arith.index_cast %154 : i32 to index
    %c0_39 = arith.constant 0 : index
    %156 = vector.load %arg3[%155, %c0_39] : memref<64x128xf32, #tpu.memory_space<vmem>>, vector<1x128xf32>
    %157 = vector.broadcast %153 : f32 to vector<1x128xf32>
    %158 = arith.mulf %157, %156 : vector<1x128xf32>
    %159 = arith.addf %151, %158 : vector<1x128xf32>
    %160 = vector.broadcast %153 : f32 to vector<1x1xf32>
    %161 = arith.addf %152, %160 : vector<1x1xf32>
    %c17 = arith.constant 17 : index
    %162 = memref.load %arg1[%c17] : memref<128xf32, #tpu.memory_space<smem>>
    %c17_40 = arith.constant 17 : index
    %163 = memref.load %arg0[%c17_40] : memref<128xi32, #tpu.memory_space<smem>>
    %164 = arith.index_cast %163 : i32 to index
    %c0_41 = arith.constant 0 : index
    %165 = vector.load %arg3[%164, %c0_41] : memref<64x128xf32, #tpu.memory_space<vmem>>, vector<1x128xf32>
    %166 = vector.broadcast %162 : f32 to vector<1x128xf32>
    %167 = arith.mulf %166, %165 : vector<1x128xf32>
    %168 = arith.addf %159, %167 : vector<1x128xf32>
    %169 = vector.broadcast %162 : f32 to vector<1x1xf32>
    %170 = arith.addf %161, %169 : vector<1x1xf32>
    %c18 = arith.constant 18 : index
    %171 = memref.load %arg1[%c18] : memref<128xf32, #tpu.memory_space<smem>>
    %c18_42 = arith.constant 18 : index
    %172 = memref.load %arg0[%c18_42] : memref<128xi32, #tpu.memory_space<smem>>
    %173 = arith.index_cast %172 : i32 to index
    %c0_43 = arith.constant 0 : index
    %174 = vector.load %arg3[%173, %c0_43] : memref<64x128xf32, #tpu.memory_space<vmem>>, vector<1x128xf32>
    %175 = vector.broadcast %171 : f32 to vector<1x128xf32>
    %176 = arith.mulf %175, %174 : vector<1x128xf32>
    %177 = arith.addf %168, %176 : vector<1x128xf32>
    %178 = vector.broadcast %171 : f32 to vector<1x1xf32>
    %179 = arith.addf %170, %178 : vector<1x1xf32>
    %c19 = arith.constant 19 : index
    %180 = memref.load %arg1[%c19] : memref<128xf32, #tpu.memory_space<smem>>
    %c19_44 = arith.constant 19 : index
    %181 = memref.load %arg0[%c19_44] : memref<128xi32, #tpu.memory_space<smem>>
    %182 = arith.index_cast %181 : i32 to index
    %c0_45 = arith.constant 0 : index
    %183 = vector.load %arg3[%182, %c0_45] : memref<64x128xf32, #tpu.memory_space<vmem>>, vector<1x128xf32>
    %184 = vector.broadcast %180 : f32 to vector<1x128xf32>
    %185 = arith.mulf %184, %183 : vector<1x128xf32>
    %186 = arith.addf %177, %185 : vector<1x128xf32>
    %187 = vector.broadcast %180 : f32 to vector<1x1xf32>
    %188 = arith.addf %179, %187 : vector<1x1xf32>
    %c20 = arith.constant 20 : index
    %189 = memref.load %arg1[%c20] : memref<128xf32, #tpu.memory_space<smem>>
    %c20_46 = arith.constant 20 : index
    %190 = memref.load %arg0[%c20_46] : memref<128xi32, #tpu.memory_space<smem>>
    %191 = arith.index_cast %190 : i32 to index
    %c0_47 = arith.constant 0 : index
    %192 = vector.load %arg3[%191, %c0_47] : memref<64x128xf32, #tpu.memory_space<vmem>>, vector<1x128xf32>
    %193 = vector.broadcast %189 : f32 to vector<1x128xf32>
    %194 = arith.mulf %193, %192 : vector<1x128xf32>
    %195 = arith.addf %186, %194 : vector<1x128xf32>
    %196 = vector.broadcast %189 : f32 to vector<1x1xf32>
    %197 = arith.addf %188, %196 : vector<1x1xf32>
    %c21 = arith.constant 21 : index
    %198 = memref.load %arg1[%c21] : memref<128xf32, #tpu.memory_space<smem>>
    %c21_48 = arith.constant 21 : index
    %199 = memref.load %arg0[%c21_48] : memref<128xi32, #tpu.memory_space<smem>>
    %200 = arith.index_cast %199 : i32 to index
    %c0_49 = arith.constant 0 : index
    %201 = vector.load %arg3[%200, %c0_49] : memref<64x128xf32, #tpu.memory_space<vmem>>, vector<1x128xf32>
    %202 = vector.broadcast %198 : f32 to vector<1x128xf32>
    %203 = arith.mulf %202, %201 : vector<1x128xf32>
    %204 = arith.addf %195, %203 : vector<1x128xf32>
    %205 = vector.broadcast %198 : f32 to vector<1x1xf32>
    %206 = arith.addf %197, %205 : vector<1x1xf32>
    %c22 = arith.constant 22 : index
    %207 = memref.load %arg1[%c22] : memref<128xf32, #tpu.memory_space<smem>>
    %c22_50 = arith.constant 22 : index
    %208 = memref.load %arg0[%c22_50] : memref<128xi32, #tpu.memory_space<smem>>
    %209 = arith.index_cast %208 : i32 to index
    %c0_51 = arith.constant 0 : index
    %210 = vector.load %arg3[%209, %c0_51] : memref<64x128xf32, #tpu.memory_space<vmem>>, vector<1x128xf32>
    %211 = vector.broadcast %207 : f32 to vector<1x128xf32>
    %212 = arith.mulf %211, %210 : vector<1x128xf32>
    %213 = arith.addf %204, %212 : vector<1x128xf32>
    %214 = vector.broadcast %207 : f32 to vector<1x1xf32>
    %215 = arith.addf %206, %214 : vector<1x1xf32>
    %c23 = arith.constant 23 : index
    %216 = memref.load %arg1[%c23] : memref<128xf32, #tpu.memory_space<smem>>
    %c23_52 = arith.constant 23 : index
    %217 = memref.load %arg0[%c23_52] : memref<128xi32, #tpu.memory_space<smem>>
    %218 = arith.index_cast %217 : i32 to index
    %c0_53 = arith.constant 0 : index
    %219 = vector.load %arg3[%218, %c0_53] : memref<64x128xf32, #tpu.memory_space<vmem>>, vector<1x128xf32>
    %220 = vector.broadcast %216 : f32 to vector<1x128xf32>
    %221 = arith.mulf %220, %219 : vector<1x128xf32>
    %222 = arith.addf %213, %221 : vector<1x128xf32>
    %223 = vector.broadcast %216 : f32 to vector<1x1xf32>
    %224 = arith.addf %215, %223 : vector<1x1xf32>
    %c24 = arith.constant 24 : index
    %225 = memref.load %arg1[%c24] : memref<128xf32, #tpu.memory_space<smem>>
    %c24_54 = arith.constant 24 : index
    %226 = memref.load %arg0[%c24_54] : memref<128xi32, #tpu.memory_space<smem>>
    %227 = arith.index_cast %226 : i32 to index
    %c0_55 = arith.constant 0 : index
    %228 = vector.load %arg3[%227, %c0_55] : memref<64x128xf32, #tpu.memory_space<vmem>>, vector<1x128xf32>
    %229 = vector.broadcast %225 : f32 to vector<1x128xf32>
    %230 = arith.mulf %229, %228 : vector<1x128xf32>
    %231 = arith.addf %222, %230 : vector<1x128xf32>
    %232 = vector.broadcast %225 : f32 to vector<1x1xf32>
    %233 = arith.addf %224, %232 : vector<1x1xf32>
    %c25 = arith.constant 25 : index
    %234 = memref.load %arg1[%c25] : memref<128xf32, #tpu.memory_space<smem>>
    %c25_56 = arith.constant 25 : index
    %235 = memref.load %arg0[%c25_56] : memref<128xi32, #tpu.memory_space<smem>>
    %236 = arith.index_cast %235 : i32 to index
    %c0_57 = arith.constant 0 : index
    %237 = vector.load %arg3[%236, %c0_57] : memref<64x128xf32, #tpu.memory_space<vmem>>, vector<1x128xf32>
    %238 = vector.broadcast %234 : f32 to vector<1x128xf32>
    %239 = arith.mulf %238, %237 : vector<1x128xf32>
    %240 = arith.addf %231, %239 : vector<1x128xf32>
    %241 = vector.broadcast %234 : f32 to vector<1x1xf32>
    %242 = arith.addf %233, %241 : vector<1x1xf32>
    %c26 = arith.constant 26 : index
    %243 = memref.load %arg1[%c26] : memref<128xf32, #tpu.memory_space<smem>>
    %c26_58 = arith.constant 26 : index
    %244 = memref.load %arg0[%c26_58] : memref<128xi32, #tpu.memory_space<smem>>
    %245 = arith.index_cast %244 : i32 to index
    %c0_59 = arith.constant 0 : index
    %246 = vector.load %arg3[%245, %c0_59] : memref<64x128xf32, #tpu.memory_space<vmem>>, vector<1x128xf32>
    %247 = vector.broadcast %243 : f32 to vector<1x128xf32>
    %248 = arith.mulf %247, %246 : vector<1x128xf32>
    %249 = arith.addf %240, %248 : vector<1x128xf32>
    %250 = vector.broadcast %243 : f32 to vector<1x1xf32>
    %251 = arith.addf %242, %250 : vector<1x1xf32>
    %c27 = arith.constant 27 : index
    %252 = memref.load %arg1[%c27] : memref<128xf32, #tpu.memory_space<smem>>
    %c27_60 = arith.constant 27 : index
    %253 = memref.load %arg0[%c27_60] : memref<128xi32, #tpu.memory_space<smem>>
    %254 = arith.index_cast %253 : i32 to index
    %c0_61 = arith.constant 0 : index
    %255 = vector.load %arg3[%254, %c0_61] : memref<64x128xf32, #tpu.memory_space<vmem>>, vector<1x128xf32>
    %256 = vector.broadcast %252 : f32 to vector<1x128xf32>
    %257 = arith.mulf %256, %255 : vector<1x128xf32>
    %258 = arith.addf %249, %257 : vector<1x128xf32>
    %259 = vector.broadcast %252 : f32 to vector<1x1xf32>
    %260 = arith.addf %251, %259 : vector<1x1xf32>
    %c28 = arith.constant 28 : index
    %261 = memref.load %arg1[%c28] : memref<128xf32, #tpu.memory_space<smem>>
    %c28_62 = arith.constant 28 : index
    %262 = memref.load %arg0[%c28_62] : memref<128xi32, #tpu.memory_space<smem>>
    %263 = arith.index_cast %262 : i32 to index
    %c0_63 = arith.constant 0 : index
    %264 = vector.load %arg3[%263, %c0_63] : memref<64x128xf32, #tpu.memory_space<vmem>>, vector<1x128xf32>
    %265 = vector.broadcast %261 : f32 to vector<1x128xf32>
    %266 = arith.mulf %265, %264 : vector<1x128xf32>
    %267 = arith.addf %258, %266 : vector<1x128xf32>
    %268 = vector.broadcast %261 : f32 to vector<1x1xf32>
    %269 = arith.addf %260, %268 : vector<1x1xf32>
    %c29 = arith.constant 29 : index
    %270 = memref.load %arg1[%c29] : memref<128xf32, #tpu.memory_space<smem>>
    %c29_64 = arith.constant 29 : index
    %271 = memref.load %arg0[%c29_64] : memref<128xi32, #tpu.memory_space<smem>>
    %272 = arith.index_cast %271 : i32 to index
    %c0_65 = arith.constant 0 : index
    %273 = vector.load %arg3[%272, %c0_65] : memref<64x128xf32, #tpu.memory_space<vmem>>, vector<1x128xf32>
    %274 = vector.broadcast %270 : f32 to vector<1x128xf32>
    %275 = arith.mulf %274, %273 : vector<1x128xf32>
    %276 = arith.addf %267, %275 : vector<1x128xf32>
    %277 = vector.broadcast %270 : f32 to vector<1x1xf32>
    %278 = arith.addf %269, %277 : vector<1x1xf32>
    %c30 = arith.constant 30 : index
    %279 = memref.load %arg1[%c30] : memref<128xf32, #tpu.memory_space<smem>>
    %c30_66 = arith.constant 30 : index
    %280 = memref.load %arg0[%c30_66] : memref<128xi32, #tpu.memory_space<smem>>
    %281 = arith.index_cast %280 : i32 to index
    %c0_67 = arith.constant 0 : index
    %282 = vector.load %arg3[%281, %c0_67] : memref<64x128xf32, #tpu.memory_space<vmem>>, vector<1x128xf32>
    %283 = vector.broadcast %279 : f32 to vector<1x128xf32>
    %284 = arith.mulf %283, %282 : vector<1x128xf32>
    %285 = arith.addf %276, %284 : vector<1x128xf32>
    %286 = vector.broadcast %279 : f32 to vector<1x1xf32>
    %287 = arith.addf %278, %286 : vector<1x1xf32>
    %c31 = arith.constant 31 : index
    %288 = memref.load %arg1[%c31] : memref<128xf32, #tpu.memory_space<smem>>
    %c31_68 = arith.constant 31 : index
    %289 = memref.load %arg0[%c31_68] : memref<128xi32, #tpu.memory_space<smem>>
    %290 = arith.index_cast %289 : i32 to index
    %c0_69 = arith.constant 0 : index
    %291 = vector.load %arg3[%290, %c0_69] : memref<64x128xf32, #tpu.memory_space<vmem>>, vector<1x128xf32>
    %292 = vector.broadcast %288 : f32 to vector<1x128xf32>
    %293 = arith.mulf %292, %291 : vector<1x128xf32>
    %294 = arith.addf %285, %293 : vector<1x128xf32>
    %295 = vector.broadcast %288 : f32 to vector<1x1xf32>
    %296 = arith.addf %287, %295 : vector<1x1xf32>
    %cst_70 = arith.constant 1.000000e+00 : f32
    %297 = vector.broadcast %cst_70 : f32 to vector<1x1xf32>
    %298 = arith.maximumf %296, %297 : vector<1x1xf32>
    %299 = vector.broadcast %298 : vector<1x1xf32> to vector<1x128xf32>
    %300 = arith.divf %294, %299 : vector<1x128xf32>
    %c1_71 = arith.constant 1 : index
    %c0_72 = arith.constant 0 : index
    %301 = vector.load %arg8[%c1_71, %c0_72] : memref<8x128xf32, #tpu.memory_space<vmem>>, vector<1x128xf32>
    tpu.vector_store %arg8[%c1_71, %c0_72], %300 {strides = array<i32>} : memref<8x128xf32, #tpu.memory_space<vmem>>, vector<1x128xf32>,
    %cst_73 = arith.constant 0.000000e+00 : f32
    %302 = vector.broadcast %cst_73 : f32 to vector<1x128xf32>
    %cst_74 = arith.constant 0.000000e+00 : f32
    %303 = vector.broadcast %cst_74 : f32 to vector<1x1xf32>
    %c32 = arith.constant 32 : index
    %304 = memref.load %arg1[%c32] : memref<128xf32, #tpu.memory_space<smem>>
    %c32_75 = arith.constant 32 : index
    %305 = memref.load %arg0[%c32_75] : memref<128xi32, #tpu.memory_space<smem>>
    %306 = arith.index_cast %305 : i32 to index
    %c0_76 = arith.constant 0 : index
    %307 = vector.load %arg3[%306, %c0_76] : memref<64x128xf32, #tpu.memory_space<vmem>>, vector<1x128xf32>
    %308 = vector.broadcast %304 : f32 to vector<1x128xf32>
    %309 = arith.mulf %308, %307 : vector<1x128xf32>
    %310 = arith.addf %302, %309 : vector<1x128xf32>
    %311 = vector.broadcast %304 : f32 to vector<1x1xf32>
    %312 = arith.addf %303, %311 : vector<1x1xf32>
    %c33 = arith.constant 33 : index
    %313 = memref.load %arg1[%c33] : memref<128xf32, #tpu.memory_space<smem>>
    %c33_77 = arith.constant 33 : index
    %314 = memref.load %arg0[%c33_77] : memref<128xi32, #tpu.memory_space<smem>>
    %315 = arith.index_cast %314 : i32 to index
    %c0_78 = arith.constant 0 : index
    %316 = vector.load %arg3[%315, %c0_78] : memref<64x128xf32, #tpu.memory_space<vmem>>, vector<1x128xf32>
    %317 = vector.broadcast %313 : f32 to vector<1x128xf32>
    %318 = arith.mulf %317, %316 : vector<1x128xf32>
    %319 = arith.addf %310, %318 : vector<1x128xf32>
    %320 = vector.broadcast %313 : f32 to vector<1x1xf32>
    %321 = arith.addf %312, %320 : vector<1x1xf32>
    %c34 = arith.constant 34 : index
    %322 = memref.load %arg1[%c34] : memref<128xf32, #tpu.memory_space<smem>>
    %c34_79 = arith.constant 34 : index
    %323 = memref.load %arg0[%c34_79] : memref<128xi32, #tpu.memory_space<smem>>
    %324 = arith.index_cast %323 : i32 to index
    %c0_80 = arith.constant 0 : index
    %325 = vector.load %arg3[%324, %c0_80] : memref<64x128xf32, #tpu.memory_space<vmem>>, vector<1x128xf32>
    %326 = vector.broadcast %322 : f32 to vector<1x128xf32>
    %327 = arith.mulf %326, %325 : vector<1x128xf32>
    %328 = arith.addf %319, %327 : vector<1x128xf32>
    %329 = vector.broadcast %322 : f32 to vector<1x1xf32>
    %330 = arith.addf %321, %329 : vector<1x1xf32>
    %c35 = arith.constant 35 : index
    %331 = memref.load %arg1[%c35] : memref<128xf32, #tpu.memory_space<smem>>
    %c35_81 = arith.constant 35 : index
    %332 = memref.load %arg0[%c35_81] : memref<128xi32, #tpu.memory_space<smem>>
    %333 = arith.index_cast %332 : i32 to index
    %c0_82 = arith.constant 0 : index
    %334 = vector.load %arg3[%333, %c0_82] : memref<64x128xf32, #tpu.memory_space<vmem>>, vector<1x128xf32>
    %335 = vector.broadcast %331 : f32 to vector<1x128xf32>
    %336 = arith.mulf %335, %334 : vector<1x128xf32>
    %337 = arith.addf %328, %336 : vector<1x128xf32>
    %338 = vector.broadcast %331 : f32 to vector<1x1xf32>
    %339 = arith.addf %330, %338 : vector<1x1xf32>
    %c36 = arith.constant 36 : index
    %340 = memref.load %arg1[%c36] : memref<128xf32, #tpu.memory_space<smem>>
    %c36_83 = arith.constant 36 : index
    %341 = memref.load %arg0[%c36_83] : memref<128xi32, #tpu.memory_space<smem>>
    %342 = arith.index_cast %341 : i32 to index
    %c0_84 = arith.constant 0 : index
    %343 = vector.load %arg3[%342, %c0_84] : memref<64x128xf32, #tpu.memory_space<vmem>>, vector<1x128xf32>
    %344 = vector.broadcast %340 : f32 to vector<1x128xf32>
    %345 = arith.mulf %344, %343 : vector<1x128xf32>
    %346 = arith.addf %337, %345 : vector<1x128xf32>
    %347 = vector.broadcast %340 : f32 to vector<1x1xf32>
    %348 = arith.addf %339, %347 : vector<1x1xf32>
    %c37 = arith.constant 37 : index
    %349 = memref.load %arg1[%c37] : memref<128xf32, #tpu.memory_space<smem>>
    %c37_85 = arith.constant 37 : index
    %350 = memref.load %arg0[%c37_85] : memref<128xi32, #tpu.memory_space<smem>>
    %351 = arith.index_cast %350 : i32 to index
    %c0_86 = arith.constant 0 : index
    %352 = vector.load %arg3[%351, %c0_86] : memref<64x128xf32, #tpu.memory_space<vmem>>, vector<1x128xf32>
    %353 = vector.broadcast %349 : f32 to vector<1x128xf32>
    %354 = arith.mulf %353, %352 : vector<1x128xf32>
    %355 = arith.addf %346, %354 : vector<1x128xf32>
    %356 = vector.broadcast %349 : f32 to vector<1x1xf32>
    %357 = arith.addf %348, %356 : vector<1x1xf32>
    %c38 = arith.constant 38 : index
    %358 = memref.load %arg1[%c38] : memref<128xf32, #tpu.memory_space<smem>>
    %c38_87 = arith.constant 38 : index
    %359 = memref.load %arg0[%c38_87] : memref<128xi32, #tpu.memory_space<smem>>
    %360 = arith.index_cast %359 : i32 to index
    %c0_88 = arith.constant 0 : index
    %361 = vector.load %arg3[%360, %c0_88] : memref<64x128xf32, #tpu.memory_space<vmem>>, vector<1x128xf32>
    %362 = vector.broadcast %358 : f32 to vector<1x128xf32>
    %363 = arith.mulf %362, %361 : vector<1x128xf32>
    %364 = arith.addf %355, %363 : vector<1x128xf32>
    %365 = vector.broadcast %358 : f32 to vector<1x1xf32>
    %366 = arith.addf %357, %365 : vector<1x1xf32>
    %c39 = arith.constant 39 : index
    %367 = memref.load %arg1[%c39] : memref<128xf32, #tpu.memory_space<smem>>
    %c39_89 = arith.constant 39 : index
    %368 = memref.load %arg0[%c39_89] : memref<128xi32, #tpu.memory_space<smem>>
    %369 = arith.index_cast %368 : i32 to index
    %c0_90 = arith.constant 0 : index
    %370 = vector.load %arg3[%369, %c0_90] : memref<64x128xf32, #tpu.memory_space<vmem>>, vector<1x128xf32>
    %371 = vector.broadcast %367 : f32 to vector<1x128xf32>
    %372 = arith.mulf %371, %370 : vector<1x128xf32>
    %373 = arith.addf %364, %372 : vector<1x128xf32>
    %374 = vector.broadcast %367 : f32 to vector<1x1xf32>
    %375 = arith.addf %366, %374 : vector<1x1xf32>
    %c40 = arith.constant 40 : index
    %376 = memref.load %arg1[%c40] : memref<128xf32, #tpu.memory_space<smem>>
    %c40_91 = arith.constant 40 : index
    %377 = memref.load %arg0[%c40_91] : memref<128xi32, #tpu.memory_space<smem>>
    %378 = arith.index_cast %377 : i32 to index
    %c0_92 = arith.constant 0 : index
    %379 = vector.load %arg3[%378, %c0_92] : memref<64x128xf32, #tpu.memory_space<vmem>>, vector<1x128xf32>
    %380 = vector.broadcast %376 : f32 to vector<1x128xf32>
    %381 = arith.mulf %380, %379 : vector<1x128xf32>
    %382 = arith.addf %373, %381 : vector<1x128xf32>
    %383 = vector.broadcast %376 : f32 to vector<1x1xf32>
    %384 = arith.addf %375, %383 : vector<1x1xf32>
    %c41 = arith.constant 41 : index
    %385 = memref.load %arg1[%c41] : memref<128xf32, #tpu.memory_space<smem>>
    %c41_93 = arith.constant 41 : index
    %386 = memref.load %arg0[%c41_93] : memref<128xi32, #tpu.memory_space<smem>>
    %387 = arith.index_cast %386 : i32 to index
    %c0_94 = arith.constant 0 : index
    %388 = vector.load %arg3[%387, %c0_94] : memref<64x128xf32, #tpu.memory_space<vmem>>, vector<1x128xf32>
    %389 = vector.broadcast %385 : f32 to vector<1x128xf32>
    %390 = arith.mulf %389, %388 : vector<1x128xf32>
    %391 = arith.addf %382, %390 : vector<1x128xf32>
    %392 = vector.broadcast %385 : f32 to vector<1x1xf32>
    %393 = arith.addf %384, %392 : vector<1x1xf32>
    %c42 = arith.constant 42 : index
    %394 = memref.load %arg1[%c42] : memref<128xf32, #tpu.memory_space<smem>>
    %c42_95 = arith.constant 42 : index
    %395 = memref.load %arg0[%c42_95] : memref<128xi32, #tpu.memory_space<smem>>
    %396 = arith.index_cast %395 : i32 to index
    %c0_96 = arith.constant 0 : index
    %397 = vector.load %arg3[%396, %c0_96] : memref<64x128xf32, #tpu.memory_space<vmem>>, vector<1x128xf32>
    %398 = vector.broadcast %394 : f32 to vector<1x128xf32>
    %399 = arith.mulf %398, %397 : vector<1x128xf32>
    %400 = arith.addf %391, %399 : vector<1x128xf32>
    %401 = vector.broadcast %394 : f32 to vector<1x1xf32>
    %402 = arith.addf %393, %401 : vector<1x1xf32>
    %c43 = arith.constant 43 : index
    %403 = memref.load %arg1[%c43] : memref<128xf32, #tpu.memory_space<smem>>
    %c43_97 = arith.constant 43 : index
    %404 = memref.load %arg0[%c43_97] : memref<128xi32, #tpu.memory_space<smem>>
    %405 = arith.index_cast %404 : i32 to index
    %c0_98 = arith.constant 0 : index
    %406 = vector.load %arg3[%405, %c0_98] : memref<64x128xf32, #tpu.memory_space<vmem>>, vector<1x128xf32>
    %407 = vector.broadcast %403 : f32 to vector<1x128xf32>
    %408 = arith.mulf %407, %406 : vector<1x128xf32>
    %409 = arith.addf %400, %408 : vector<1x128xf32>
    %410 = vector.broadcast %403 : f32 to vector<1x1xf32>
    %411 = arith.addf %402, %410 : vector<1x1xf32>
    %c44 = arith.constant 44 : index
    %412 = memref.load %arg1[%c44] : memref<128xf32, #tpu.memory_space<smem>>
    %c44_99 = arith.constant 44 : index
    %413 = memref.load %arg0[%c44_99] : memref<128xi32, #tpu.memory_space<smem>>
    %414 = arith.index_cast %413 : i32 to index
    %c0_100 = arith.constant 0 : index
    %415 = vector.load %arg3[%414, %c0_100] : memref<64x128xf32, #tpu.memory_space<vmem>>, vector<1x128xf32>
    %416 = vector.broadcast %412 : f32 to vector<1x128xf32>
    %417 = arith.mulf %416, %415 : vector<1x128xf32>
    %418 = arith.addf %409, %417 : vector<1x128xf32>
    %419 = vector.broadcast %412 : f32 to vector<1x1xf32>
    %420 = arith.addf %411, %419 : vector<1x1xf32>
    %c45 = arith.constant 45 : index
    %421 = memref.load %arg1[%c45] : memref<128xf32, #tpu.memory_space<smem>>
    %c45_101 = arith.constant 45 : index
    %422 = memref.load %arg0[%c45_101] : memref<128xi32, #tpu.memory_space<smem>>
    %423 = arith.index_cast %422 : i32 to index
    %c0_102 = arith.constant 0 : index
    %424 = vector.load %arg3[%423, %c0_102] : memref<64x128xf32, #tpu.memory_space<vmem>>, vector<1x128xf32>
    %425 = vector.broadcast %421 : f32 to vector<1x128xf32>
    %426 = arith.mulf %425, %424 : vector<1x128xf32>
    %427 = arith.addf %418, %426 : vector<1x128xf32>
    %428 = vector.broadcast %421 : f32 to vector<1x1xf32>
    %429 = arith.addf %420, %428 : vector<1x1xf32>
    %c46 = arith.constant 46 : index
    %430 = memref.load %arg1[%c46] : memref<128xf32, #tpu.memory_space<smem>>
    %c46_103 = arith.constant 46 : index
    %431 = memref.load %arg0[%c46_103] : memref<128xi32, #tpu.memory_space<smem>>
    %432 = arith.index_cast %431 : i32 to index
    %c0_104 = arith.constant 0 : index
    %433 = vector.load %arg3[%432, %c0_104] : memref<64x128xf32, #tpu.memory_space<vmem>>, vector<1x128xf32>
    %434 = vector.broadcast %430 : f32 to vector<1x128xf32>
    %435 = arith.mulf %434, %433 : vector<1x128xf32>
    %436 = arith.addf %427, %435 : vector<1x128xf32>
    %437 = vector.broadcast %430 : f32 to vector<1x1xf32>
    %438 = arith.addf %429, %437 : vector<1x1xf32>
    %c47 = arith.constant 47 : index
    %439 = memref.load %arg1[%c47] : memref<128xf32, #tpu.memory_space<smem>>
    %c47_105 = arith.constant 47 : index
    %440 = memref.load %arg0[%c47_105] : memref<128xi32, #tpu.memory_space<smem>>
    %441 = arith.index_cast %440 : i32 to index
    %c0_106 = arith.constant 0 : index
    %442 = vector.load %arg3[%441, %c0_106] : memref<64x128xf32, #tpu.memory_space<vmem>>, vector<1x128xf32>
    %443 = vector.broadcast %439 : f32 to vector<1x128xf32>
    %444 = arith.mulf %443, %442 : vector<1x128xf32>
    %445 = arith.addf %436, %444 : vector<1x128xf32>
    %446 = vector.broadcast %439 : f32 to vector<1x1xf32>
    %447 = arith.addf %438, %446 : vector<1x1xf32>
    %cst_107 = arith.constant 1.000000e+00 : f32
    %448 = vector.broadcast %cst_107 : f32 to vector<1x1xf32>
    %449 = arith.maximumf %447, %448 : vector<1x1xf32>
    %450 = vector.broadcast %449 : vector<1x1xf32> to vector<1x128xf32>
    %451 = arith.divf %445, %450 : vector<1x128xf32>
    %c2_108 = arith.constant 2 : index
    %c0_109 = arith.constant 0 : index
    %452 = vector.load %arg8[%c2_108, %c0_109] : memref<8x128xf32, #tpu.memory_space<vmem>>, vector<1x128xf32>
    tpu.vector_store %arg8[%c2_108, %c0_109], %451 {strides = array<i32>} : memref<8x128xf32, #tpu.memory_space<vmem>>, vector<1x128xf32>,
    %cst_110 = arith.constant 0.000000e+00 : f32
    %453 = vector.broadcast %cst_110 : f32 to vector<1x128xf32>
    %cst_111 = arith.constant 0.000000e+00 : f32
    %454 = vector.broadcast %cst_111 : f32 to vector<1x1xf32>
    %c48 = arith.constant 48 : index
    %455 = memref.load %arg1[%c48] : memref<128xf32, #tpu.memory_space<smem>>
    %c48_112 = arith.constant 48 : index
    %456 = memref.load %arg0[%c48_112] : memref<128xi32, #tpu.memory_space<smem>>
    %457 = arith.index_cast %456 : i32 to index
    %c0_113 = arith.constant 0 : index
    %458 = vector.load %arg3[%457, %c0_113] : memref<64x128xf32, #tpu.memory_space<vmem>>, vector<1x128xf32>
    %459 = vector.broadcast %455 : f32 to vector<1x128xf32>
    %460 = arith.mulf %459, %458 : vector<1x128xf32>
    %461 = arith.addf %453, %460 : vector<1x128xf32>
    %462 = vector.broadcast %455 : f32 to vector<1x1xf32>
    %463 = arith.addf %454, %462 : vector<1x1xf32>
    %c49 = arith.constant 49 : index
    %464 = memref.load %arg1[%c49] : memref<128xf32, #tpu.memory_space<smem>>
    %c49_114 = arith.constant 49 : index
    %465 = memref.load %arg0[%c49_114] : memref<128xi32, #tpu.memory_space<smem>>
    %466 = arith.index_cast %465 : i32 to index
    %c0_115 = arith.constant 0 : index
    %467 = vector.load %arg3[%466, %c0_115] : memref<64x128xf32, #tpu.memory_space<vmem>>, vector<1x128xf32>
    %468 = vector.broadcast %464 : f32 to vector<1x128xf32>
    %469 = arith.mulf %468, %467 : vector<1x128xf32>
    %470 = arith.addf %461, %469 : vector<1x128xf32>
    %471 = vector.broadcast %464 : f32 to vector<1x1xf32>
    %472 = arith.addf %463, %471 : vector<1x1xf32>
    %c50 = arith.constant 50 : index
    %473 = memref.load %arg1[%c50] : memref<128xf32, #tpu.memory_space<smem>>
    %c50_116 = arith.constant 50 : index
    %474 = memref.load %arg0[%c50_116] : memref<128xi32, #tpu.memory_space<smem>>
    %475 = arith.index_cast %474 : i32 to index
    %c0_117 = arith.constant 0 : index
    %476 = vector.load %arg3[%475, %c0_117] : memref<64x128xf32, #tpu.memory_space<vmem>>, vector<1x128xf32>
    %477 = vector.broadcast %473 : f32 to vector<1x128xf32>
    %478 = arith.mulf %477, %476 : vector<1x128xf32>
    %479 = arith.addf %470, %478 : vector<1x128xf32>
    %480 = vector.broadcast %473 : f32 to vector<1x1xf32>
    %481 = arith.addf %472, %480 : vector<1x1xf32>
    %c51 = arith.constant 51 : index
    %482 = memref.load %arg1[%c51] : memref<128xf32, #tpu.memory_space<smem>>
    %c51_118 = arith.constant 51 : index
    %483 = memref.load %arg0[%c51_118] : memref<128xi32, #tpu.memory_space<smem>>
    %484 = arith.index_cast %483 : i32 to index
    %c0_119 = arith.constant 0 : index
    %485 = vector.load %arg3[%484, %c0_119] : memref<64x128xf32, #tpu.memory_space<vmem>>, vector<1x128xf32>
    %486 = vector.broadcast %482 : f32 to vector<1x128xf32>
    %487 = arith.mulf %486, %485 : vector<1x128xf32>
    %488 = arith.addf %479, %487 : vector<1x128xf32>
    %489 = vector.broadcast %482 : f32 to vector<1x1xf32>
    %490 = arith.addf %481, %489 : vector<1x1xf32>
    %c52 = arith.constant 52 : index
    %491 = memref.load %arg1[%c52] : memref<128xf32, #tpu.memory_space<smem>>
    %c52_120 = arith.constant 52 : index
    %492 = memref.load %arg0[%c52_120] : memref<128xi32, #tpu.memory_space<smem>>
    %493 = arith.index_cast %492 : i32 to index
    %c0_121 = arith.constant 0 : index
    %494 = vector.load %arg3[%493, %c0_121] : memref<64x128xf32, #tpu.memory_space<vmem>>, vector<1x128xf32>
    %495 = vector.broadcast %491 : f32 to vector<1x128xf32>
    %496 = arith.mulf %495, %494 : vector<1x128xf32>
    %497 = arith.addf %488, %496 : vector<1x128xf32>
    %498 = vector.broadcast %491 : f32 to vector<1x1xf32>
    %499 = arith.addf %490, %498 : vector<1x1xf32>
    %c53 = arith.constant 53 : index
    %500 = memref.load %arg1[%c53] : memref<128xf32, #tpu.memory_space<smem>>
    %c53_122 = arith.constant 53 : index
    %501 = memref.load %arg0[%c53_122] : memref<128xi32, #tpu.memory_space<smem>>
    %502 = arith.index_cast %501 : i32 to index
    %c0_123 = arith.constant 0 : index
    %503 = vector.load %arg3[%502, %c0_123] : memref<64x128xf32, #tpu.memory_space<vmem>>, vector<1x128xf32>
    %504 = vector.broadcast %500 : f32 to vector<1x128xf32>
    %505 = arith.mulf %504, %503 : vector<1x128xf32>
    %506 = arith.addf %497, %505 : vector<1x128xf32>
    %507 = vector.broadcast %500 : f32 to vector<1x1xf32>
    %508 = arith.addf %499, %507 : vector<1x1xf32>
    %c54 = arith.constant 54 : index
    %509 = memref.load %arg1[%c54] : memref<128xf32, #tpu.memory_space<smem>>
    %c54_124 = arith.constant 54 : index
    %510 = memref.load %arg0[%c54_124] : memref<128xi32, #tpu.memory_space<smem>>
    %511 = arith.index_cast %510 : i32 to index
    %c0_125 = arith.constant 0 : index
    %512 = vector.load %arg3[%511, %c0_125] : memref<64x128xf32, #tpu.memory_space<vmem>>, vector<1x128xf32>
    %513 = vector.broadcast %509 : f32 to vector<1x128xf32>
    %514 = arith.mulf %513, %512 : vector<1x128xf32>
    %515 = arith.addf %506, %514 : vector<1x128xf32>
    %516 = vector.broadcast %509 : f32 to vector<1x1xf32>
    %517 = arith.addf %508, %516 : vector<1x1xf32>
    %c55 = arith.constant 55 : index
    %518 = memref.load %arg1[%c55] : memref<128xf32, #tpu.memory_space<smem>>
    %c55_126 = arith.constant 55 : index
    %519 = memref.load %arg0[%c55_126] : memref<128xi32, #tpu.memory_space<smem>>
    %520 = arith.index_cast %519 : i32 to index
    %c0_127 = arith.constant 0 : index
    %521 = vector.load %arg3[%520, %c0_127] : memref<64x128xf32, #tpu.memory_space<vmem>>, vector<1x128xf32>
    %522 = vector.broadcast %518 : f32 to vector<1x128xf32>
    %523 = arith.mulf %522, %521 : vector<1x128xf32>
    %524 = arith.addf %515, %523 : vector<1x128xf32>
    %525 = vector.broadcast %518 : f32 to vector<1x1xf32>
    %526 = arith.addf %517, %525 : vector<1x1xf32>
    %c56 = arith.constant 56 : index
    %527 = memref.load %arg1[%c56] : memref<128xf32, #tpu.memory_space<smem>>
    %c56_128 = arith.constant 56 : index
    %528 = memref.load %arg0[%c56_128] : memref<128xi32, #tpu.memory_space<smem>>
    %529 = arith.index_cast %528 : i32 to index
    %c0_129 = arith.constant 0 : index
    %530 = vector.load %arg3[%529, %c0_129] : memref<64x128xf32, #tpu.memory_space<vmem>>, vector<1x128xf32>
    %531 = vector.broadcast %527 : f32 to vector<1x128xf32>
    %532 = arith.mulf %531, %530 : vector<1x128xf32>
    %533 = arith.addf %524, %532 : vector<1x128xf32>
    %534 = vector.broadcast %527 : f32 to vector<1x1xf32>
    %535 = arith.addf %526, %534 : vector<1x1xf32>
    %c57 = arith.constant 57 : index
    %536 = memref.load %arg1[%c57] : memref<128xf32, #tpu.memory_space<smem>>
    %c57_130 = arith.constant 57 : index
    %537 = memref.load %arg0[%c57_130] : memref<128xi32, #tpu.memory_space<smem>>
    %538 = arith.index_cast %537 : i32 to index
    %c0_131 = arith.constant 0 : index
    %539 = vector.load %arg3[%538, %c0_131] : memref<64x128xf32, #tpu.memory_space<vmem>>, vector<1x128xf32>
    %540 = vector.broadcast %536 : f32 to vector<1x128xf32>
    %541 = arith.mulf %540, %539 : vector<1x128xf32>
    %542 = arith.addf %533, %541 : vector<1x128xf32>
    %543 = vector.broadcast %536 : f32 to vector<1x1xf32>
    %544 = arith.addf %535, %543 : vector<1x1xf32>
    %c58 = arith.constant 58 : index
    %545 = memref.load %arg1[%c58] : memref<128xf32, #tpu.memory_space<smem>>
    %c58_132 = arith.constant 58 : index
    %546 = memref.load %arg0[%c58_132] : memref<128xi32, #tpu.memory_space<smem>>
    %547 = arith.index_cast %546 : i32 to index
    %c0_133 = arith.constant 0 : index
    %548 = vector.load %arg3[%547, %c0_133] : memref<64x128xf32, #tpu.memory_space<vmem>>, vector<1x128xf32>
    %549 = vector.broadcast %545 : f32 to vector<1x128xf32>
    %550 = arith.mulf %549, %548 : vector<1x128xf32>
    %551 = arith.addf %542, %550 : vector<1x128xf32>
    %552 = vector.broadcast %545 : f32 to vector<1x1xf32>
    %553 = arith.addf %544, %552 : vector<1x1xf32>
    %c59 = arith.constant 59 : index
    %554 = memref.load %arg1[%c59] : memref<128xf32, #tpu.memory_space<smem>>
    %c59_134 = arith.constant 59 : index
    %555 = memref.load %arg0[%c59_134] : memref<128xi32, #tpu.memory_space<smem>>
    %556 = arith.index_cast %555 : i32 to index
    %c0_135 = arith.constant 0 : index
    %557 = vector.load %arg3[%556, %c0_135] : memref<64x128xf32, #tpu.memory_space<vmem>>, vector<1x128xf32>
    %558 = vector.broadcast %554 : f32 to vector<1x128xf32>
    %559 = arith.mulf %558, %557 : vector<1x128xf32>
    %560 = arith.addf %551, %559 : vector<1x128xf32>
    %561 = vector.broadcast %554 : f32 to vector<1x1xf32>
    %562 = arith.addf %553, %561 : vector<1x1xf32>
    %c60 = arith.constant 60 : index
    %563 = memref.load %arg1[%c60] : memref<128xf32, #tpu.memory_space<smem>>
    %c60_136 = arith.constant 60 : index
    %564 = memref.load %arg0[%c60_136] : memref<128xi32, #tpu.memory_space<smem>>
    %565 = arith.index_cast %564 : i32 to index
    %c0_137 = arith.constant 0 : index
    %566 = vector.load %arg3[%565, %c0_137] : memref<64x128xf32, #tpu.memory_space<vmem>>, vector<1x128xf32>
    %567 = vector.broadcast %563 : f32 to vector<1x128xf32>
    %568 = arith.mulf %567, %566 : vector<1x128xf32>
    %569 = arith.addf %560, %568 : vector<1x128xf32>
    %570 = vector.broadcast %563 : f32 to vector<1x1xf32>
    %571 = arith.addf %562, %570 : vector<1x1xf32>
    %c61 = arith.constant 61 : index
    %572 = memref.load %arg1[%c61] : memref<128xf32, #tpu.memory_space<smem>>
    %c61_138 = arith.constant 61 : index
    %573 = memref.load %arg0[%c61_138] : memref<128xi32, #tpu.memory_space<smem>>
    %574 = arith.index_cast %573 : i32 to index
    %c0_139 = arith.constant 0 : index
    %575 = vector.load %arg3[%574, %c0_139] : memref<64x128xf32, #tpu.memory_space<vmem>>, vector<1x128xf32>
    %576 = vector.broadcast %572 : f32 to vector<1x128xf32>
    %577 = arith.mulf %576, %575 : vector<1x128xf32>
    %578 = arith.addf %569, %577 : vector<1x128xf32>
    %579 = vector.broadcast %572 : f32 to vector<1x1xf32>
    %580 = arith.addf %571, %579 : vector<1x1xf32>
    %c62 = arith.constant 62 : index
    %581 = memref.load %arg1[%c62] : memref<128xf32, #tpu.memory_space<smem>>
    %c62_140 = arith.constant 62 : index
    %582 = memref.load %arg0[%c62_140] : memref<128xi32, #tpu.memory_space<smem>>
    %583 = arith.index_cast %582 : i32 to index
    %c0_141 = arith.constant 0 : index
    %584 = vector.load %arg3[%583, %c0_141] : memref<64x128xf32, #tpu.memory_space<vmem>>, vector<1x128xf32>
    %585 = vector.broadcast %581 : f32 to vector<1x128xf32>
    %586 = arith.mulf %585, %584 : vector<1x128xf32>
    %587 = arith.addf %578, %586 : vector<1x128xf32>
    %588 = vector.broadcast %581 : f32 to vector<1x1xf32>
    %589 = arith.addf %580, %588 : vector<1x1xf32>
    %c63 = arith.constant 63 : index
    %590 = memref.load %arg1[%c63] : memref<128xf32, #tpu.memory_space<smem>>
    %c63_142 = arith.constant 63 : index
    %591 = memref.load %arg0[%c63_142] : memref<128xi32, #tpu.memory_space<smem>>
    %592 = arith.index_cast %591 : i32 to index
    %c0_143 = arith.constant 0 : index
    %593 = vector.load %arg3[%592, %c0_143] : memref<64x128xf32, #tpu.memory_space<vmem>>, vector<1x128xf32>
    %594 = vector.broadcast %590 : f32 to vector<1x128xf32>
    %595 = arith.mulf %594, %593 : vector<1x128xf32>
    %596 = arith.addf %587, %595 : vector<1x128xf32>
    %597 = vector.broadcast %590 : f32 to vector<1x1xf32>
    %598 = arith.addf %589, %597 : vector<1x1xf32>
    %cst_144 = arith.constant 1.000000e+00 : f32
    %599 = vector.broadcast %cst_144 : f32 to vector<1x1xf32>
    %600 = arith.maximumf %598, %599 : vector<1x1xf32>
    %601 = vector.broadcast %600 : vector<1x1xf32> to vector<1x128xf32>
    %602 = arith.divf %596, %601 : vector<1x128xf32>
    %c3_145 = arith.constant 3 : index
    %c0_146 = arith.constant 0 : index
    %603 = vector.load %arg8[%c3_145, %c0_146] : memref<8x128xf32, #tpu.memory_space<vmem>>, vector<1x128xf32>
    tpu.vector_store %arg8[%c3_145, %c0_146], %602 {strides = array<i32>} : memref<8x128xf32, #tpu.memory_space<vmem>>, vector<1x128xf32>,
    %cst_147 = arith.constant 0.000000e+00 : f32
    %604 = vector.broadcast %cst_147 : f32 to vector<1x128xf32>
    %cst_148 = arith.constant 0.000000e+00 : f32
    %605 = vector.broadcast %cst_148 : f32 to vector<1x1xf32>
    %c64 = arith.constant 64 : index
    %606 = memref.load %arg1[%c64] : memref<128xf32, #tpu.memory_space<smem>>
    %c64_149 = arith.constant 64 : index
    %607 = memref.load %arg0[%c64_149] : memref<128xi32, #tpu.memory_space<smem>>
    %608 = arith.index_cast %607 : i32 to index
    %c0_150 = arith.constant 0 : index
    %609 = vector.load %arg3[%608, %c0_150] : memref<64x128xf32, #tpu.memory_space<vmem>>, vector<1x128xf32>
    %610 = vector.broadcast %606 : f32 to vector<1x128xf32>
    %611 = arith.mulf %610, %609 : vector<1x128xf32>
    %612 = arith.addf %604, %611 : vector<1x128xf32>
    %613 = vector.broadcast %606 : f32 to vector<1x1xf32>
    %614 = arith.addf %605, %613 : vector<1x1xf32>
    %c65 = arith.constant 65 : index
    %615 = memref.load %arg1[%c65] : memref<128xf32, #tpu.memory_space<smem>>
    %c65_151 = arith.constant 65 : index
    %616 = memref.load %arg0[%c65_151] : memref<128xi32, #tpu.memory_space<smem>>
    %617 = arith.index_cast %616 : i32 to index
    %c0_152 = arith.constant 0 : index
    %618 = vector.load %arg3[%617, %c0_152] : memref<64x128xf32, #tpu.memory_space<vmem>>, vector<1x128xf32>
    %619 = vector.broadcast %615 : f32 to vector<1x128xf32>
    %620 = arith.mulf %619, %618 : vector<1x128xf32>
    %621 = arith.addf %612, %620 : vector<1x128xf32>
    %622 = vector.broadcast %615 : f32 to vector<1x1xf32>
    %623 = arith.addf %614, %622 : vector<1x1xf32>
    %c66 = arith.constant 66 : index
    %624 = memref.load %arg1[%c66] : memref<128xf32, #tpu.memory_space<smem>>
    %c66_153 = arith.constant 66 : index
    %625 = memref.load %arg0[%c66_153] : memref<128xi32, #tpu.memory_space<smem>>
    %626 = arith.index_cast %625 : i32 to index
    %c0_154 = arith.constant 0 : index
    %627 = vector.load %arg3[%626, %c0_154] : memref<64x128xf32, #tpu.memory_space<vmem>>, vector<1x128xf32>
    %628 = vector.broadcast %624 : f32 to vector<1x128xf32>
    %629 = arith.mulf %628, %627 : vector<1x128xf32>
    %630 = arith.addf %621, %629 : vector<1x128xf32>
    %631 = vector.broadcast %624 : f32 to vector<1x1xf32>
    %632 = arith.addf %623, %631 : vector<1x1xf32>
    %c67 = arith.constant 67 : index
    %633 = memref.load %arg1[%c67] : memref<128xf32, #tpu.memory_space<smem>>
    %c67_155 = arith.constant 67 : index
    %634 = memref.load %arg0[%c67_155] : memref<128xi32, #tpu.memory_space<smem>>
    %635 = arith.index_cast %634 : i32 to index
    %c0_156 = arith.constant 0 : index
    %636 = vector.load %arg3[%635, %c0_156] : memref<64x128xf32, #tpu.memory_space<vmem>>, vector<1x128xf32>
    %637 = vector.broadcast %633 : f32 to vector<1x128xf32>
    %638 = arith.mulf %637, %636 : vector<1x128xf32>
    %639 = arith.addf %630, %638 : vector<1x128xf32>
    %640 = vector.broadcast %633 : f32 to vector<1x1xf32>
    %641 = arith.addf %632, %640 : vector<1x1xf32>
    %c68 = arith.constant 68 : index
    %642 = memref.load %arg1[%c68] : memref<128xf32, #tpu.memory_space<smem>>
    %c68_157 = arith.constant 68 : index
    %643 = memref.load %arg0[%c68_157] : memref<128xi32, #tpu.memory_space<smem>>
    %644 = arith.index_cast %643 : i32 to index
    %c0_158 = arith.constant 0 : index
    %645 = vector.load %arg3[%644, %c0_158] : memref<64x128xf32, #tpu.memory_space<vmem>>, vector<1x128xf32>
    %646 = vector.broadcast %642 : f32 to vector<1x128xf32>
    %647 = arith.mulf %646, %645 : vector<1x128xf32>
    %648 = arith.addf %639, %647 : vector<1x128xf32>
    %649 = vector.broadcast %642 : f32 to vector<1x1xf32>
    %650 = arith.addf %641, %649 : vector<1x1xf32>
    %c69 = arith.constant 69 : index
    %651 = memref.load %arg1[%c69] : memref<128xf32, #tpu.memory_space<smem>>
    %c69_159 = arith.constant 69 : index
    %652 = memref.load %arg0[%c69_159] : memref<128xi32, #tpu.memory_space<smem>>
    %653 = arith.index_cast %652 : i32 to index
    %c0_160 = arith.constant 0 : index
    %654 = vector.load %arg3[%653, %c0_160] : memref<64x128xf32, #tpu.memory_space<vmem>>, vector<1x128xf32>
    %655 = vector.broadcast %651 : f32 to vector<1x128xf32>
    %656 = arith.mulf %655, %654 : vector<1x128xf32>
    %657 = arith.addf %648, %656 : vector<1x128xf32>
    %658 = vector.broadcast %651 : f32 to vector<1x1xf32>
    %659 = arith.addf %650, %658 : vector<1x1xf32>
    %c70 = arith.constant 70 : index
    %660 = memref.load %arg1[%c70] : memref<128xf32, #tpu.memory_space<smem>>
    %c70_161 = arith.constant 70 : index
    %661 = memref.load %arg0[%c70_161] : memref<128xi32, #tpu.memory_space<smem>>
    %662 = arith.index_cast %661 : i32 to index
    %c0_162 = arith.constant 0 : index
    %663 = vector.load %arg3[%662, %c0_162] : memref<64x128xf32, #tpu.memory_space<vmem>>, vector<1x128xf32>
    %664 = vector.broadcast %660 : f32 to vector<1x128xf32>
    %665 = arith.mulf %664, %663 : vector<1x128xf32>
    %666 = arith.addf %657, %665 : vector<1x128xf32>
    %667 = vector.broadcast %660 : f32 to vector<1x1xf32>
    %668 = arith.addf %659, %667 : vector<1x1xf32>
    %c71 = arith.constant 71 : index
    %669 = memref.load %arg1[%c71] : memref<128xf32, #tpu.memory_space<smem>>
    %c71_163 = arith.constant 71 : index
    %670 = memref.load %arg0[%c71_163] : memref<128xi32, #tpu.memory_space<smem>>
    %671 = arith.index_cast %670 : i32 to index
    %c0_164 = arith.constant 0 : index
    %672 = vector.load %arg3[%671, %c0_164] : memref<64x128xf32, #tpu.memory_space<vmem>>, vector<1x128xf32>
    %673 = vector.broadcast %669 : f32 to vector<1x128xf32>
    %674 = arith.mulf %673, %672 : vector<1x128xf32>
    %675 = arith.addf %666, %674 : vector<1x128xf32>
    %676 = vector.broadcast %669 : f32 to vector<1x1xf32>
    %677 = arith.addf %668, %676 : vector<1x1xf32>
    %c72 = arith.constant 72 : index
    %678 = memref.load %arg1[%c72] : memref<128xf32, #tpu.memory_space<smem>>
    %c72_165 = arith.constant 72 : index
    %679 = memref.load %arg0[%c72_165] : memref<128xi32, #tpu.memory_space<smem>>
    %680 = arith.index_cast %679 : i32 to index
    %c0_166 = arith.constant 0 : index
    %681 = vector.load %arg3[%680, %c0_166] : memref<64x128xf32, #tpu.memory_space<vmem>>, vector<1x128xf32>
    %682 = vector.broadcast %678 : f32 to vector<1x128xf32>
    %683 = arith.mulf %682, %681 : vector<1x128xf32>
    %684 = arith.addf %675, %683 : vector<1x128xf32>
    %685 = vector.broadcast %678 : f32 to vector<1x1xf32>
    %686 = arith.addf %677, %685 : vector<1x1xf32>
    %c73 = arith.constant 73 : index
    %687 = memref.load %arg1[%c73] : memref<128xf32, #tpu.memory_space<smem>>
    %c73_167 = arith.constant 73 : index
    %688 = memref.load %arg0[%c73_167] : memref<128xi32, #tpu.memory_space<smem>>
    %689 = arith.index_cast %688 : i32 to index
    %c0_168 = arith.constant 0 : index
    %690 = vector.load %arg3[%689, %c0_168] : memref<64x128xf32, #tpu.memory_space<vmem>>, vector<1x128xf32>
    %691 = vector.broadcast %687 : f32 to vector<1x128xf32>
    %692 = arith.mulf %691, %690 : vector<1x128xf32>
    %693 = arith.addf %684, %692 : vector<1x128xf32>
    %694 = vector.broadcast %687 : f32 to vector<1x1xf32>
    %695 = arith.addf %686, %694 : vector<1x1xf32>
    %c74 = arith.constant 74 : index
    %696 = memref.load %arg1[%c74] : memref<128xf32, #tpu.memory_space<smem>>
    %c74_169 = arith.constant 74 : index
    %697 = memref.load %arg0[%c74_169] : memref<128xi32, #tpu.memory_space<smem>>
    %698 = arith.index_cast %697 : i32 to index
    %c0_170 = arith.constant 0 : index
    %699 = vector.load %arg3[%698, %c0_170] : memref<64x128xf32, #tpu.memory_space<vmem>>, vector<1x128xf32>
    %700 = vector.broadcast %696 : f32 to vector<1x128xf32>
    %701 = arith.mulf %700, %699 : vector<1x128xf32>
    %702 = arith.addf %693, %701 : vector<1x128xf32>
    %703 = vector.broadcast %696 : f32 to vector<1x1xf32>
    %704 = arith.addf %695, %703 : vector<1x1xf32>
    %c75 = arith.constant 75 : index
    %705 = memref.load %arg1[%c75] : memref<128xf32, #tpu.memory_space<smem>>
    %c75_171 = arith.constant 75 : index
    %706 = memref.load %arg0[%c75_171] : memref<128xi32, #tpu.memory_space<smem>>
    %707 = arith.index_cast %706 : i32 to index
    %c0_172 = arith.constant 0 : index
    %708 = vector.load %arg3[%707, %c0_172] : memref<64x128xf32, #tpu.memory_space<vmem>>, vector<1x128xf32>
    %709 = vector.broadcast %705 : f32 to vector<1x128xf32>
    %710 = arith.mulf %709, %708 : vector<1x128xf32>
    %711 = arith.addf %702, %710 : vector<1x128xf32>
    %712 = vector.broadcast %705 : f32 to vector<1x1xf32>
    %713 = arith.addf %704, %712 : vector<1x1xf32>
    %c76 = arith.constant 76 : index
    %714 = memref.load %arg1[%c76] : memref<128xf32, #tpu.memory_space<smem>>
    %c76_173 = arith.constant 76 : index
    %715 = memref.load %arg0[%c76_173] : memref<128xi32, #tpu.memory_space<smem>>
    %716 = arith.index_cast %715 : i32 to index
    %c0_174 = arith.constant 0 : index
    %717 = vector.load %arg3[%716, %c0_174] : memref<64x128xf32, #tpu.memory_space<vmem>>, vector<1x128xf32>
    %718 = vector.broadcast %714 : f32 to vector<1x128xf32>
    %719 = arith.mulf %718, %717 : vector<1x128xf32>
    %720 = arith.addf %711, %719 : vector<1x128xf32>
    %721 = vector.broadcast %714 : f32 to vector<1x1xf32>
    %722 = arith.addf %713, %721 : vector<1x1xf32>
    %c77 = arith.constant 77 : index
    %723 = memref.load %arg1[%c77] : memref<128xf32, #tpu.memory_space<smem>>
    %c77_175 = arith.constant 77 : index
    %724 = memref.load %arg0[%c77_175] : memref<128xi32, #tpu.memory_space<smem>>
    %725 = arith.index_cast %724 : i32 to index
    %c0_176 = arith.constant 0 : index
    %726 = vector.load %arg3[%725, %c0_176] : memref<64x128xf32, #tpu.memory_space<vmem>>, vector<1x128xf32>
    %727 = vector.broadcast %723 : f32 to vector<1x128xf32>
    %728 = arith.mulf %727, %726 : vector<1x128xf32>
    %729 = arith.addf %720, %728 : vector<1x128xf32>
    %730 = vector.broadcast %723 : f32 to vector<1x1xf32>
    %731 = arith.addf %722, %730 : vector<1x1xf32>
    %c78 = arith.constant 78 : index
    %732 = memref.load %arg1[%c78] : memref<128xf32, #tpu.memory_space<smem>>
    %c78_177 = arith.constant 78 : index
    %733 = memref.load %arg0[%c78_177] : memref<128xi32, #tpu.memory_space<smem>>
    %734 = arith.index_cast %733 : i32 to index
    %c0_178 = arith.constant 0 : index
    %735 = vector.load %arg3[%734, %c0_178] : memref<64x128xf32, #tpu.memory_space<vmem>>, vector<1x128xf32>
    %736 = vector.broadcast %732 : f32 to vector<1x128xf32>
    %737 = arith.mulf %736, %735 : vector<1x128xf32>
    %738 = arith.addf %729, %737 : vector<1x128xf32>
    %739 = vector.broadcast %732 : f32 to vector<1x1xf32>
    %740 = arith.addf %731, %739 : vector<1x1xf32>
    %c79 = arith.constant 79 : index
    %741 = memref.load %arg1[%c79] : memref<128xf32, #tpu.memory_space<smem>>
    %c79_179 = arith.constant 79 : index
    %742 = memref.load %arg0[%c79_179] : memref<128xi32, #tpu.memory_space<smem>>
    %743 = arith.index_cast %742 : i32 to index
    %c0_180 = arith.constant 0 : index
    %744 = vector.load %arg3[%743, %c0_180] : memref<64x128xf32, #tpu.memory_space<vmem>>, vector<1x128xf32>
    %745 = vector.broadcast %741 : f32 to vector<1x128xf32>
    %746 = arith.mulf %745, %744 : vector<1x128xf32>
    %747 = arith.addf %738, %746 : vector<1x128xf32>
    %748 = vector.broadcast %741 : f32 to vector<1x1xf32>
    %749 = arith.addf %740, %748 : vector<1x1xf32>
    %cst_181 = arith.constant 1.000000e+00 : f32
    %750 = vector.broadcast %cst_181 : f32 to vector<1x1xf32>
    %751 = arith.maximumf %749, %750 : vector<1x1xf32>
    %752 = vector.broadcast %751 : vector<1x1xf32> to vector<1x128xf32>
    %753 = arith.divf %747, %752 : vector<1x128xf32>
    %c4_182 = arith.constant 4 : index
    %c0_183 = arith.constant 0 : index
    %754 = vector.load %arg8[%c4_182, %c0_183] : memref<8x128xf32, #tpu.memory_space<vmem>>, vector<1x128xf32>
    tpu.vector_store %arg8[%c4_182, %c0_183], %753 {strides = array<i32>} : memref<8x128xf32, #tpu.memory_space<vmem>>, vector<1x128xf32>,
    %cst_184 = arith.constant 0.000000e+00 : f32
    %755 = vector.broadcast %cst_184 : f32 to vector<1x128xf32>
    %cst_185 = arith.constant 0.000000e+00 : f32
    %756 = vector.broadcast %cst_185 : f32 to vector<1x1xf32>
    %c80 = arith.constant 80 : index
    %757 = memref.load %arg1[%c80] : memref<128xf32, #tpu.memory_space<smem>>
    %c80_186 = arith.constant 80 : index
    %758 = memref.load %arg0[%c80_186] : memref<128xi32, #tpu.memory_space<smem>>
    %759 = arith.index_cast %758 : i32 to index
    %c0_187 = arith.constant 0 : index
    %760 = vector.load %arg3[%759, %c0_187] : memref<64x128xf32, #tpu.memory_space<vmem>>, vector<1x128xf32>
    %761 = vector.broadcast %757 : f32 to vector<1x128xf32>
    %762 = arith.mulf %761, %760 : vector<1x128xf32>
    %763 = arith.addf %755, %762 : vector<1x128xf32>
    %764 = vector.broadcast %757 : f32 to vector<1x1xf32>
    %765 = arith.addf %756, %764 : vector<1x1xf32>
    %c81 = arith.constant 81 : index
    %766 = memref.load %arg1[%c81] : memref<128xf32, #tpu.memory_space<smem>>
    %c81_188 = arith.constant 81 : index
    %767 = memref.load %arg0[%c81_188] : memref<128xi32, #tpu.memory_space<smem>>
    %768 = arith.index_cast %767 : i32 to index
    %c0_189 = arith.constant 0 : index
    %769 = vector.load %arg3[%768, %c0_189] : memref<64x128xf32, #tpu.memory_space<vmem>>, vector<1x128xf32>
    %770 = vector.broadcast %766 : f32 to vector<1x128xf32>
    %771 = arith.mulf %770, %769 : vector<1x128xf32>
    %772 = arith.addf %763, %771 : vector<1x128xf32>
    %773 = vector.broadcast %766 : f32 to vector<1x1xf32>
    %774 = arith.addf %765, %773 : vector<1x1xf32>
    %c82 = arith.constant 82 : index
    %775 = memref.load %arg1[%c82] : memref<128xf32, #tpu.memory_space<smem>>
    %c82_190 = arith.constant 82 : index
    %776 = memref.load %arg0[%c82_190] : memref<128xi32, #tpu.memory_space<smem>>
    %777 = arith.index_cast %776 : i32 to index
    %c0_191 = arith.constant 0 : index
    %778 = vector.load %arg3[%777, %c0_191] : memref<64x128xf32, #tpu.memory_space<vmem>>, vector<1x128xf32>
    %779 = vector.broadcast %775 : f32 to vector<1x128xf32>
    %780 = arith.mulf %779, %778 : vector<1x128xf32>
    %781 = arith.addf %772, %780 : vector<1x128xf32>
    %782 = vector.broadcast %775 : f32 to vector<1x1xf32>
    %783 = arith.addf %774, %782 : vector<1x1xf32>
    %c83 = arith.constant 83 : index
    %784 = memref.load %arg1[%c83] : memref<128xf32, #tpu.memory_space<smem>>
    %c83_192 = arith.constant 83 : index
    %785 = memref.load %arg0[%c83_192] : memref<128xi32, #tpu.memory_space<smem>>
    %786 = arith.index_cast %785 : i32 to index
    %c0_193 = arith.constant 0 : index
    %787 = vector.load %arg3[%786, %c0_193] : memref<64x128xf32, #tpu.memory_space<vmem>>, vector<1x128xf32>
    %788 = vector.broadcast %784 : f32 to vector<1x128xf32>
    %789 = arith.mulf %788, %787 : vector<1x128xf32>
    %790 = arith.addf %781, %789 : vector<1x128xf32>
    %791 = vector.broadcast %784 : f32 to vector<1x1xf32>
    %792 = arith.addf %783, %791 : vector<1x1xf32>
    %c84 = arith.constant 84 : index
    %793 = memref.load %arg1[%c84] : memref<128xf32, #tpu.memory_space<smem>>
    %c84_194 = arith.constant 84 : index
    %794 = memref.load %arg0[%c84_194] : memref<128xi32, #tpu.memory_space<smem>>
    %795 = arith.index_cast %794 : i32 to index
    %c0_195 = arith.constant 0 : index
    %796 = vector.load %arg3[%795, %c0_195] : memref<64x128xf32, #tpu.memory_space<vmem>>, vector<1x128xf32>
    %797 = vector.broadcast %793 : f32 to vector<1x128xf32>
    %798 = arith.mulf %797, %796 : vector<1x128xf32>
    %799 = arith.addf %790, %798 : vector<1x128xf32>
    %800 = vector.broadcast %793 : f32 to vector<1x1xf32>
    %801 = arith.addf %792, %800 : vector<1x1xf32>
    %c85 = arith.constant 85 : index
    %802 = memref.load %arg1[%c85] : memref<128xf32, #tpu.memory_space<smem>>
    %c85_196 = arith.constant 85 : index
    %803 = memref.load %arg0[%c85_196] : memref<128xi32, #tpu.memory_space<smem>>
    %804 = arith.index_cast %803 : i32 to index
    %c0_197 = arith.constant 0 : index
    %805 = vector.load %arg3[%804, %c0_197] : memref<64x128xf32, #tpu.memory_space<vmem>>, vector<1x128xf32>
    %806 = vector.broadcast %802 : f32 to vector<1x128xf32>
    %807 = arith.mulf %806, %805 : vector<1x128xf32>
    %808 = arith.addf %799, %807 : vector<1x128xf32>
    %809 = vector.broadcast %802 : f32 to vector<1x1xf32>
    %810 = arith.addf %801, %809 : vector<1x1xf32>
    %c86 = arith.constant 86 : index
    %811 = memref.load %arg1[%c86] : memref<128xf32, #tpu.memory_space<smem>>
    %c86_198 = arith.constant 86 : index
    %812 = memref.load %arg0[%c86_198] : memref<128xi32, #tpu.memory_space<smem>>
    %813 = arith.index_cast %812 : i32 to index
    %c0_199 = arith.constant 0 : index
    %814 = vector.load %arg3[%813, %c0_199] : memref<64x128xf32, #tpu.memory_space<vmem>>, vector<1x128xf32>
    %815 = vector.broadcast %811 : f32 to vector<1x128xf32>
    %816 = arith.mulf %815, %814 : vector<1x128xf32>
    %817 = arith.addf %808, %816 : vector<1x128xf32>
    %818 = vector.broadcast %811 : f32 to vector<1x1xf32>
    %819 = arith.addf %810, %818 : vector<1x1xf32>
    %c87 = arith.constant 87 : index
    %820 = memref.load %arg1[%c87] : memref<128xf32, #tpu.memory_space<smem>>
    %c87_200 = arith.constant 87 : index
    %821 = memref.load %arg0[%c87_200] : memref<128xi32, #tpu.memory_space<smem>>
    %822 = arith.index_cast %821 : i32 to index
    %c0_201 = arith.constant 0 : index
    %823 = vector.load %arg3[%822, %c0_201] : memref<64x128xf32, #tpu.memory_space<vmem>>, vector<1x128xf32>
    %824 = vector.broadcast %820 : f32 to vector<1x128xf32>
    %825 = arith.mulf %824, %823 : vector<1x128xf32>
    %826 = arith.addf %817, %825 : vector<1x128xf32>
    %827 = vector.broadcast %820 : f32 to vector<1x1xf32>
    %828 = arith.addf %819, %827 : vector<1x1xf32>
    %c88 = arith.constant 88 : index
    %829 = memref.load %arg1[%c88] : memref<128xf32, #tpu.memory_space<smem>>
    %c88_202 = arith.constant 88 : index
    %830 = memref.load %arg0[%c88_202] : memref<128xi32, #tpu.memory_space<smem>>
    %831 = arith.index_cast %830 : i32 to index
    %c0_203 = arith.constant 0 : index
    %832 = vector.load %arg3[%831, %c0_203] : memref<64x128xf32, #tpu.memory_space<vmem>>, vector<1x128xf32>
    %833 = vector.broadcast %829 : f32 to vector<1x128xf32>
    %834 = arith.mulf %833, %832 : vector<1x128xf32>
    %835 = arith.addf %826, %834 : vector<1x128xf32>
    %836 = vector.broadcast %829 : f32 to vector<1x1xf32>
    %837 = arith.addf %828, %836 : vector<1x1xf32>
    %c89 = arith.constant 89 : index
    %838 = memref.load %arg1[%c89] : memref<128xf32, #tpu.memory_space<smem>>
    %c89_204 = arith.constant 89 : index
    %839 = memref.load %arg0[%c89_204] : memref<128xi32, #tpu.memory_space<smem>>
    %840 = arith.index_cast %839 : i32 to index
    %c0_205 = arith.constant 0 : index
    %841 = vector.load %arg3[%840, %c0_205] : memref<64x128xf32, #tpu.memory_space<vmem>>, vector<1x128xf32>
    %842 = vector.broadcast %838 : f32 to vector<1x128xf32>
    %843 = arith.mulf %842, %841 : vector<1x128xf32>
    %844 = arith.addf %835, %843 : vector<1x128xf32>
    %845 = vector.broadcast %838 : f32 to vector<1x1xf32>
    %846 = arith.addf %837, %845 : vector<1x1xf32>
    %c90 = arith.constant 90 : index
    %847 = memref.load %arg1[%c90] : memref<128xf32, #tpu.memory_space<smem>>
    %c90_206 = arith.constant 90 : index
    %848 = memref.load %arg0[%c90_206] : memref<128xi32, #tpu.memory_space<smem>>
    %849 = arith.index_cast %848 : i32 to index
    %c0_207 = arith.constant 0 : index
    %850 = vector.load %arg3[%849, %c0_207] : memref<64x128xf32, #tpu.memory_space<vmem>>, vector<1x128xf32>
    %851 = vector.broadcast %847 : f32 to vector<1x128xf32>
    %852 = arith.mulf %851, %850 : vector<1x128xf32>
    %853 = arith.addf %844, %852 : vector<1x128xf32>
    %854 = vector.broadcast %847 : f32 to vector<1x1xf32>
    %855 = arith.addf %846, %854 : vector<1x1xf32>
    %c91 = arith.constant 91 : index
    %856 = memref.load %arg1[%c91] : memref<128xf32, #tpu.memory_space<smem>>
    %c91_208 = arith.constant 91 : index
    %857 = memref.load %arg0[%c91_208] : memref<128xi32, #tpu.memory_space<smem>>
    %858 = arith.index_cast %857 : i32 to index
    %c0_209 = arith.constant 0 : index
    %859 = vector.load %arg3[%858, %c0_209] : memref<64x128xf32, #tpu.memory_space<vmem>>, vector<1x128xf32>
    %860 = vector.broadcast %856 : f32 to vector<1x128xf32>
    %861 = arith.mulf %860, %859 : vector<1x128xf32>
    %862 = arith.addf %853, %861 : vector<1x128xf32>
    %863 = vector.broadcast %856 : f32 to vector<1x1xf32>
    %864 = arith.addf %855, %863 : vector<1x1xf32>
    %c92 = arith.constant 92 : index
    %865 = memref.load %arg1[%c92] : memref<128xf32, #tpu.memory_space<smem>>
    %c92_210 = arith.constant 92 : index
    %866 = memref.load %arg0[%c92_210] : memref<128xi32, #tpu.memory_space<smem>>
    %867 = arith.index_cast %866 : i32 to index
    %c0_211 = arith.constant 0 : index
    %868 = vector.load %arg3[%867, %c0_211] : memref<64x128xf32, #tpu.memory_space<vmem>>, vector<1x128xf32>
    %869 = vector.broadcast %865 : f32 to vector<1x128xf32>
    %870 = arith.mulf %869, %868 : vector<1x128xf32>
    %871 = arith.addf %862, %870 : vector<1x128xf32>
    %872 = vector.broadcast %865 : f32 to vector<1x1xf32>
    %873 = arith.addf %864, %872 : vector<1x1xf32>
    %c93 = arith.constant 93 : index
    %874 = memref.load %arg1[%c93] : memref<128xf32, #tpu.memory_space<smem>>
    %c93_212 = arith.constant 93 : index
    %875 = memref.load %arg0[%c93_212] : memref<128xi32, #tpu.memory_space<smem>>
    %876 = arith.index_cast %875 : i32 to index
    %c0_213 = arith.constant 0 : index
    %877 = vector.load %arg3[%876, %c0_213] : memref<64x128xf32, #tpu.memory_space<vmem>>, vector<1x128xf32>
    %878 = vector.broadcast %874 : f32 to vector<1x128xf32>
    %879 = arith.mulf %878, %877 : vector<1x128xf32>
    %880 = arith.addf %871, %879 : vector<1x128xf32>
    %881 = vector.broadcast %874 : f32 to vector<1x1xf32>
    %882 = arith.addf %873, %881 : vector<1x1xf32>
    %c94 = arith.constant 94 : index
    %883 = memref.load %arg1[%c94] : memref<128xf32, #tpu.memory_space<smem>>
    %c94_214 = arith.constant 94 : index
    %884 = memref.load %arg0[%c94_214] : memref<128xi32, #tpu.memory_space<smem>>
    %885 = arith.index_cast %884 : i32 to index
    %c0_215 = arith.constant 0 : index
    %886 = vector.load %arg3[%885, %c0_215] : memref<64x128xf32, #tpu.memory_space<vmem>>, vector<1x128xf32>
    %887 = vector.broadcast %883 : f32 to vector<1x128xf32>
    %888 = arith.mulf %887, %886 : vector<1x128xf32>
    %889 = arith.addf %880, %888 : vector<1x128xf32>
    %890 = vector.broadcast %883 : f32 to vector<1x1xf32>
    %891 = arith.addf %882, %890 : vector<1x1xf32>
    %c95 = arith.constant 95 : index
    %892 = memref.load %arg1[%c95] : memref<128xf32, #tpu.memory_space<smem>>
    %c95_216 = arith.constant 95 : index
    %893 = memref.load %arg0[%c95_216] : memref<128xi32, #tpu.memory_space<smem>>
    %894 = arith.index_cast %893 : i32 to index
    %c0_217 = arith.constant 0 : index
    %895 = vector.load %arg3[%894, %c0_217] : memref<64x128xf32, #tpu.memory_space<vmem>>, vector<1x128xf32>
    %896 = vector.broadcast %892 : f32 to vector<1x128xf32>
    %897 = arith.mulf %896, %895 : vector<1x128xf32>
    %898 = arith.addf %889, %897 : vector<1x128xf32>
    %899 = vector.broadcast %892 : f32 to vector<1x1xf32>
    %900 = arith.addf %891, %899 : vector<1x1xf32>
    %cst_218 = arith.constant 1.000000e+00 : f32
    %901 = vector.broadcast %cst_218 : f32 to vector<1x1xf32>
    %902 = arith.maximumf %900, %901 : vector<1x1xf32>
    %903 = vector.broadcast %902 : vector<1x1xf32> to vector<1x128xf32>
    %904 = arith.divf %898, %903 : vector<1x128xf32>
    %c5_219 = arith.constant 5 : index
    %c0_220 = arith.constant 0 : index
    %905 = vector.load %arg8[%c5_219, %c0_220] : memref<8x128xf32, #tpu.memory_space<vmem>>, vector<1x128xf32>
    tpu.vector_store %arg8[%c5_219, %c0_220], %904 {strides = array<i32>} : memref<8x128xf32, #tpu.memory_space<vmem>>, vector<1x128xf32>,
    %cst_221 = arith.constant 0.000000e+00 : f32
    %906 = vector.broadcast %cst_221 : f32 to vector<1x128xf32>
    %cst_222 = arith.constant 0.000000e+00 : f32
    %907 = vector.broadcast %cst_222 : f32 to vector<1x1xf32>
    %c96 = arith.constant 96 : index
    %908 = memref.load %arg1[%c96] : memref<128xf32, #tpu.memory_space<smem>>
    %c96_223 = arith.constant 96 : index
    %909 = memref.load %arg0[%c96_223] : memref<128xi32, #tpu.memory_space<smem>>
    %910 = arith.index_cast %909 : i32 to index
    %c0_224 = arith.constant 0 : index
    %911 = vector.load %arg3[%910, %c0_224] : memref<64x128xf32, #tpu.memory_space<vmem>>, vector<1x128xf32>
    %912 = vector.broadcast %908 : f32 to vector<1x128xf32>
    %913 = arith.mulf %912, %911 : vector<1x128xf32>
    %914 = arith.addf %906, %913 : vector<1x128xf32>
    %915 = vector.broadcast %908 : f32 to vector<1x1xf32>
    %916 = arith.addf %907, %915 : vector<1x1xf32>
    %c97 = arith.constant 97 : index
    %917 = memref.load %arg1[%c97] : memref<128xf32, #tpu.memory_space<smem>>
    %c97_225 = arith.constant 97 : index
    %918 = memref.load %arg0[%c97_225] : memref<128xi32, #tpu.memory_space<smem>>
    %919 = arith.index_cast %918 : i32 to index
    %c0_226 = arith.constant 0 : index
    %920 = vector.load %arg3[%919, %c0_226] : memref<64x128xf32, #tpu.memory_space<vmem>>, vector<1x128xf32>
    %921 = vector.broadcast %917 : f32 to vector<1x128xf32>
    %922 = arith.mulf %921, %920 : vector<1x128xf32>
    %923 = arith.addf %914, %922 : vector<1x128xf32>
    %924 = vector.broadcast %917 : f32 to vector<1x1xf32>
    %925 = arith.addf %916, %924 : vector<1x1xf32>
    %c98 = arith.constant 98 : index
    %926 = memref.load %arg1[%c98] : memref<128xf32, #tpu.memory_space<smem>>
    %c98_227 = arith.constant 98 : index
    %927 = memref.load %arg0[%c98_227] : memref<128xi32, #tpu.memory_space<smem>>
    %928 = arith.index_cast %927 : i32 to index
    %c0_228 = arith.constant 0 : index
    %929 = vector.load %arg3[%928, %c0_228] : memref<64x128xf32, #tpu.memory_space<vmem>>, vector<1x128xf32>
    %930 = vector.broadcast %926 : f32 to vector<1x128xf32>
    %931 = arith.mulf %930, %929 : vector<1x128xf32>
    %932 = arith.addf %923, %931 : vector<1x128xf32>
    %933 = vector.broadcast %926 : f32 to vector<1x1xf32>
    %934 = arith.addf %925, %933 : vector<1x1xf32>
    %c99 = arith.constant 99 : index
    %935 = memref.load %arg1[%c99] : memref<128xf32, #tpu.memory_space<smem>>
    %c99_229 = arith.constant 99 : index
    %936 = memref.load %arg0[%c99_229] : memref<128xi32, #tpu.memory_space<smem>>
    %937 = arith.index_cast %936 : i32 to index
    %c0_230 = arith.constant 0 : index
    %938 = vector.load %arg3[%937, %c0_230] : memref<64x128xf32, #tpu.memory_space<vmem>>, vector<1x128xf32>
    %939 = vector.broadcast %935 : f32 to vector<1x128xf32>
    %940 = arith.mulf %939, %938 : vector<1x128xf32>
    %941 = arith.addf %932, %940 : vector<1x128xf32>
    %942 = vector.broadcast %935 : f32 to vector<1x1xf32>
    %943 = arith.addf %934, %942 : vector<1x1xf32>
    %c100 = arith.constant 100 : index
    %944 = memref.load %arg1[%c100] : memref<128xf32, #tpu.memory_space<smem>>
    %c100_231 = arith.constant 100 : index
    %945 = memref.load %arg0[%c100_231] : memref<128xi32, #tpu.memory_space<smem>>
    %946 = arith.index_cast %945 : i32 to index
    %c0_232 = arith.constant 0 : index
    %947 = vector.load %arg3[%946, %c0_232] : memref<64x128xf32, #tpu.memory_space<vmem>>, vector<1x128xf32>
    %948 = vector.broadcast %944 : f32 to vector<1x128xf32>
    %949 = arith.mulf %948, %947 : vector<1x128xf32>
    %950 = arith.addf %941, %949 : vector<1x128xf32>
    %951 = vector.broadcast %944 : f32 to vector<1x1xf32>
    %952 = arith.addf %943, %951 : vector<1x1xf32>
    %c101 = arith.constant 101 : index
    %953 = memref.load %arg1[%c101] : memref<128xf32, #tpu.memory_space<smem>>
    %c101_233 = arith.constant 101 : index
    %954 = memref.load %arg0[%c101_233] : memref<128xi32, #tpu.memory_space<smem>>
    %955 = arith.index_cast %954 : i32 to index
    %c0_234 = arith.constant 0 : index
    %956 = vector.load %arg3[%955, %c0_234] : memref<64x128xf32, #tpu.memory_space<vmem>>, vector<1x128xf32>
    %957 = vector.broadcast %953 : f32 to vector<1x128xf32>
    %958 = arith.mulf %957, %956 : vector<1x128xf32>
    %959 = arith.addf %950, %958 : vector<1x128xf32>
    %960 = vector.broadcast %953 : f32 to vector<1x1xf32>
    %961 = arith.addf %952, %960 : vector<1x1xf32>
    %c102 = arith.constant 102 : index
    %962 = memref.load %arg1[%c102] : memref<128xf32, #tpu.memory_space<smem>>
    %c102_235 = arith.constant 102 : index
    %963 = memref.load %arg0[%c102_235] : memref<128xi32, #tpu.memory_space<smem>>
    %964 = arith.index_cast %963 : i32 to index
    %c0_236 = arith.constant 0 : index
    %965 = vector.load %arg3[%964, %c0_236] : memref<64x128xf32, #tpu.memory_space<vmem>>, vector<1x128xf32>
    %966 = vector.broadcast %962 : f32 to vector<1x128xf32>
    %967 = arith.mulf %966, %965 : vector<1x128xf32>
    %968 = arith.addf %959, %967 : vector<1x128xf32>
    %969 = vector.broadcast %962 : f32 to vector<1x1xf32>
    %970 = arith.addf %961, %969 : vector<1x1xf32>
    %c103 = arith.constant 103 : index
    %971 = memref.load %arg1[%c103] : memref<128xf32, #tpu.memory_space<smem>>
    %c103_237 = arith.constant 103 : index
    %972 = memref.load %arg0[%c103_237] : memref<128xi32, #tpu.memory_space<smem>>
    %973 = arith.index_cast %972 : i32 to index
    %c0_238 = arith.constant 0 : index
    %974 = vector.load %arg3[%973, %c0_238] : memref<64x128xf32, #tpu.memory_space<vmem>>, vector<1x128xf32>
    %975 = vector.broadcast %971 : f32 to vector<1x128xf32>
    %976 = arith.mulf %975, %974 : vector<1x128xf32>
    %977 = arith.addf %968, %976 : vector<1x128xf32>
    %978 = vector.broadcast %971 : f32 to vector<1x1xf32>
    %979 = arith.addf %970, %978 : vector<1x1xf32>
    %c104 = arith.constant 104 : index
    %980 = memref.load %arg1[%c104] : memref<128xf32, #tpu.memory_space<smem>>
    %c104_239 = arith.constant 104 : index
    %981 = memref.load %arg0[%c104_239] : memref<128xi32, #tpu.memory_space<smem>>
    %982 = arith.index_cast %981 : i32 to index
    %c0_240 = arith.constant 0 : index
    %983 = vector.load %arg3[%982, %c0_240] : memref<64x128xf32, #tpu.memory_space<vmem>>, vector<1x128xf32>
    %984 = vector.broadcast %980 : f32 to vector<1x128xf32>
    %985 = arith.mulf %984, %983 : vector<1x128xf32>
    %986 = arith.addf %977, %985 : vector<1x128xf32>
    %987 = vector.broadcast %980 : f32 to vector<1x1xf32>
    %988 = arith.addf %979, %987 : vector<1x1xf32>
    %c105 = arith.constant 105 : index
    %989 = memref.load %arg1[%c105] : memref<128xf32, #tpu.memory_space<smem>>
    %c105_241 = arith.constant 105 : index
    %990 = memref.load %arg0[%c105_241] : memref<128xi32, #tpu.memory_space<smem>>
    %991 = arith.index_cast %990 : i32 to index
    %c0_242 = arith.constant 0 : index
    %992 = vector.load %arg3[%991, %c0_242] : memref<64x128xf32, #tpu.memory_space<vmem>>, vector<1x128xf32>
    %993 = vector.broadcast %989 : f32 to vector<1x128xf32>
    %994 = arith.mulf %993, %992 : vector<1x128xf32>
    %995 = arith.addf %986, %994 : vector<1x128xf32>
    %996 = vector.broadcast %989 : f32 to vector<1x1xf32>
    %997 = arith.addf %988, %996 : vector<1x1xf32>
    %c106 = arith.constant 106 : index
    %998 = memref.load %arg1[%c106] : memref<128xf32, #tpu.memory_space<smem>>
    %c106_243 = arith.constant 106 : index
    %999 = memref.load %arg0[%c106_243] : memref<128xi32, #tpu.memory_space<smem>>
    %1000 = arith.index_cast %999 : i32 to index
    %c0_244 = arith.constant 0 : index
    %1001 = vector.load %arg3[%1000, %c0_244] : memref<64x128xf32, #tpu.memory_space<vmem>>, vector<1x128xf32>
    %1002 = vector.broadcast %998 : f32 to vector<1x128xf32>
    %1003 = arith.mulf %1002, %1001 : vector<1x128xf32>
    %1004 = arith.addf %995, %1003 : vector<1x128xf32>
    %1005 = vector.broadcast %998 : f32 to vector<1x1xf32>
    %1006 = arith.addf %997, %1005 : vector<1x1xf32>
    %c107 = arith.constant 107 : index
    %1007 = memref.load %arg1[%c107] : memref<128xf32, #tpu.memory_space<smem>>
    %c107_245 = arith.constant 107 : index
    %1008 = memref.load %arg0[%c107_245] : memref<128xi32, #tpu.memory_space<smem>>
    %1009 = arith.index_cast %1008 : i32 to index
    %c0_246 = arith.constant 0 : index
    %1010 = vector.load %arg3[%1009, %c0_246] : memref<64x128xf32, #tpu.memory_space<vmem>>, vector<1x128xf32>
    %1011 = vector.broadcast %1007 : f32 to vector<1x128xf32>
    %1012 = arith.mulf %1011, %1010 : vector<1x128xf32>
    %1013 = arith.addf %1004, %1012 : vector<1x128xf32>
    %1014 = vector.broadcast %1007 : f32 to vector<1x1xf32>
    %1015 = arith.addf %1006, %1014 : vector<1x1xf32>
    %c108 = arith.constant 108 : index
    %1016 = memref.load %arg1[%c108] : memref<128xf32, #tpu.memory_space<smem>>
    %c108_247 = arith.constant 108 : index
    %1017 = memref.load %arg0[%c108_247] : memref<128xi32, #tpu.memory_space<smem>>
    %1018 = arith.index_cast %1017 : i32 to index
    %c0_248 = arith.constant 0 : index
    %1019 = vector.load %arg3[%1018, %c0_248] : memref<64x128xf32, #tpu.memory_space<vmem>>, vector<1x128xf32>
    %1020 = vector.broadcast %1016 : f32 to vector<1x128xf32>
    %1021 = arith.mulf %1020, %1019 : vector<1x128xf32>
    %1022 = arith.addf %1013, %1021 : vector<1x128xf32>
    %1023 = vector.broadcast %1016 : f32 to vector<1x1xf32>
    %1024 = arith.addf %1015, %1023 : vector<1x1xf32>
    %c109 = arith.constant 109 : index
    %1025 = memref.load %arg1[%c109] : memref<128xf32, #tpu.memory_space<smem>>
    %c109_249 = arith.constant 109 : index
    %1026 = memref.load %arg0[%c109_249] : memref<128xi32, #tpu.memory_space<smem>>
    %1027 = arith.index_cast %1026 : i32 to index
    %c0_250 = arith.constant 0 : index
    %1028 = vector.load %arg3[%1027, %c0_250] : memref<64x128xf32, #tpu.memory_space<vmem>>, vector<1x128xf32>
    %1029 = vector.broadcast %1025 : f32 to vector<1x128xf32>
    %1030 = arith.mulf %1029, %1028 : vector<1x128xf32>
    %1031 = arith.addf %1022, %1030 : vector<1x128xf32>
    %1032 = vector.broadcast %1025 : f32 to vector<1x1xf32>
    %1033 = arith.addf %1024, %1032 : vector<1x1xf32>
    %c110 = arith.constant 110 : index
    %1034 = memref.load %arg1[%c110] : memref<128xf32, #tpu.memory_space<smem>>
    %c110_251 = arith.constant 110 : index
    %1035 = memref.load %arg0[%c110_251] : memref<128xi32, #tpu.memory_space<smem>>
    %1036 = arith.index_cast %1035 : i32 to index
    %c0_252 = arith.constant 0 : index
    %1037 = vector.load %arg3[%1036, %c0_252] : memref<64x128xf32, #tpu.memory_space<vmem>>, vector<1x128xf32>
    %1038 = vector.broadcast %1034 : f32 to vector<1x128xf32>
    %1039 = arith.mulf %1038, %1037 : vector<1x128xf32>
    %1040 = arith.addf %1031, %1039 : vector<1x128xf32>
    %1041 = vector.broadcast %1034 : f32 to vector<1x1xf32>
    %1042 = arith.addf %1033, %1041 : vector<1x1xf32>
    %c111 = arith.constant 111 : index
    %1043 = memref.load %arg1[%c111] : memref<128xf32, #tpu.memory_space<smem>>
    %c111_253 = arith.constant 111 : index
    %1044 = memref.load %arg0[%c111_253] : memref<128xi32, #tpu.memory_space<smem>>
    %1045 = arith.index_cast %1044 : i32 to index
    %c0_254 = arith.constant 0 : index
    %1046 = vector.load %arg3[%1045, %c0_254] : memref<64x128xf32, #tpu.memory_space<vmem>>, vector<1x128xf32>
    %1047 = vector.broadcast %1043 : f32 to vector<1x128xf32>
    %1048 = arith.mulf %1047, %1046 : vector<1x128xf32>
    %1049 = arith.addf %1040, %1048 : vector<1x128xf32>
    %1050 = vector.broadcast %1043 : f32 to vector<1x1xf32>
    %1051 = arith.addf %1042, %1050 : vector<1x1xf32>
    %cst_255 = arith.constant 1.000000e+00 : f32
    %1052 = vector.broadcast %cst_255 : f32 to vector<1x1xf32>
    %1053 = arith.maximumf %1051, %1052 : vector<1x1xf32>
    %1054 = vector.broadcast %1053 : vector<1x1xf32> to vector<1x128xf32>
    %1055 = arith.divf %1049, %1054 : vector<1x128xf32>
    %c6_256 = arith.constant 6 : index
    %c0_257 = arith.constant 0 : index
    %1056 = vector.load %arg8[%c6_256, %c0_257] : memref<8x128xf32, #tpu.memory_space<vmem>>, vector<1x128xf32>
    tpu.vector_store %arg8[%c6_256, %c0_257], %1055 {strides = array<i32>} : memref<8x128xf32, #tpu.memory_space<vmem>>, vector<1x128xf32>,
    %cst_258 = arith.constant 0.000000e+00 : f32
    %1057 = vector.broadcast %cst_258 : f32 to vector<1x128xf32>
    %cst_259 = arith.constant 0.000000e+00 : f32
    %1058 = vector.broadcast %cst_259 : f32 to vector<1x1xf32>
    %c112 = arith.constant 112 : index
    %1059 = memref.load %arg1[%c112] : memref<128xf32, #tpu.memory_space<smem>>
    %c112_260 = arith.constant 112 : index
    %1060 = memref.load %arg0[%c112_260] : memref<128xi32, #tpu.memory_space<smem>>
    %1061 = arith.index_cast %1060 : i32 to index
    %c0_261 = arith.constant 0 : index
    %1062 = vector.load %arg3[%1061, %c0_261] : memref<64x128xf32, #tpu.memory_space<vmem>>, vector<1x128xf32>
    %1063 = vector.broadcast %1059 : f32 to vector<1x128xf32>
    %1064 = arith.mulf %1063, %1062 : vector<1x128xf32>
    %1065 = arith.addf %1057, %1064 : vector<1x128xf32>
    %1066 = vector.broadcast %1059 : f32 to vector<1x1xf32>
    %1067 = arith.addf %1058, %1066 : vector<1x1xf32>
    %c113 = arith.constant 113 : index
    %1068 = memref.load %arg1[%c113] : memref<128xf32, #tpu.memory_space<smem>>
    %c113_262 = arith.constant 113 : index
    %1069 = memref.load %arg0[%c113_262] : memref<128xi32, #tpu.memory_space<smem>>
    %1070 = arith.index_cast %1069 : i32 to index
    %c0_263 = arith.constant 0 : index
    %1071 = vector.load %arg3[%1070, %c0_263] : memref<64x128xf32, #tpu.memory_space<vmem>>, vector<1x128xf32>
    %1072 = vector.broadcast %1068 : f32 to vector<1x128xf32>
    %1073 = arith.mulf %1072, %1071 : vector<1x128xf32>
    %1074 = arith.addf %1065, %1073 : vector<1x128xf32>
    %1075 = vector.broadcast %1068 : f32 to vector<1x1xf32>
    %1076 = arith.addf %1067, %1075 : vector<1x1xf32>
    %c114 = arith.constant 114 : index
    %1077 = memref.load %arg1[%c114] : memref<128xf32, #tpu.memory_space<smem>>
    %c114_264 = arith.constant 114 : index
    %1078 = memref.load %arg0[%c114_264] : memref<128xi32, #tpu.memory_space<smem>>
    %1079 = arith.index_cast %1078 : i32 to index
    %c0_265 = arith.constant 0 : index
    %1080 = vector.load %arg3[%1079, %c0_265] : memref<64x128xf32, #tpu.memory_space<vmem>>, vector<1x128xf32>
    %1081 = vector.broadcast %1077 : f32 to vector<1x128xf32>
    %1082 = arith.mulf %1081, %1080 : vector<1x128xf32>
    %1083 = arith.addf %1074, %1082 : vector<1x128xf32>
    %1084 = vector.broadcast %1077 : f32 to vector<1x1xf32>
    %1085 = arith.addf %1076, %1084 : vector<1x1xf32>
    %c115 = arith.constant 115 : index
    %1086 = memref.load %arg1[%c115] : memref<128xf32, #tpu.memory_space<smem>>
    %c115_266 = arith.constant 115 : index
    %1087 = memref.load %arg0[%c115_266] : memref<128xi32, #tpu.memory_space<smem>>
    %1088 = arith.index_cast %1087 : i32 to index
    %c0_267 = arith.constant 0 : index
    %1089 = vector.load %arg3[%1088, %c0_267] : memref<64x128xf32, #tpu.memory_space<vmem>>, vector<1x128xf32>
    %1090 = vector.broadcast %1086 : f32 to vector<1x128xf32>
    %1091 = arith.mulf %1090, %1089 : vector<1x128xf32>
    %1092 = arith.addf %1083, %1091 : vector<1x128xf32>
    %1093 = vector.broadcast %1086 : f32 to vector<1x1xf32>
    %1094 = arith.addf %1085, %1093 : vector<1x1xf32>
    %c116 = arith.constant 116 : index
    %1095 = memref.load %arg1[%c116] : memref<128xf32, #tpu.memory_space<smem>>
    %c116_268 = arith.constant 116 : index
    %1096 = memref.load %arg0[%c116_268] : memref<128xi32, #tpu.memory_space<smem>>
    %1097 = arith.index_cast %1096 : i32 to index
    %c0_269 = arith.constant 0 : index
    %1098 = vector.load %arg3[%1097, %c0_269] : memref<64x128xf32, #tpu.memory_space<vmem>>, vector<1x128xf32>
    %1099 = vector.broadcast %1095 : f32 to vector<1x128xf32>
    %1100 = arith.mulf %1099, %1098 : vector<1x128xf32>
    %1101 = arith.addf %1092, %1100 : vector<1x128xf32>
    %1102 = vector.broadcast %1095 : f32 to vector<1x1xf32>
    %1103 = arith.addf %1094, %1102 : vector<1x1xf32>
    %c117 = arith.constant 117 : index
    %1104 = memref.load %arg1[%c117] : memref<128xf32, #tpu.memory_space<smem>>
    %c117_270 = arith.constant 117 : index
    %1105 = memref.load %arg0[%c117_270] : memref<128xi32, #tpu.memory_space<smem>>
    %1106 = arith.index_cast %1105 : i32 to index
    %c0_271 = arith.constant 0 : index
    %1107 = vector.load %arg3[%1106, %c0_271] : memref<64x128xf32, #tpu.memory_space<vmem>>, vector<1x128xf32>
    %1108 = vector.broadcast %1104 : f32 to vector<1x128xf32>
    %1109 = arith.mulf %1108, %1107 : vector<1x128xf32>
    %1110 = arith.addf %1101, %1109 : vector<1x128xf32>
    %1111 = vector.broadcast %1104 : f32 to vector<1x1xf32>
    %1112 = arith.addf %1103, %1111 : vector<1x1xf32>
    %c118 = arith.constant 118 : index
    %1113 = memref.load %arg1[%c118] : memref<128xf32, #tpu.memory_space<smem>>
    %c118_272 = arith.constant 118 : index
    %1114 = memref.load %arg0[%c118_272] : memref<128xi32, #tpu.memory_space<smem>>
    %1115 = arith.index_cast %1114 : i32 to index
    %c0_273 = arith.constant 0 : index
    %1116 = vector.load %arg3[%1115, %c0_273] : memref<64x128xf32, #tpu.memory_space<vmem>>, vector<1x128xf32>
    %1117 = vector.broadcast %1113 : f32 to vector<1x128xf32>
    %1118 = arith.mulf %1117, %1116 : vector<1x128xf32>
    %1119 = arith.addf %1110, %1118 : vector<1x128xf32>
    %1120 = vector.broadcast %1113 : f32 to vector<1x1xf32>
    %1121 = arith.addf %1112, %1120 : vector<1x1xf32>
    %c119 = arith.constant 119 : index
    %1122 = memref.load %arg1[%c119] : memref<128xf32, #tpu.memory_space<smem>>
    %c119_274 = arith.constant 119 : index
    %1123 = memref.load %arg0[%c119_274] : memref<128xi32, #tpu.memory_space<smem>>
    %1124 = arith.index_cast %1123 : i32 to index
    %c0_275 = arith.constant 0 : index
    %1125 = vector.load %arg3[%1124, %c0_275] : memref<64x128xf32, #tpu.memory_space<vmem>>, vector<1x128xf32>
    %1126 = vector.broadcast %1122 : f32 to vector<1x128xf32>
    %1127 = arith.mulf %1126, %1125 : vector<1x128xf32>
    %1128 = arith.addf %1119, %1127 : vector<1x128xf32>
    %1129 = vector.broadcast %1122 : f32 to vector<1x1xf32>
    %1130 = arith.addf %1121, %1129 : vector<1x1xf32>
    %c120 = arith.constant 120 : index
    %1131 = memref.load %arg1[%c120] : memref<128xf32, #tpu.memory_space<smem>>
    %c120_276 = arith.constant 120 : index
    %1132 = memref.load %arg0[%c120_276] : memref<128xi32, #tpu.memory_space<smem>>
    %1133 = arith.index_cast %1132 : i32 to index
    %c0_277 = arith.constant 0 : index
    %1134 = vector.load %arg3[%1133, %c0_277] : memref<64x128xf32, #tpu.memory_space<vmem>>, vector<1x128xf32>
    %1135 = vector.broadcast %1131 : f32 to vector<1x128xf32>
    %1136 = arith.mulf %1135, %1134 : vector<1x128xf32>
    %1137 = arith.addf %1128, %1136 : vector<1x128xf32>
    %1138 = vector.broadcast %1131 : f32 to vector<1x1xf32>
    %1139 = arith.addf %1130, %1138 : vector<1x1xf32>
    %c121 = arith.constant 121 : index
    %1140 = memref.load %arg1[%c121] : memref<128xf32, #tpu.memory_space<smem>>
    %c121_278 = arith.constant 121 : index
    %1141 = memref.load %arg0[%c121_278] : memref<128xi32, #tpu.memory_space<smem>>
    %1142 = arith.index_cast %1141 : i32 to index
    %c0_279 = arith.constant 0 : index
    %1143 = vector.load %arg3[%1142, %c0_279] : memref<64x128xf32, #tpu.memory_space<vmem>>, vector<1x128xf32>
    %1144 = vector.broadcast %1140 : f32 to vector<1x128xf32>
    %1145 = arith.mulf %1144, %1143 : vector<1x128xf32>
    %1146 = arith.addf %1137, %1145 : vector<1x128xf32>
    %1147 = vector.broadcast %1140 : f32 to vector<1x1xf32>
    %1148 = arith.addf %1139, %1147 : vector<1x1xf32>
    %c122 = arith.constant 122 : index
    %1149 = memref.load %arg1[%c122] : memref<128xf32, #tpu.memory_space<smem>>
    %c122_280 = arith.constant 122 : index
    %1150 = memref.load %arg0[%c122_280] : memref<128xi32, #tpu.memory_space<smem>>
    %1151 = arith.index_cast %1150 : i32 to index
    %c0_281 = arith.constant 0 : index
    %1152 = vector.load %arg3[%1151, %c0_281] : memref<64x128xf32, #tpu.memory_space<vmem>>, vector<1x128xf32>
    %1153 = vector.broadcast %1149 : f32 to vector<1x128xf32>
    %1154 = arith.mulf %1153, %1152 : vector<1x128xf32>
    %1155 = arith.addf %1146, %1154 : vector<1x128xf32>
    %1156 = vector.broadcast %1149 : f32 to vector<1x1xf32>
    %1157 = arith.addf %1148, %1156 : vector<1x1xf32>
    %c123 = arith.constant 123 : index
    %1158 = memref.load %arg1[%c123] : memref<128xf32, #tpu.memory_space<smem>>
    %c123_282 = arith.constant 123 : index
    %1159 = memref.load %arg0[%c123_282] : memref<128xi32, #tpu.memory_space<smem>>
    %1160 = arith.index_cast %1159 : i32 to index
    %c0_283 = arith.constant 0 : index
    %1161 = vector.load %arg3[%1160, %c0_283] : memref<64x128xf32, #tpu.memory_space<vmem>>, vector<1x128xf32>
    %1162 = vector.broadcast %1158 : f32 to vector<1x128xf32>
    %1163 = arith.mulf %1162, %1161 : vector<1x128xf32>
    %1164 = arith.addf %1155, %1163 : vector<1x128xf32>
    %1165 = vector.broadcast %1158 : f32 to vector<1x1xf32>
    %1166 = arith.addf %1157, %1165 : vector<1x1xf32>
    %c124 = arith.constant 124 : index
    %1167 = memref.load %arg1[%c124] : memref<128xf32, #tpu.memory_space<smem>>
    %c124_284 = arith.constant 124 : index
    %1168 = memref.load %arg0[%c124_284] : memref<128xi32, #tpu.memory_space<smem>>
    %1169 = arith.index_cast %1168 : i32 to index
    %c0_285 = arith.constant 0 : index
    %1170 = vector.load %arg3[%1169, %c0_285] : memref<64x128xf32, #tpu.memory_space<vmem>>, vector<1x128xf32>
    %1171 = vector.broadcast %1167 : f32 to vector<1x128xf32>
    %1172 = arith.mulf %1171, %1170 : vector<1x128xf32>
    %1173 = arith.addf %1164, %1172 : vector<1x128xf32>
    %1174 = vector.broadcast %1167 : f32 to vector<1x1xf32>
    %1175 = arith.addf %1166, %1174 : vector<1x1xf32>
    %c125 = arith.constant 125 : index
    %1176 = memref.load %arg1[%c125] : memref<128xf32, #tpu.memory_space<smem>>
    %c125_286 = arith.constant 125 : index
    %1177 = memref.load %arg0[%c125_286] : memref<128xi32, #tpu.memory_space<smem>>
    %1178 = arith.index_cast %1177 : i32 to index
    %c0_287 = arith.constant 0 : index
    %1179 = vector.load %arg3[%1178, %c0_287] : memref<64x128xf32, #tpu.memory_space<vmem>>, vector<1x128xf32>
    %1180 = vector.broadcast %1176 : f32 to vector<1x128xf32>
    %1181 = arith.mulf %1180, %1179 : vector<1x128xf32>
    %1182 = arith.addf %1173, %1181 : vector<1x128xf32>
    %1183 = vector.broadcast %1176 : f32 to vector<1x1xf32>
    %1184 = arith.addf %1175, %1183 : vector<1x1xf32>
    %c126 = arith.constant 126 : index
    %1185 = memref.load %arg1[%c126] : memref<128xf32, #tpu.memory_space<smem>>
    %c126_288 = arith.constant 126 : index
    %1186 = memref.load %arg0[%c126_288] : memref<128xi32, #tpu.memory_space<smem>>
    %1187 = arith.index_cast %1186 : i32 to index
    %c0_289 = arith.constant 0 : index
    %1188 = vector.load %arg3[%1187, %c0_289] : memref<64x128xf32, #tpu.memory_space<vmem>>, vector<1x128xf32>
    %1189 = vector.broadcast %1185 : f32 to vector<1x128xf32>
    %1190 = arith.mulf %1189, %1188 : vector<1x128xf32>
    %1191 = arith.addf %1182, %1190 : vector<1x128xf32>
    %1192 = vector.broadcast %1185 : f32 to vector<1x1xf32>
    %1193 = arith.addf %1184, %1192 : vector<1x1xf32>
    %c127 = arith.constant 127 : index
    %1194 = memref.load %arg1[%c127] : memref<128xf32, #tpu.memory_space<smem>>
    %c127_290 = arith.constant 127 : index
    %1195 = memref.load %arg0[%c127_290] : memref<128xi32, #tpu.memory_space<smem>>
    %1196 = arith.index_cast %1195 : i32 to index
    %c0_291 = arith.constant 0 : index
    %1197 = vector.load %arg3[%1196, %c0_291] : memref<64x128xf32, #tpu.memory_space<vmem>>, vector<1x128xf32>
    %1198 = vector.broadcast %1194 : f32 to vector<1x128xf32>
    %1199 = arith.mulf %1198, %1197 : vector<1x128xf32>
    %1200 = arith.addf %1191, %1199 : vector<1x128xf32>
    %1201 = vector.broadcast %1194 : f32 to vector<1x1xf32>
    %1202 = arith.addf %1193, %1201 : vector<1x1xf32>
    %cst_292 = arith.constant 1.000000e+00 : f32
    %1203 = vector.broadcast %cst_292 : f32 to vector<1x1xf32>
    %1204 = arith.maximumf %1202, %1203 : vector<1x1xf32>
    %1205 = vector.broadcast %1204 : vector<1x1xf32> to vector<1x128xf32>
    %1206 = arith.divf %1200, %1205 : vector<1x128xf32>
    %c7_293 = arith.constant 7 : index
    %c0_294 = arith.constant 0 : index
    %1207 = vector.load %arg8[%c7_293, %c0_294] : memref<8x128xf32, #tpu.memory_space<vmem>>, vector<1x128xf32>
    tpu.vector_store %arg8[%c7_293, %c0_294], %1206 {strides = array<i32>} : memref<8x128xf32, #tpu.memory_space<vmem>>, vector<1x128xf32>,
    %c0_295 = arith.constant 0 : index
    %c0_296 = arith.constant 0 : index
    %1208 = vector.load %arg8[%c0_295, %c0_296] : memref<8x128xf32, #tpu.memory_space<vmem>>, vector<8x128xf32>
    %1209 = arith.truncf %1208 : vector<8x128xf32> to vector<8x128xbf16>
    %c0_297 = arith.constant 0 : index
    %c0_298 = arith.constant 0 : index
    %1210 = vector.load %arg4[%c0_297, %c0_298] : memref<128x128xbf16, #tpu.memory_space<vmem>>, vector<128x128xbf16>
    %cst_299 = arith.constant dense<0.000000e+00> : vector<8x128xf32>
    %1211 = tpu.matmul %1209, %1210, %cst_299 {dimension_numbers = #tpu.dot_dimension_numbers<[1], [0], [0], [1], [0, 0, 1, 1], [], []>} : vector<8x128xbf16>, vector<128x128xbf16>, vector<8x128xf32> -> vector<8x128xf32>
    %c0_300 = arith.constant 0 : index
    %c0_301 = arith.constant 0 : index
    %1212 = vector.load %arg5[%c0_300, %c0_301] : memref<2x128xf32, #tpu.memory_space<vmem>>, vector<1x128xf32>
    %1213 = vector.broadcast %1212 : vector<1x128xf32> to vector<8x128xf32>
    %1214 = arith.addf %1211, %1213 : vector<8x128xf32>
    %c0_302 = arith.constant 0 : index
    %c0_303 = arith.constant 0 : index
    %1215 = vector.load %arg6[%c0_302, %c0_303] : memref<8x128xf32, #tpu.memory_space<vmem>>, vector<8x128xf32>
    tpu.vector_store %arg6[%c0_302, %c0_303], %1214 {strides = array<i32>} : memref<8x128xf32, #tpu.memory_space<vmem>>, vector<8x128xf32>,
    %1216 = tpu.iota {dimensions = array<i32: 1>} : vector<1x8xi32>
    %1217 = tpu.iota {dimensions = array<i32: 0>} : vector<8x1xi32>
    %c0_i32 = arith.constant 0 : i32
    %1218 = vector.broadcast %c0_i32 : i32 to vector<1x8xi32>
    %c0_i32_304 = arith.constant 0 : i32
    %1219 = vector.broadcast %c0_i32_304 : i32 to vector<8x1xi32>
    %c0_305 = arith.constant 0 : index
    %1220 = memref.load %arg2[%c0_305] : memref<8xi32, #tpu.memory_space<smem>>
    %c0_i32_306 = arith.constant 0 : i32
    %1221 = vector.broadcast %c0_i32_306 : i32 to vector<1x8xi32>
    %1222 = arith.cmpi eq, %1216, %1221 : vector<1x8xi32>
    %c0_i32_307 = arith.constant 0 : i32
    %1223 = vector.broadcast %1220 : i32 to vector<1x8xi32>
    %1224 = vector.broadcast %c0_i32_307 : i32 to vector<1x8xi32>
    %1225 = arith.select %1222, %1223, %1224 : vector<1x8xi1>, vector<1x8xi32>
    %1226 = arith.addi %1218, %1225 : vector<1x8xi32>
    %c0_i32_308 = arith.constant 0 : i32
    %1227 = vector.broadcast %c0_i32_308 : i32 to vector<8x1xi32>
    %1228 = arith.cmpi eq, %1217, %1227 : vector<8x1xi32>
    %c0_i32_309 = arith.constant 0 : i32
    %1229 = vector.broadcast %1220 : i32 to vector<8x1xi32>
    %1230 = vector.broadcast %c0_i32_309 : i32 to vector<8x1xi32>
    %1231 = arith.select %1228, %1229, %1230 : vector<8x1xi1>, vector<8x1xi32>
    %1232 = arith.addi %1219, %1231 : vector<8x1xi32>
    %c1_310 = arith.constant 1 : index
    %1233 = memref.load %arg2[%c1_310] : memref<8xi32, #tpu.memory_space<smem>>
    %c1_i32 = arith.constant 1 : i32
    %1234 = vector.broadcast %c1_i32 : i32 to vector<1x8xi32>
    %1235 = arith.cmpi eq, %1216, %1234 : vector<1x8xi32>
    %c0_i32_311 = arith.constant 0 : i32
    %1236 = vector.broadcast %1233 : i32 to vector<1x8xi32>
    %1237 = vector.broadcast %c0_i32_311 : i32 to vector<1x8xi32>
    %1238 = arith.select %1235, %1236, %1237 : vector<1x8xi1>, vector<1x8xi32>
    %1239 = arith.addi %1226, %1238 : vector<1x8xi32>
    %c1_i32_312 = arith.constant 1 : i32
    %1240 = vector.broadcast %c1_i32_312 : i32 to vector<8x1xi32>
    %1241 = arith.cmpi eq, %1217, %1240 : vector<8x1xi32>
    %c0_i32_313 = arith.constant 0 : i32
    %1242 = vector.broadcast %1233 : i32 to vector<8x1xi32>
    %1243 = vector.broadcast %c0_i32_313 : i32 to vector<8x1xi32>
    %1244 = arith.select %1241, %1242, %1243 : vector<8x1xi1>, vector<8x1xi32>
    %1245 = arith.addi %1232, %1244 : vector<8x1xi32>
    %c2_314 = arith.constant 2 : index
    %1246 = memref.load %arg2[%c2_314] : memref<8xi32, #tpu.memory_space<smem>>
    %c2_i32 = arith.constant 2 : i32
    %1247 = vector.broadcast %c2_i32 : i32 to vector<1x8xi32>
    %1248 = arith.cmpi eq, %1216, %1247 : vector<1x8xi32>
    %c0_i32_315 = arith.constant 0 : i32
    %1249 = vector.broadcast %1246 : i32 to vector<1x8xi32>
    %1250 = vector.broadcast %c0_i32_315 : i32 to vector<1x8xi32>
    %1251 = arith.select %1248, %1249, %1250 : vector<1x8xi1>, vector<1x8xi32>
    %1252 = arith.addi %1239, %1251 : vector<1x8xi32>
    %c2_i32_316 = arith.constant 2 : i32
    %1253 = vector.broadcast %c2_i32_316 : i32 to vector<8x1xi32>
    %1254 = arith.cmpi eq, %1217, %1253 : vector<8x1xi32>
    %c0_i32_317 = arith.constant 0 : i32
    %1255 = vector.broadcast %1246 : i32 to vector<8x1xi32>
    %1256 = vector.broadcast %c0_i32_317 : i32 to vector<8x1xi32>
    %1257 = arith.select %1254, %1255, %1256 : vector<8x1xi1>, vector<8x1xi32>
    %1258 = arith.addi %1245, %1257 : vector<8x1xi32>
    %c3_318 = arith.constant 3 : index
    %1259 = memref.load %arg2[%c3_318] : memref<8xi32, #tpu.memory_space<smem>>
    %c3_i32 = arith.constant 3 : i32
    %1260 = vector.broadcast %c3_i32 : i32 to vector<1x8xi32>
    %1261 = arith.cmpi eq, %1216, %1260 : vector<1x8xi32>
    %c0_i32_319 = arith.constant 0 : i32
    %1262 = vector.broadcast %1259 : i32 to vector<1x8xi32>
    %1263 = vector.broadcast %c0_i32_319 : i32 to vector<1x8xi32>
    %1264 = arith.select %1261, %1262, %1263 : vector<1x8xi1>, vector<1x8xi32>
    %1265 = arith.addi %1252, %1264 : vector<1x8xi32>
    %c3_i32_320 = arith.constant 3 : i32
    %1266 = vector.broadcast %c3_i32_320 : i32 to vector<8x1xi32>
    %1267 = arith.cmpi eq, %1217, %1266 : vector<8x1xi32>
    %c0_i32_321 = arith.constant 0 : i32
    %1268 = vector.broadcast %1259 : i32 to vector<8x1xi32>
    %1269 = vector.broadcast %c0_i32_321 : i32 to vector<8x1xi32>
    %1270 = arith.select %1267, %1268, %1269 : vector<8x1xi1>, vector<8x1xi32>
    %1271 = arith.addi %1258, %1270 : vector<8x1xi32>
    %c4_322 = arith.constant 4 : index
    %1272 = memref.load %arg2[%c4_322] : memref<8xi32, #tpu.memory_space<smem>>
    %c4_i32 = arith.constant 4 : i32
    %1273 = vector.broadcast %c4_i32 : i32 to vector<1x8xi32>
    %1274 = arith.cmpi eq, %1216, %1273 : vector<1x8xi32>
    %c0_i32_323 = arith.constant 0 : i32
    %1275 = vector.broadcast %1272 : i32 to vector<1x8xi32>
    %1276 = vector.broadcast %c0_i32_323 : i32 to vector<1x8xi32>
    %1277 = arith.select %1274, %1275, %1276 : vector<1x8xi1>, vector<1x8xi32>
    %1278 = arith.addi %1265, %1277 : vector<1x8xi32>
    %c4_i32_324 = arith.constant 4 : i32
    %1279 = vector.broadcast %c4_i32_324 : i32 to vector<8x1xi32>
    %1280 = arith.cmpi eq, %1217, %1279 : vector<8x1xi32>
    %c0_i32_325 = arith.constant 0 : i32
    %1281 = vector.broadcast %1272 : i32 to vector<8x1xi32>
    %1282 = vector.broadcast %c0_i32_325 : i32 to vector<8x1xi32>
    %1283 = arith.select %1280, %1281, %1282 : vector<8x1xi1>, vector<8x1xi32>
    %1284 = arith.addi %1271, %1283 : vector<8x1xi32>
    %c5_326 = arith.constant 5 : index
    %1285 = memref.load %arg2[%c5_326] : memref<8xi32, #tpu.memory_space<smem>>
    %c5_i32 = arith.constant 5 : i32
    %1286 = vector.broadcast %c5_i32 : i32 to vector<1x8xi32>
    %1287 = arith.cmpi eq, %1216, %1286 : vector<1x8xi32>
    %c0_i32_327 = arith.constant 0 : i32
    %1288 = vector.broadcast %1285 : i32 to vector<1x8xi32>
    %1289 = vector.broadcast %c0_i32_327 : i32 to vector<1x8xi32>
    %1290 = arith.select %1287, %1288, %1289 : vector<1x8xi1>, vector<1x8xi32>
    %1291 = arith.addi %1278, %1290 : vector<1x8xi32>
    %c5_i32_328 = arith.constant 5 : i32
    %1292 = vector.broadcast %c5_i32_328 : i32 to vector<8x1xi32>
    %1293 = arith.cmpi eq, %1217, %1292 : vector<8x1xi32>
    %c0_i32_329 = arith.constant 0 : i32
    %1294 = vector.broadcast %1285 : i32 to vector<8x1xi32>
    %1295 = vector.broadcast %c0_i32_329 : i32 to vector<8x1xi32>
    %1296 = arith.select %1293, %1294, %1295 : vector<8x1xi1>, vector<8x1xi32>
    %1297 = arith.addi %1284, %1296 : vector<8x1xi32>
    %c6_330 = arith.constant 6 : index
    %1298 = memref.load %arg2[%c6_330] : memref<8xi32, #tpu.memory_space<smem>>
    %c6_i32 = arith.constant 6 : i32
    %1299 = vector.broadcast %c6_i32 : i32 to vector<1x8xi32>
    %1300 = arith.cmpi eq, %1216, %1299 : vector<1x8xi32>
    %c0_i32_331 = arith.constant 0 : i32
    %1301 = vector.broadcast %1298 : i32 to vector<1x8xi32>
    %1302 = vector.broadcast %c0_i32_331 : i32 to vector<1x8xi32>
    %1303 = arith.select %1300, %1301, %1302 : vector<1x8xi1>, vector<1x8xi32>
    %1304 = arith.addi %1291, %1303 : vector<1x8xi32>
    %c6_i32_332 = arith.constant 6 : i32
    %1305 = vector.broadcast %c6_i32_332 : i32 to vector<8x1xi32>
    %1306 = arith.cmpi eq, %1217, %1305 : vector<8x1xi32>
    %c0_i32_333 = arith.constant 0 : i32
    %1307 = vector.broadcast %1298 : i32 to vector<8x1xi32>
    %1308 = vector.broadcast %c0_i32_333 : i32 to vector<8x1xi32>
    %1309 = arith.select %1306, %1307, %1308 : vector<8x1xi1>, vector<8x1xi32>
    %1310 = arith.addi %1297, %1309 : vector<8x1xi32>
    %c7_334 = arith.constant 7 : index
    %1311 = memref.load %arg2[%c7_334] : memref<8xi32, #tpu.memory_space<smem>>
    %c7_i32 = arith.constant 7 : i32
    %1312 = vector.broadcast %c7_i32 : i32 to vector<1x8xi32>
    %1313 = arith.cmpi eq, %1216, %1312 : vector<1x8xi32>
    %c0_i32_335 = arith.constant 0 : i32
    %1314 = vector.broadcast %1311 : i32 to vector<1x8xi32>
    %1315 = vector.broadcast %c0_i32_335 : i32 to vector<1x8xi32>
    %1316 = arith.select %1313, %1314, %1315 : vector<1x8xi1>, vector<1x8xi32>
    %1317 = arith.addi %1304, %1316 : vector<1x8xi32>
    %c7_i32_336 = arith.constant 7 : i32
    %1318 = vector.broadcast %c7_i32_336 : i32 to vector<8x1xi32>
    %1319 = arith.cmpi eq, %1217, %1318 : vector<8x1xi32>
    %c0_i32_337 = arith.constant 0 : i32
    %1320 = vector.broadcast %1311 : i32 to vector<8x1xi32>
    %1321 = vector.broadcast %c0_i32_337 : i32 to vector<8x1xi32>
    %1322 = arith.select %1319, %1320, %1321 : vector<8x1xi1>, vector<8x1xi32>
    %1323 = arith.addi %1310, %1322 : vector<8x1xi32>
    %1324 = vector.broadcast %1323 : vector<8x1xi32> to vector<8x8xi32>
    %1325 = vector.broadcast %1317 : vector<1x8xi32> to vector<8x8xi32>
    %1326 = arith.cmpi eq, %1324, %1325 : vector<8x8xi32>
    %1327 = arith.extui %1326 : vector<8x8xi1> to vector<8x8xi32>
    %1328 = arith.sitofp %1327 : vector<8x8xi32> to vector<8x8xf32>
    %1329 = arith.mulf %1214, %1214 : vector<8x128xf32>
    %cst_338 = arith.constant dense<0.000000e+00> : vector<8xf32>
    %1330 = vector.multi_reduction <add>, %1329, %cst_338 [1] : vector<8x128xf32> to vector<8xf32>
    %1331 = vector.shape_cast %1330 : vector<8xf32> to vector<8x1xf32>
    %cst_339 = arith.constant 1.000000e-24 : f32
    %1332 = vector.broadcast %cst_339 : f32 to vector<8x1xf32>
    %1333 = arith.maximumf %1331, %1332 : vector<8x1xf32>
    %1334 = math.rsqrt %1333 : vector<8x1xf32>
    %1335 = vector.broadcast %1334 : vector<8x1xf32> to vector<8x128xf32>
    %1336 = arith.mulf %1214, %1335 : vector<8x128xf32>
    %cst_340 = arith.constant dense<0.000000e+00> : vector<8x8xf32>
    %1337 = tpu.matmul %1336, %1336, %cst_340 {dimension_numbers = #tpu.dot_dimension_numbers<[1], [1], [0], [0], [0, 0, 1, 0], [], []>} : vector<8x128xf32>, vector<8x128xf32>, vector<8x8xf32> -> vector<8x8xf32>
    %cst_341 = arith.constant 14.2857141 : f32
    %1338 = vector.broadcast %cst_341 : f32 to vector<8x8xf32>
    %1339 = arith.mulf %1337, %1338 : vector<8x8xf32>
    %1340 = arith.mulf %1339, %1328 : vector<8x8xf32>
    %cst_342 = arith.constant dense<0.000000e+00> : vector<8xf32>
    %1341 = vector.multi_reduction <add>, %1340, %cst_342 [1] : vector<8x8xf32> to vector<8xf32>
    %1342 = vector.shape_cast %1341 : vector<8xf32> to vector<8x1xf32>
    %cst_343 = arith.constant dense<0.000000e+00> : vector<8xf32>
    %1343 = vector.multi_reduction <add>, %1328, %cst_343 [1] : vector<8x8xf32> to vector<8xf32>
    %1344 = vector.shape_cast %1343 : vector<8xf32> to vector<8x1xf32>
    %cst_344 = arith.constant 9.99999997E-7 : f32
    %1345 = vector.broadcast %cst_344 : f32 to vector<8x1xf32>
    %1346 = arith.maximumf %1344, %1345 : vector<8x1xf32>
    %1347 = arith.divf %1342, %1346 : vector<8x1xf32>
    %cst_345 = arith.constant 1.000000e+00 : f32
    %1348 = vector.broadcast %cst_345 : f32 to vector<8x8xf32>
    %1349 = arith.subf %1348, %1328 : vector<8x8xf32>
    %1350 = arith.mulf %1339, %1349 : vector<8x8xf32>
    %cst_346 = arith.constant dense<0xFF800000> : vector<8xf32>
    %1351 = vector.multi_reduction <maximumf>, %1350, %cst_346 [1] : vector<8x8xf32> to vector<8xf32>
    %1352 = vector.shape_cast %1351 : vector<8xf32> to vector<8x1xf32>
    %1353 = arith.maximumf %1347, %1352 : vector<8x1xf32>
    %1354 = arith.subf %1347, %1353 : vector<8x1xf32>
    %1355 = math.exp %1354 : vector<8x1xf32>
    %1356 = vector.broadcast %1353 : vector<8x1xf32> to vector<8x8xf32>
    %1357 = arith.subf %1350, %1356 : vector<8x8xf32>
    %1358 = math.exp %1357 : vector<8x8xf32>
    %cst_347 = arith.constant dense<0.000000e+00> : vector<8xf32>
    %1359 = vector.multi_reduction <add>, %1358, %cst_347 [1] : vector<8x8xf32> to vector<8xf32>
    %1360 = vector.shape_cast %1359 : vector<8xf32> to vector<8x1xf32>
    %1361 = arith.addf %1355, %1360 : vector<8x1xf32>
    %1362 = math.log %1361 : vector<8x1xf32>
    %1363 = arith.addf %1353, %1362 : vector<8x1xf32>
    %1364 = arith.subf %1363, %1347 : vector<8x1xf32>
    %cst_348 = arith.constant dense<0.000000e+00> : vector<1xf32>
    %1365 = vector.multi_reduction <add>, %1364, %cst_348 [0] : vector<8x1xf32> to vector<1xf32>
    %1366 = vector.shape_cast %1365 : vector<1xf32> to vector<1x1xf32>
    %cst_349 = arith.constant 1.250000e-01 : f32
    %1367 = vector.broadcast %cst_349 : f32 to vector<1x1xf32>
    %1368 = arith.mulf %1366, %1367 : vector<1x1xf32>
    %c1_350 = arith.constant 1 : index
    %c0_351 = arith.constant 0 : index
    %1369 = vector.load %arg5[%c1_350, %c0_351] : memref<2x128xf32, #tpu.memory_space<vmem>>, vector<1x128xf32>
    %1370 = vector.broadcast %1369 : vector<1x128xf32> to vector<8x128xf32>
    %1371 = arith.subf %1214, %1370 : vector<8x128xf32>
    %1372 = vector.broadcast %1369 : vector<1x128xf32> to vector<8x128xf32>
    %1373 = arith.subf %1214, %1372 : vector<8x128xf32>
    %1374 = arith.mulf %1371, %1373 : vector<8x128xf32>
    %cst_352 = arith.constant dense<0.000000e+00> : vector<8xf32>
    %1375 = vector.multi_reduction <add>, %1374, %cst_352 [1] : vector<8x128xf32> to vector<8xf32>
    %1376 = vector.shape_cast %1375 : vector<8xf32> to vector<8x1xf32>
    %c0_i32_353 = arith.constant 0 : i32
    %1377 = vector.broadcast %c0_i32_353 : i32 to vector<8x1xi32>
    %1378 = arith.cmpi eq, %1323, %1377 : vector<8x1xi32>
    %1379 = arith.extui %1378 : vector<8x1xi1> to vector<8x1xi32>
    %1380 = arith.sitofp %1379 : vector<8x1xi32> to vector<8x1xf32>
    %c1_i32_354 = arith.constant 1 : i32
    %1381 = vector.broadcast %c1_i32_354 : i32 to vector<8x1xi32>
    %1382 = arith.cmpi eq, %1323, %1381 : vector<8x1xi32>
    %1383 = arith.extui %1382 : vector<8x1xi1> to vector<8x1xi32>
    %1384 = arith.sitofp %1383 : vector<8x1xi32> to vector<8x1xf32>
    %cst_355 = arith.constant dense<0.000000e+00> : vector<1xf32>
    %1385 = vector.multi_reduction <add>, %1380, %cst_355 [0] : vector<8x1xf32> to vector<1xf32>
    %1386 = vector.shape_cast %1385 : vector<1xf32> to vector<1x1xf32>
    %cst_356 = arith.constant 1.000000e+00 : f32
    %1387 = vector.broadcast %cst_356 : f32 to vector<1x1xf32>
    %1388 = arith.maximumf %1386, %1387 : vector<1x1xf32>
    %cst_357 = arith.constant dense<0.000000e+00> : vector<1xf32>
    %1389 = vector.multi_reduction <add>, %1384, %cst_357 [0] : vector<8x1xf32> to vector<1xf32>
    %1390 = vector.shape_cast %1389 : vector<1xf32> to vector<1x1xf32>
    %cst_358 = arith.constant 1.000000e+00 : f32
    %1391 = vector.broadcast %cst_358 : f32 to vector<1x1xf32>
    %1392 = arith.maximumf %1390, %1391 : vector<1x1xf32>
    %1393 = arith.mulf %1376, %1380 : vector<8x1xf32>
    %cst_359 = arith.constant dense<0.000000e+00> : vector<1xf32>
    %1394 = vector.multi_reduction <add>, %1393, %cst_359 [0] : vector<8x1xf32> to vector<1xf32>
    %1395 = vector.shape_cast %1394 : vector<1xf32> to vector<1x1xf32>
    %1396 = arith.divf %1395, %1388 : vector<1x1xf32>
    %cst_360 = arith.constant 1.000000e+06 : f32
    %1397 = vector.broadcast %cst_360 : f32 to vector<8x1xf32>
    %1398 = arith.minimumf %1376, %1397 : vector<8x1xf32>
    %1399 = arith.mulf %1398, %1384 : vector<8x1xf32>
    %cst_361 = arith.constant dense<0.000000e+00> : vector<1xf32>
    %1400 = vector.multi_reduction <add>, %1399, %cst_361 [0] : vector<8x1xf32> to vector<1xf32>
    %1401 = vector.shape_cast %1400 : vector<1xf32> to vector<1x1xf32>
    %1402 = arith.divf %1401, %1392 : vector<1x1xf32>
    %1403 = arith.subf %1396, %1402 : vector<1x1xf32>
    %cst_362 = arith.constant 1.000000e+00 : f32
    %1404 = vector.broadcast %cst_362 : f32 to vector<1x1xf32>
    %1405 = arith.mulf %1404, %1368 : vector<1x1xf32>
    %cst_363 = arith.constant 1.000000e+00 : f32
    %1406 = vector.broadcast %cst_363 : f32 to vector<1x1xf32>
    %1407 = arith.mulf %1406, %1403 : vector<1x1xf32>
    %1408 = arith.addf %1405, %1407 : vector<1x1xf32>
    %1409 = tpu.iota {dimensions = array<i32: 1>} : vector<1x128xi32>
    %c0_i32_364 = arith.constant 0 : i32
    %1410 = vector.broadcast %c0_i32_364 : i32 to vector<1x128xi32>
    %1411 = arith.cmpi eq, %1409, %1410 : vector<1x128xi32>
    %cst_365 = arith.constant 0.000000e+00 : f32
    %1412 = vector.shape_cast %1408 : vector<1x1xf32> to vector<1x1xf32>
    %1413 = vector.broadcast %1412 : vector<1x1xf32> to vector<1x128xf32>
    %1414 = vector.broadcast %cst_365 : f32 to vector<1x128xf32>
    %1415 = arith.select %1411, %1413, %1414 : vector<1x128xi1>, vector<1x128xf32>
    %c1_i32_366 = arith.constant 1 : i32
    %1416 = vector.broadcast %c1_i32_366 : i32 to vector<1x128xi32>
    %1417 = arith.cmpi eq, %1409, %1416 : vector<1x128xi32>
    %cst_367 = arith.constant 0.000000e+00 : f32
    %1418 = vector.shape_cast %1368 : vector<1x1xf32> to vector<1x1xf32>
    %1419 = vector.broadcast %1418 : vector<1x1xf32> to vector<1x128xf32>
    %1420 = vector.broadcast %cst_367 : f32 to vector<1x128xf32>
    %1421 = arith.select %1417, %1419, %1420 : vector<1x128xi1>, vector<1x128xf32>
    %1422 = arith.addf %1415, %1421 : vector<1x128xf32>
    %c2_i32_368 = arith.constant 2 : i32
    %1423 = vector.broadcast %c2_i32_368 : i32 to vector<1x128xi32>
    %1424 = arith.cmpi eq, %1409, %1423 : vector<1x128xi32>
    %cst_369 = arith.constant 0.000000e+00 : f32
    %1425 = vector.shape_cast %1403 : vector<1x1xf32> to vector<1x1xf32>
    %1426 = vector.broadcast %1425 : vector<1x1xf32> to vector<1x128xf32>
    %1427 = vector.broadcast %cst_369 : f32 to vector<1x128xf32>
    %1428 = arith.select %1424, %1426, %1427 : vector<1x128xi1>, vector<1x128xf32>
    %1429 = arith.addf %1422, %1428 : vector<1x128xf32>
    %c0_370 = arith.constant 0 : index
    %c0_371 = arith.constant 0 : index
    %1430 = vector.load %arg7[%c0_370, %c0_371] : memref<1x128xf32, #tpu.memory_space<vmem>>, vector<1x128xf32>
    tpu.vector_store %arg7[%c0_370, %c0_371], %1429 {strides = array<i32>} : memref<1x128xf32, #tpu.memory_space<vmem>>, vector<1x128xf32>,
    return
  }
}

</mosaic_0001>

<llo_original>
// kernel: forward.1
$region0: #{forward.1}
  #allocation0 [shape = 'u32[]', space=smem, size = 0x4, offset = 0x4, fixed_abs, tag = 'smem constant byte address 0x4 - core index']
  #allocation1 [shape = 'u32[144,128]{1,0:T(1,128)}', space=vmem, size = 0x12000, scoped, tag = 'internal scratch']
  #allocation2 [shape = 'f32[8,128]{1,0:T(8,128)}', space=vmem, size = 0x1000, scoped, tag = 'scratch operand']
  %s0 = inlined_call_operand.vmem [shape: s32[128], index: 0, kind: input, shape index: {}]
  %s1 = inlined_call_operand.vmem [shape: f32[128], index: 1, kind: input, shape index: {}]
  %s2 = inlined_call_operand.vmem [shape: s32[8], index: 2, kind: input, shape index: {}]
  %s3 = inlined_call_operand.hbm [shape: f32[64,128], index: 3, kind: input, shape index: {}]
  %s4 = inlined_call_operand.hbm [shape: bf16[128,128], index: 4, kind: input, shape index: {}]
  %s5 = inlined_call_operand.vmem [shape: f32[2,128], index: 5, kind: input, shape index: {}]
  %s6 = inlined_call_operand.hbm [shape: f32[8,128], index: 6, kind: output, shape index: {0}]
  %s7 = inlined_call_operand.vmem [shape: f32[1,128], index: 7, kind: output, shape index: {1}]
  %8 = xla_tuple %s6, %s7
  %s9 = sld [smem:[#allocation0]]
  $region62: #{forward.1} parent=0
    _
  %s11 = ssub.s32 1, %s9
  %s12 = scalar_select 0, %s11, %s9
  $region1: #{forward.1} parent=0
    #allocation3 [shape = 'u8[512]{0}', space=smem, size = 0x200, scoped, tag = 'input window, operand 0, single buffered']
    #allocation4 [shape = 's32[1]{0}', space=sflag, size = 0x4, scoped, tag = 'scoped memory for forward.1']
    #allocation5 [shape = 's32[1]{0}', space=sflag, size = 0x4, scoped, tag = 'scoped memory for forward.1']
    #allocation6 [shape = 's32[1]{0}', space=sflag, size = 0x4, scoped, tag = 'scoped memory for forward.1']
    #allocation7 [shape = 'u8[512]{0}', space=smem, size = 0x200, scoped, tag = 'input window, operand 1, single buffered']
    #allocation8 [shape = 's32[1]{0}', space=sflag, size = 0x4, scoped, tag = 'scoped memory for forward.1']
    #allocation9 [shape = 'u8[512]{0}', space=smem, size = 0x200, scoped, tag = 'input window, operand 2, single buffered']
    #allocation10 [shape = 'u8[32768]{0}', space=vmem, size = 0x8000, scoped, tag = 'input window, operand 3, single buffered']
    #allocation11 [shape = 'u8[32768]{0}', space=vmem, size = 0x8000, scoped, tag = 'input window, operand 4, single buffered']
    #allocation12 [shape = 's32[1]{0}', space=sflag, size = 0x4, scoped, tag = 'scoped memory for forward.1']
    #allocation13 [shape = 'u8[4096]{0}', space=vmem, size = 0x1000, scoped, tag = 'output window, operand 0, single buffered']
    %13 = vsyncpa [#allocation6], 0
    %14 = vsyncpa [#allocation8], 0
    %15 = vsyncpa [#allocation4], 0
    %16 = vsyncpa [#allocation12], 0
    %17 = vsyncpa [#allocation5], 0
    // Predicated region
    $region2: #{forward.1} parent=1 // pred_check
      _
    $region3: #{forward.1} parent=1 // pred_check_branch
      %19 = sbr.rel (0) target = $region5
    $region4: #{forward.1} parent=1 // pred_region
      %s21 = ssub.s32 16, 16
      %22 = vsyncadd [#allocation6], %s21
      %s24 = sshll.u32 %s0, 4
      %s25 = int_to_ptr.vmem [resolvable:$true] %s24
      %27 = dma.vmem_to_smem %s25, 16, [#allocation3], [#allocation6]
    $region5: #{forward.1} parent=1 // pred_fallthru
      _
    // Predicated region
    $region6: #{forward.1} parent=1 // pred_check
      _
    $region7: #{forward.1} parent=1 // pred_check_branch
      %29 = sbr.rel (0) target = $region9
    $region8: #{forward.1} parent=1 // pred_region
      %s31 = ssub.s32 16, 16
      %32 = vsyncadd [#allocation8], %s31
      %s34 = sshll.u32 %s1, 4
      %s35 = int_to_ptr.vmem [resolvable:$true] %s34
      %37 = dma.vmem_to_smem %s35, 16, [#allocation7], [#allocation8]
    $region9: #{forward.1} parent=1 // pred_fallthru
      _
    // Predicated region
    $region10: #{forward.1} parent=1 // pred_check
      _
    $region11: #{forward.1} parent=1 // pred_check_branch
      %39 = sbr.rel (0) target = $region13
    $region12: #{forward.1} parent=1 // pred_region
      %s41 = ssub.s32 16, 16
      %42 = vsyncadd [#allocation8], %s41
      %s44 = sshll.u32 %s2, 4
      %s45 = int_to_ptr.vmem [resolvable:$true] %s44
      %47 = dma.vmem_to_smem %s45, 16, [#allocation9], [#allocation8]
    $region13: #{forward.1} parent=1 // pred_fallthru
      _
    // Predicated region
    $region14: #{forward.1} parent=1 // pred_check
      _
    $region15: #{forward.1} parent=1 // pred_check_branch
      %49 = sbr.rel (0) target = $region17
    $region16: #{forward.1} parent=1 // pred_region
      %s51 = ssub.s32 1024, 1024
      %52 = vsyncadd [#allocation4], %s51
      %s53 = sshll.u32 [#allocation10], 4
      %s54 = int_to_ptr.vmem [resolvable:$true] %s53
      %59 = dma.hbm_to_vmem [thread:$0]  %s3, 1024, %s54, [#allocation4], 128, 128, 8
    $region17: #{forward.1} parent=1 // pred_fallthru
      _
    // Predicated region
    $region18: #{forward.1} parent=1 // pred_check
      _
    $region19: #{forward.1} parent=1 // pred_check_branch
      %61 = sbr.rel (0) target = $region21
    $region20: #{forward.1} parent=1 // pred_region
      %s63 = ssub.s32 1024, 1024
      %64 = vsyncadd [#allocation12], %s63
      %s65 = sshll.u32 [#allocation11], 4
      %s66 = int_to_ptr.vmem [resolvable:$true] %s65
      %71 = dma.hbm_to_vmem [thread:$0]  %s4, 1024, %s66, [#allocation12], 64, 64, 4
    $region21: #{forward.1} parent=1 // pred_fallthru
      _
    // Predicated region
    $region22: #{forward.1} parent=1 // pred_check
      _
    $region23: #{forward.1} parent=1 // pred_check_branch
      %73 = sbr.rel (0) target = $region25
    $region24: #{forward.1} parent=1 // pred_region
      _
    $region25: #{forward.1} parent=1 // pred_fallthru
      _
    // Predicated region
    $region26: #{forward.1} parent=1 // pred_check
      _
    $region27: #{forward.1} parent=1 // pred_check_branch
      %75 = sbr.rel (0) target = $region29
    $region28: #{forward.1} parent=1 // pred_region
      %76 = dma.done [#allocation6], 16
    $region29: #{forward.1} parent=1 // pred_fallthru
      _
    // Predicated region
    $region30: #{forward.1} parent=1 // pred_check
      _
    $region31: #{forward.1} parent=1 // pred_check_branch
      %78 = sbr.rel (0) target = $region33
    $region32: #{forward.1} parent=1 // pred_region
      %79 = dma.done [#allocation8], 16
    $region33: #{forward.1} parent=1 // pred_fallthru
      _
    // Predicated region
    $region34: #{forward.1} parent=1 // pred_check
      _
    $region35: #{forward.1} parent=1 // pred_check_branch
      %81 = sbr.rel (0) target = $region37
    $region36: #{forward.1} parent=1 // pred_region
      %82 = dma.done [#allocation8], 16
    $region37: #{forward.1} parent=1 // pred_fallthru
      _
    // Predicated region
    $region38: #{forward.1} parent=1 // pred_check
      _
    $region39: #{forward.1} parent=1 // pred_check_branch
      %84 = sbr.rel (0) target = $region41
    $region40: #{forward.1} parent=1 // pred_region
      %85 = dma.done [#allocation4], 1024
    $region41: #{forward.1} parent=1 // pred_fallthru
      _
    // Predicated region
    $region42: #{forward.1} parent=1 // pred_check
      _
    $region43: #{forward.1} parent=1 // pred_check_branch
      %87 = sbr.rel (0) target = $region45
    $region44: #{forward.1} parent=1 // pred_region
      %88 = dma.done [#allocation12], 1024
    $region45: #{forward.1} parent=1 // pred_fallthru
      _
    %89 = sfence
    %s91 = sld [smem:[#allocation7]]
    %s92 = sld [smem:[#allocation3]]
    %s93 = scalar_lea.vmem [#allocation10], %s92
    %v94 = vld [vmem:[%s93] sm:$0x1]
    %v95 = vstv %s91
    %v96 = vmul.f32 %v95, %v94
    %v97 = vadd.f32 %v96, 0.0
    %v98 = vadd.f32 %v95, 0.0
    %s99 = sld [smem:[#allocation7 + $0x1]]
    %s100 = sld [smem:[#allocation3 + $0x1]]
    %s101 = scalar_lea.vmem [#allocation10], %s100
    %v102 = vld [vmem:[%s101] sm:$0x1]
    %v103 = vstv %s99
    %v104 = vmul.f32 %v103, %v102
    %v105 = vadd.f32 %v97, %v104
    %v106 = vadd.f32 %v98, %v103
    %s107 = sld [smem:[#allocation7 + $0x2]]
    %s108 = sld [smem:[#allocation3 + $0x2]]
    %s109 = scalar_lea.vmem [#allocation10], %s108
    %v110 = vld [vmem:[%s109] sm:$0x1]
    %v111 = vstv %s107
    %v112 = vmul.f32 %v111, %v110
    %v113 = vadd.f32 %v105, %v112
    %v114 = vadd.f32 %v106, %v111
    %s115 = sld [smem:[#allocation7 + $0x3]]
    %s116 = sld [smem:[#allocation3 + $0x3]]
    %s117 = scalar_lea.vmem [#allocation10], %s116
    %v118 = vld [vmem:[%s117] sm:$0x1]
    %v119 = vstv %s115
    %v120 = vmul.f32 %v119, %v118
    %v121 = vadd.f32 %v113, %v120
    %v122 = vadd.f32 %v114, %v119
    %s123 = sld [smem:[#allocation7 + $0x4]]
    %s124 = sld [smem:[#allocation3 + $0x4]]
    %s125 = scalar_lea.vmem [#allocation10], %s124
    %v126 = vld [vmem:[%s125] sm:$0x1]
    %v127 = vstv %s123
    %v128 = vmul.f32 %v127, %v126
    %v129 = vadd.f32 %v121, %v128
    %v130 = vadd.f32 %v122, %v127
    %s131 = sld [smem:[#allocation7 + $0x5]]
    %s132 = sld [smem:[#allocation3 + $0x5]]
    %s133 = scalar_lea.vmem [#allocation10], %s132
    %v134 = vld [vmem:[%s133] sm:$0x1]
    %v135 = vstv %s131
    %v136 = vmul.f32 %v135, %v134
    %v137 = vadd.f32 %v129, %v136
    %v138 = vadd.f32 %v130, %v135
    %s139 = sld [smem:[#allocation7 + $0x6]]
    %s140 = sld [smem:[#allocation3 + $0x6]]
    %s141 = scalar_lea.vmem [#allocation10], %s140
    %v142 = vld [vmem:[%s141] sm:$0x1]
    %v143 = vstv %s139
    %v144 = vmul.f32 %v143, %v142
    %v145 = vadd.f32 %v137, %v144
    %v146 = vadd.f32 %v138, %v143
    %s147 = sld [smem:[#allocation7 + $0x7]]
    %s148 = sld [smem:[#allocation3 + $0x7]]
    %s149 = scalar_lea.vmem [#allocation10], %s148
    %v150 = vld [vmem:[%s149] sm:$0x1]
    %v151 = vstv %s147
    %v152 = vmul.f32 %v151, %v150
    %v153 = vadd.f32 %v145, %v152
    %v154 = vadd.f32 %v146, %v151
    %s155 = sld [smem:[#allocation7 + $0x8]]
    %s156 = sld [smem:[#allocation3 + $0x8]]
    %s157 = scalar_lea.vmem [#allocation10], %s156
    %v158 = vld [vmem:[%s157] sm:$0x1]
    %v159 = vstv %s155
    %v160 = vmul.f32 %v159, %v158
    %v161 = vadd.f32 %v153, %v160
    %v162 = vadd.f32 %v154, %v159
    %s163 = sld [smem:[#allocation7 + $0x9]]
    %s164 = sld [smem:[#allocation3 + $0x9]]
    %s165 = scalar_lea.vmem [#allocation10], %s164
    %v166 = vld [vmem:[%s165] sm:$0x1]
    %v167 = vstv %s163
    %v168 = vmul.f32 %v167, %v166
    %v169 = vadd.f32 %v161, %v168
    %v170 = vadd.f32 %v162, %v167
    %s171 = sld [smem:[#allocation7 + $0xa]]
    %s172 = sld [smem:[#allocation3 + $0xa]]
    %s173 = scalar_lea.vmem [#allocation10], %s172
    %v174 = vld [vmem:[%s173] sm:$0x1]
    %v175 = vstv %s171
    %v176 = vmul.f32 %v175, %v174
    %v177 = vadd.f32 %v169, %v176
    %v178 = vadd.f32 %v170, %v175
    %s179 = sld [smem:[#allocation7 + $0xb]]
    %s180 = sld [smem:[#allocation3 + $0xb]]
    %s181 = scalar_lea.vmem [#allocation10], %s180
    %v182 = vld [vmem:[%s181] sm:$0x1]
    %v183 = vstv %s179
    %v184 = vmul.f32 %v183, %v182
    %v185 = vadd.f32 %v177, %v184
    %v186 = vadd.f32 %v178, %v183
    %s187 = sld [smem:[#allocation7 + $0xc]]
    %s188 = sld [smem:[#allocation3 + $0xc]]
    %s189 = scalar_lea.vmem [#allocation10], %s188
    %v190 = vld [vmem:[%s189] sm:$0x1]
    %v191 = vstv %s187
    %v192 = vmul.f32 %v191, %v190
    %v193 = vadd.f32 %v185, %v192
    %v194 = vadd.f32 %v186, %v191
    %s195 = sld [smem:[#allocation7 + $0xd]]
    %s196 = sld [smem:[#allocation3 + $0xd]]
    %s197 = scalar_lea.vmem [#allocation10], %s196
    %v198 = vld [vmem:[%s197] sm:$0x1]
    %v199 = vstv %s195
    %v200 = vmul.f32 %v199, %v198
    %v201 = vadd.f32 %v193, %v200
    %v202 = vadd.f32 %v194, %v199
    %s203 = sld [smem:[#allocation7 + $0xe]]
    %s204 = sld [smem:[#allocation3 + $0xe]]
    %s205 = scalar_lea.vmem [#allocation10], %s204
    %v206 = vld [vmem:[%s205] sm:$0x1]
    %v207 = vstv %s203
    %v208 = vmul.f32 %v207, %v206
    %v209 = vadd.f32 %v201, %v208
    %v210 = vadd.f32 %v202, %v207
    %s211 = sld [smem:[#allocation7 + $0xf]]
    %s212 = sld [smem:[#allocation3 + $0xf]]
    %s213 = scalar_lea.vmem [#allocation10], %s212
    %v214 = vld [vmem:[%s213] sm:$0x1]
    %v215 = vstv %s211
    %v216 = vmul.f32 %v215, %v214
    %v217 = vadd.f32 %v209, %v216
    %v218 = vadd.f32 %v210, %v215
    %v219 = vmax.f32 %v218, 1.0
    %v220 = vrcp.pop %v219
    %v221 = vmul.f32 %v217, %v220
    %222 = vst [vmem:[#allocation2] sm:$0x1] %v221
    %s223 = sld [smem:[#allocation7 + $0x10]]
    %s224 = sld [smem:[#allocation3 + $0x10]]
    %s225 = scalar_lea.vmem [#allocation10], %s224
    %v226 = vld [vmem:[%s225] sm:$0x1]
    %v227 = vstv %s223
    %v228 = vmul.f32 %v227, %v226
    %v229 = vadd.f32 %v228, 0.0
    %v230 = vadd.f32 %v227, 0.0
    %s231 = sld [smem:[#allocation7 + $0x11]]
    %s232 = sld [smem:[#allocation3 + $0x11]]
    %s233 = scalar_lea.vmem [#allocation10], %s232
    %v234 = vld [vmem:[%s233] sm:$0x1]
    %v235 = vstv %s231
    %v236 = vmul.f32 %v235, %v234
    %v237 = vadd.f32 %v229, %v236
    %v238 = vadd.f32 %v230, %v235
    %s239 = sld [smem:[#allocation7 + $0x12]]
    %s240 = sld [smem:[#allocation3 + $0x12]]
    %s241 = scalar_lea.vmem [#allocation10], %s240
    %v242 = vld [vmem:[%s241] sm:$0x1]
    %v243 = vstv %s239
    %v244 = vmul.f32 %v243, %v242
    %v245 = vadd.f32 %v237, %v244
    %v246 = vadd.f32 %v238, %v243
    %s247 = sld [smem:[#allocation7 + $0x13]]
    %s248 = sld [smem:[#allocation3 + $0x13]]
    %s249 = scalar_lea.vmem [#allocation10], %s248
    %v250 = vld [vmem:[%s249] sm:$0x1]
    %v251 = vstv %s247
    %v252 = vmul.f32 %v251, %v250
    %v253 = vadd.f32 %v245, %v252
    %v254 = vadd.f32 %v246, %v251
    %s255 = sld [smem:[#allocation7 + $0x14]]
    %s256 = sld [smem:[#allocation3 + $0x14]]
    %s257 = scalar_lea.vmem [#allocation10], %s256
    %v258 = vld [vmem:[%s257] sm:$0x1]
    %v259 = vstv %s255
    %v260 = vmul.f32 %v259, %v258
    %v261 = vadd.f32 %v253, %v260
    %v262 = vadd.f32 %v254, %v259
    %s263 = sld [smem:[#allocation7 + $0x15]]
    %s264 = sld [smem:[#allocation3 + $0x15]]
    %s265 = scalar_lea.vmem [#allocation10], %s264
    %v266 = vld [vmem:[%s265] sm:$0x1]
    %v267 = vstv %s263
    %v268 = vmul.f32 %v267, %v266
    %v269 = vadd.f32 %v261, %v268
    %v270 = vadd.f32 %v262, %v267
    %s271 = sld [smem:[#allocation7 + $0x16]]
    %s272 = sld [smem:[#allocation3 + $0x16]]
    %s273 = scalar_lea.vmem [#allocation10], %s272
    %v274 = vld [vmem:[%s273] sm:$0x1]
    %v275 = vstv %s271
    %v276 = vmul.f32 %v275, %v274
    %v277 = vadd.f32 %v269, %v276
    %v278 = vadd.f32 %v270, %v275
    %s279 = sld [smem:[#allocation7 + $0x17]]
    %s280 = sld [smem:[#allocation3 + $0x17]]
    %s281 = scalar_lea.vmem [#allocation10], %s280
    %v282 = vld [vmem:[%s281] sm:$0x1]
    %v283 = vstv %s279
    %v284 = vmul.f32 %v283, %v282
    %v285 = vadd.f32 %v277, %v284
    %v286 = vadd.f32 %v278, %v283
    %s287 = sld [smem:[#allocation7 + $0x18]]
    %s288 = sld [smem:[#allocation3 + $0x18]]
    %s289 = scalar_lea.vmem [#allocation10], %s288
    %v290 = vld [vmem:[%s289] sm:$0x1]
    %v291 = vstv %s287
    %v292 = vmul.f32 %v291, %v290
    %v293 = vadd.f32 %v285, %v292
    %v294 = vadd.f32 %v286, %v291
    %s295 = sld [smem:[#allocation7 + $0x19]]
    %s296 = sld [smem:[#allocation3 + $0x19]]
    %s297 = scalar_lea.vmem [#allocation10], %s296
    %v298 = vld [vmem:[%s297] sm:$0x1]
    %v299 = vstv %s295
    %v300 = vmul.f32 %v299, %v298
    %v301 = vadd.f32 %v293, %v300
    %v302 = vadd.f32 %v294, %v299
    %s303 = sld [smem:[#allocation7 + $0x1a]]
    %s304 = sld [smem:[#allocation3 + $0x1a]]
    %s305 = scalar_lea.vmem [#allocation10], %s304
    %v306 = vld [vmem:[%s305] sm:$0x1]
    %v307 = vstv %s303
    %v308 = vmul.f32 %v307, %v306
    %v309 = vadd.f32 %v301, %v308
    %v310 = vadd.f32 %v302, %v307
    %s311 = sld [smem:[#allocation7 + $0x1b]]
    %s312 = sld [smem:[#allocation3 + $0x1b]]
    %s313 = scalar_lea.vmem [#allocation10], %s312
    %v314 = vld [vmem:[%s313] sm:$0x1]
    %v315 = vstv %s311
    %v316 = vmul.f32 %v315, %v314
    %v317 = vadd.f32 %v309, %v316
    %v318 = vadd.f32 %v310, %v315
    %s319 = sld [smem:[#allocation7 + $0x1c]]
    %s320 = sld [smem:[#allocation3 + $0x1c]]
    %s321 = scalar_lea.vmem [#allocation10], %s320
    %v322 = vld [vmem:[%s321] sm:$0x1]
    %v323 = vstv %s319
    %v324 = vmul.f32 %v323, %v322
    %v325 = vadd.f32 %v317, %v324
    %v326 = vadd.f32 %v318, %v323
    %s327 = sld [smem:[#allocation7 + $0x1d]]
    %s328 = sld [smem:[#allocation3 + $0x1d]]
    %s329 = scalar_lea.vmem [#allocation10], %s328
    %v330 = vld [vmem:[%s329] sm:$0x1]
    %v331 = vstv %s327
    %v332 = vmul.f32 %v331, %v330
    %v333 = vadd.f32 %v325, %v332
    %v334 = vadd.f32 %v326, %v331
    %s335 = sld [smem:[#allocation7 + $0x1e]]
    %s336 = sld [smem:[#allocation3 + $0x1e]]
    %s337 = scalar_lea.vmem [#allocation10], %s336
    %v338 = vld [vmem:[%s337] sm:$0x1]
    %v339 = vstv %s335
    %v340 = vmul.f32 %v339, %v338
    %v341 = vadd.f32 %v333, %v340
    %v342 = vadd.f32 %v334, %v339
    %s343 = sld [smem:[#allocation7 + $0x1f]]
    %s344 = sld [smem:[#allocation3 + $0x1f]]
    %s345 = scalar_lea.vmem [#allocation10], %s344
    %v346 = vld [vmem:[%s345] sm:$0x1]
    %v347 = vstv %s343
    %v348 = vmul.f32 %v347, %v346
    %v349 = vadd.f32 %v341, %v348
    %v350 = vadd.f32 %v342, %v347
    %v351 = vmax.f32 %v350, 1.0
    %v352 = vrcp.pop %v351
    %v353 = vmul.f32 %v349, %v352
    %354 = vst [vmem:[#allocation2 + $0x1] sm:$0x1] %v353
    %s355 = sld [smem:[#allocation7 + $0x20]]
    %s356 = sld [smem:[#allocation3 + $0x20]]
    %s357 = scalar_lea.vmem [#allocation10], %s356
    %v358 = vld [vmem:[%s357] sm:$0x1]
    %v359 = vstv %s355
    %v360 = vmul.f32 %v359, %v358
    %v361 = vadd.f32 %v360, 0.0
    %v362 = vadd.f32 %v359, 0.0
    %s363 = sld [smem:[#allocation7 + $0x21]]
    %s364 = sld [smem:[#allocation3 + $0x21]]
    %s365 = scalar_lea.vmem [#allocation10], %s364
    %v366 = vld [vmem:[%s365] sm:$0x1]
    %v367 = vstv %s363
    %v368 = vmul.f32 %v367, %v366
    %v369 = vadd.f32 %v361, %v368
    %v370 = vadd.f32 %v362, %v367
    %s371 = sld [smem:[#allocation7 + $0x22]]
    %s372 = sld [smem:[#allocation3 + $0x22]]
    %s373 = scalar_lea.vmem [#allocation10], %s372
    %v374 = vld [vmem:[%s373] sm:$0x1]
    %v375 = vstv %s371
    %v376 = vmul.f32 %v375, %v374
    %v377 = vadd.f32 %v369, %v376
    %v378 = vadd.f32 %v370, %v375
    %s379 = sld [smem:[#allocation7 + $0x23]]
    %s380 = sld [smem:[#allocation3 + $0x23]]
    %s381 = scalar_lea.vmem [#allocation10], %s380
    %v382 = vld [vmem:[%s381] sm:$0x1]
    %v383 = vstv %s379
    %v384 = vmul.f32 %v383, %v382
    %v385 = vadd.f32 %v377, %v384
    %v386 = vadd.f32 %v378, %v383
    %s387 = sld [smem:[#allocation7 + $0x24]]
    %s388 = sld [smem:[#allocation3 + $0x24]]
    %s389 = scalar_lea.vmem [#allocation10], %s388
    %v390 = vld [vmem:[%s389] sm:$0x1]
    %v391 = vstv %s387
    %v392 = vmul.f32 %v391, %v390
    %v393 = vadd.f32 %v385, %v392
    %v394 = vadd.f32 %v386, %v391
    %s395 = sld [smem:[#allocation7 + $0x25]]
    %s396 = sld [smem:[#allocation3 + $0x25]]
    %s397 = scalar_lea.vmem [#allocation10], %s396
    %v398 = vld [vmem:[%s397] sm:$0x1]
    %v399 = vstv %s395
    %v400 = vmul.f32 %v399, %v398
    %v401 = vadd.f32 %v393, %v400
    %v402 = vadd.f32 %v394, %v399
    %s403 = sld [smem:[#allocation7 + $0x26]]
    %s404 = sld [smem:[#allocation3 + $0x26]]
    %s405 = scalar_lea.vmem [#allocation10], %s404
    %v406 = vld [vmem:[%s405] sm:$0x1]
    %v407 = vstv %s403
    %v408 = vmul.f32 %v407, %v406
    %v409 = vadd.f32 %v401, %v408
    %v410 = vadd.f32 %v402, %v407
    %s411 = sld [smem:[#allocation7 + $0x27]]
    %s412 = sld [smem:[#allocation3 + $0x27]]
    %s413 = scalar_lea.vmem [#allocation10], %s412
    %v414 = vld [vmem:[%s413] sm:$0x1]
    %v415 = vstv %s411
    %v416 = vmul.f32 %v415, %v414
    %v417 = vadd.f32 %v409, %v416
    %v418 = vadd.f32 %v410, %v415
    %s419 = sld [smem:[#allocation7 + $0x28]]
    %s420 = sld [smem:[#allocation3 + $0x28]]
    %s421 = scalar_lea.vmem [#allocation10], %s420
    %v422 = vld [vmem:[%s421] sm:$0x1]
    %v423 = vstv %s419
    %v424 = vmul.f32 %v423, %v422
    %v425 = vadd.f32 %v417, %v424
    %v426 = vadd.f32 %v418, %v423
    %s427 = sld [smem:[#allocation7 + $0x29]]
    %s428 = sld [smem:[#allocation3 + $0x29]]
    %s429 = scalar_lea.vmem [#allocation10], %s428
    %v430 = vld [vmem:[%s429] sm:$0x1]
    %v431 = vstv %s427
    %v432 = vmul.f32 %v431, %v430
    %v433 = vadd.f32 %v425, %v432
    %v434 = vadd.f32 %v426, %v431
    %s435 = sld [smem:[#allocation7 + $0x2a]]
    %s436 = sld [smem:[#allocation3 + $0x2a]]
    %s437 = scalar_lea.vmem [#allocation10], %s436
    %v438 = vld [vmem:[%s437] sm:$0x1]
    %v439 = vstv %s435
    %v440 = vmul.f32 %v439, %v438
    %v441 = vadd.f32 %v433, %v440
    %v442 = vadd.f32 %v434, %v439
    %s443 = sld [smem:[#allocation7 + $0x2b]]
    %s444 = sld [smem:[#allocation3 + $0x2b]]
    %s445 = scalar_lea.vmem [#allocation10], %s444
    %v446 = vld [vmem:[%s445] sm:$0x1]
    %v447 = vstv %s443
    %v448 = vmul.f32 %v447, %v446
    %v449 = vadd.f32 %v441, %v448
    %v450 = vadd.f32 %v442, %v447
    %s451 = sld [smem:[#allocation7 + $0x2c]]
    %s452 = sld [smem:[#allocation3 + $0x2c]]
    %s453 = scalar_lea.vmem [#allocation10], %s452
    %v454 = vld [vmem:[%s453] sm:$0x1]
    %v455 = vstv %s451
    %v456 = vmul.f32 %v455, %v454
    %v457 = vadd.f32 %v449, %v456
    %v458 = vadd.f32 %v450, %v455
    %s459 = sld [smem:[#allocation7 + $0x2d]]
    %s460 = sld [smem:[#allocation3 + $0x2d]]
    %s461 = scalar_lea.vmem [#allocation10], %s460
    %v462 = vld [vmem:[%s461] sm:$0x1]
    %v463 = vstv %s459
    %v464 = vmul.f32 %v463, %v462
    %v465 = vadd.f32 %v457, %v464
    %v466 = vadd.f32 %v458, %v463
    %s467 = sld [smem:[#allocation7 + $0x2e]]
    %s468 = sld [smem:[#allocation3 + $0x2e]]
    %s469 = scalar_lea.vmem [#allocation10], %s468
    %v470 = vld [vmem:[%s469] sm:$0x1]
    %v471 = vstv %s467
    %v472 = vmul.f32 %v471, %v470
    %v473 = vadd.f32 %v465, %v472
    %v474 = vadd.f32 %v466, %v471
    %s475 = sld [smem:[#allocation7 + $0x2f]]
    %s476 = sld [smem:[#allocation3 + $0x2f]]
    %s477 = scalar_lea.vmem [#allocation10], %s476
    %v478 = vld [vmem:[%s477] sm:$0x1]
    %v479 = vstv %s475
    %v480 = vmul.f32 %v479, %v478
    %v481 = vadd.f32 %v473, %v480
    %v482 = vadd.f32 %v474, %v479
    %v483 = vmax.f32 %v482, 1.0
    %v484 = vrcp.pop %v483
    %v485 = vmul.f32 %v481, %v484
    %486 = vst [vmem:[#allocation2 + $0x2] sm:$0x1] %v485
    %s487 = sld [smem:[#allocation7 + $0x30]]
    %s488 = sld [smem:[#allocation3 + $0x30]]
    %s489 = scalar_lea.vmem [#allocation10], %s488
    %v490 = vld [vmem:[%s489] sm:$0x1]
    %v491 = vstv %s487
    %v492 = vmul.f32 %v491, %v490
    %v493 = vadd.f32 %v492, 0.0
    %v494 = vadd.f32 %v491, 0.0
    %s495 = sld [smem:[#allocation7 + $0x31]]
    %s496 = sld [smem:[#allocation3 + $0x31]]
    %s497 = scalar_lea.vmem [#allocation10], %s496
    %v498 = vld [vmem:[%s497] sm:$0x1]
    %v499 = vstv %s495
    %v500 = vmul.f32 %v499, %v498
    %v501 = vadd.f32 %v493, %v500
    %v502 = vadd.f32 %v494, %v499
    %s503 = sld [smem:[#allocation7 + $0x32]]
    %s504 = sld [smem:[#allocation3 + $0x32]]
    %s505 = scalar_lea.vmem [#allocation10], %s504
    %v506 = vld [vmem:[%s505] sm:$0x1]
    %v507 = vstv %s503
    %v508 = vmul.f32 %v507, %v506
    %v509 = vadd.f32 %v501, %v508
    %v510 = vadd.f32 %v502, %v507
    %s511 = sld [smem:[#allocation7 + $0x33]]
    %s512 = sld [smem:[#allocation3 + $0x33]]
    %s513 = scalar_lea.vmem [#allocation10], %s512
    %v514 = vld [vmem:[%s513] sm:$0x1]
    %v515 = vstv %s511
    %v516 = vmul.f32 %v515, %v514
    %v517 = vadd.f32 %v509, %v516
    %v518 = vadd.f32 %v510, %v515
    %s519 = sld [smem:[#allocation7 + $0x34]]
    %s520 = sld [smem:[#allocation3 + $0x34]]
    %s521 = scalar_lea.vmem [#allocation10], %s520
    %v522 = vld [vmem:[%s521] sm:$0x1]
    %v523 = vstv %s519
    %v524 = vmul.f32 %v523, %v522
    %v525 = vadd.f32 %v517, %v524
    %v526 = vadd.f32 %v518, %v523
    %s527 = sld [smem:[#allocation7 + $0x35]]
    %s528 = sld [smem:[#allocation3 + $0x35]]
    %s529 = scalar_lea.vmem [#allocation10], %s528
    %v530 = vld [vmem:[%s529] sm:$0x1]
    %v531 = vstv %s527
    %v532 = vmul.f32 %v531, %v530
    %v533 = vadd.f32 %v525, %v532
    %v534 = vadd.f32 %v526, %v531
    %s535 = sld [smem:[#allocation7 + $0x36]]
    %s536 = sld [smem:[#allocation3 + $0x36]]
    %s537 = scalar_lea.vmem [#allocation10], %s536
    %v538 = vld [vmem:[%s537] sm:$0x1]
    %v539 = vstv %s535
    %v540 = vmul.f32 %v539, %v538
    %v541 = vadd.f32 %v533, %v540
    %v542 = vadd.f32 %v534, %v539
    %s543 = sld [smem:[#allocation7 + $0x37]]
    %s544 = sld [smem:[#allocation3 + $0x37]]
    %s545 = scalar_lea.vmem [#allocation10], %s544
    %v546 = vld [vmem:[%s545] sm:$0x1]
    %v547 = vstv %s543
    %v548 = vmul.f32 %v547, %v546
    %v549 = vadd.f32 %v541, %v548
    %v550 = vadd.f32 %v542, %v547
    %s551 = sld [smem:[#allocation7 + $0x38]]
    %s552 = sld [smem:[#allocation3 + $0x38]]
    %s553 = scalar_lea.vmem [#allocation10], %s552
    %v554 = vld [vmem:[%s553] sm:$0x1]
    %v555 = vstv %s551
    %v556 = vmul.f32 %v555, %v554
    %v557 = vadd.f32 %v549, %v556
    %v558 = vadd.f32 %v550, %v555
    %s559 = sld [smem:[#allocation7 + $0x39]]
    %s560 = sld [smem:[#allocation3 + $0x39]]
    %s561 = scalar_lea.vmem [#allocation10], %s560
    %v562 = vld [vmem:[%s561] sm:$0x1]
    %v563 = vstv %s559
    %v564 = vmul.f32 %v563, %v562
    %v565 = vadd.f32 %v557, %v564
    %v566 = vadd.f32 %v558, %v563
    %s567 = sld [smem:[#allocation7 + $0x3a]]
    %s568 = sld [smem:[#allocation3 + $0x3a]]
    %s569 = scalar_lea.vmem [#allocation10], %s568
    %v570 = vld [vmem:[%s569] sm:$0x1]
    %v571 = vstv %s567
    %v572 = vmul.f32 %v571, %v570
    %v573 = vadd.f32 %v565, %v572
    %v574 = vadd.f32 %v566, %v571
    %s575 = sld [smem:[#allocation7 + $0x3b]]
    %s576 = sld [smem:[#allocation3 + $0x3b]]
    %s577 = scalar_lea.vmem [#allocation10], %s576
    %v578 = vld [vmem:[%s577] sm:$0x1]
    %v579 = vstv %s575
    %v580 = vmul.f32 %v579, %v578
    %v581 = vadd.f32 %v573, %v580
    %v582 = vadd.f32 %v574, %v579
    %s583 = sld [smem:[#allocation7 + $0x3c]]
    %s584 = sld [smem:[#allocation3 + $0x3c]]
    %s585 = scalar_lea.vmem [#allocation10], %s584
    %v586 = vld [vmem:[%s585] sm:$0x1]
    %v587 = vstv %s583
    %v588 = vmul.f32 %v587, %v586
    %v589 = vadd.f32 %v581, %v588
    %v590 = vadd.f32 %v582, %v587
    %s591 = sld [smem:[#allocation7 + $0x3d]]
    %s592 = sld [smem:[#allocation3 + $0x3d]]
    %s593 = scalar_lea.vmem [#allocation10], %s592
    %v594 = vld [vmem:[%s593] sm:$0x1]
    %v595 = vstv %s591
    %v596 = vmul.f32 %v595, %v594
    %v597 = vadd.f32 %v589, %v596
    %v598 = vadd.f32 %v590, %v595
    %s599 = sld [smem:[#allocation7 + $0x3e]]
    %s600 = sld [smem:[#allocation3 + $0x3e]]
    %s601 = scalar_lea.vmem [#allocation10], %s600
    %v602 = vld [vmem:[%s601] sm:$0x1]
    %v603 = vstv %s599
    %v604 = vmul.f32 %v603, %v602
    %v605 = vadd.f32 %v597, %v604
    %v606 = vadd.f32 %v598, %v603
    %s607 = sld [smem:[#allocation7 + $0x3f]]
    %s608 = sld [smem:[#allocation3 + $0x3f]]
    %s609 = scalar_lea.vmem [#allocation10], %s608
    %v610 = vld [vmem:[%s609] sm:$0x1]
    %v611 = vstv %s607
    %v612 = vmul.f32 %v611, %v610
    %v613 = vadd.f32 %v605, %v612
    %v614 = vadd.f32 %v606, %v611
    %v615 = vmax.f32 %v614, 1.0
    %v616 = vrcp.pop %v615
    %v617 = vmul.f32 %v613, %v616
    %618 = vst [vmem:[#allocation2 + $0x3] sm:$0x1] %v617
    %s619 = sld [smem:[#allocation7 + $0x40]]
    %s620 = sld [smem:[#allocation3 + $0x40]]
    %s621 = scalar_lea.vmem [#allocation10], %s620
    %v622 = vld [vmem:[%s621] sm:$0x1]
    %v623 = vstv %s619
    %v624 = vmul.f32 %v623, %v622
    %v625 = vadd.f32 %v624, 0.0
    %v626 = vadd.f32 %v623, 0.0
    %s627 = sld [smem:[#allocation7 + $0x41]]
    %s628 = sld [smem:[#allocation3 + $0x41]]
    %s629 = scalar_lea.vmem [#allocation10], %s628
    %v630 = vld [vmem:[%s629] sm:$0x1]
    %v631 = vstv %s627
    %v632 = vmul.f32 %v631, %v630
    %v633 = vadd.f32 %v625, %v632
    %v634 = vadd.f32 %v626, %v631
    %s635 = sld [smem:[#allocation7 + $0x42]]
    %s636 = sld [smem:[#allocation3 + $0x42]]
    %s637 = scalar_lea.vmem [#allocation10], %s636
    %v638 = vld [vmem:[%s637] sm:$0x1]
    %v639 = vstv %s635
    %v640 = vmul.f32 %v639, %v638
    %v641 = vadd.f32 %v633, %v640
    %v642 = vadd.f32 %v634, %v639
    %s643 = sld [smem:[#allocation7 + $0x43]]
    %s644 = sld [smem:[#allocation3 + $0x43]]
    %s645 = scalar_lea.vmem [#allocation10], %s644
    %v646 = vld [vmem:[%s645] sm:$0x1]
    %v647 = vstv %s643
    %v648 = vmul.f32 %v647, %v646
    %v649 = vadd.f32 %v641, %v648
    %v650 = vadd.f32 %v642, %v647
    %s651 = sld [smem:[#allocation7 + $0x44]]
    %s652 = sld [smem:[#allocation3 + $0x44]]
    %s653 = scalar_lea.vmem [#allocation10], %s652
    %v654 = vld [vmem:[%s653] sm:$0x1]
    %v655 = vstv %s651
    %v656 = vmul.f32 %v655, %v654
    %v657 = vadd.f32 %v649, %v656
    %v658 = vadd.f32 %v650, %v655
    %s659 = sld [smem:[#allocation7 + $0x45]]
    %s660 = sld [smem:[#allocation3 + $0x45]]
    %s661 = scalar_lea.vmem [#allocation10], %s660
    %v662 = vld [vmem:[%s661] sm:$0x1]
    %v663 = vstv %s659
    %v664 = vmul.f32 %v663, %v662
    %v665 = vadd.f32 %v657, %v664
    %v666 = vadd.f32 %v658, %v663
    %s667 = sld [smem:[#allocation7 + $0x46]]
    %s668 = sld [smem:[#allocation3 + $0x46]]
    %s669 = scalar_lea.vmem [#allocation10], %s668
    %v670 = vld [vmem:[%s669] sm:$0x1]
    %v671 = vstv %s667
    %v672 = vmul.f32 %v671, %v670
    %v673 = vadd.f32 %v665, %v672
    %v674 = vadd.f32 %v666, %v671
    %s675 = sld [smem:[#allocation7 + $0x47]]
    %s676 = sld [smem:[#allocation3 + $0x47]]
    %s677 = scalar_lea.vmem [#allocation10], %s676
    %v678 = vld [vmem:[%s677] sm:$0x1]
    %v679 = vstv %s675
    %v680 = vmul.f32 %v679, %v678
    %v681 = vadd.f32 %v673, %v680
    %v682 = vadd.f32 %v674, %v679
    %s683 = sld [smem:[#allocation7 + $0x48]]
    %s684 = sld [smem:[#allocation3 + $0x48]]
    %s685 = scalar_lea.vmem [#allocation10], %s684
    %v686 = vld [vmem:[%s685] sm:$0x1]
    %v687 = vstv %s683
    %v688 = vmul.f32 %v687, %v686
    %v689 = vadd.f32 %v681, %v688
    %v690 = vadd.f32 %v682, %v687
    %s691 = sld [smem:[#allocation7 + $0x49]]
    %s692 = sld [smem:[#allocation3 + $0x49]]
    %s693 = scalar_lea.vmem [#allocation10], %s692
    %v694 = vld [vmem:[%s693] sm:$0x1]
    %v695 = vstv %s691
    %v696 = vmul.f32 %v695, %v694
    %v697 = vadd.f32 %v689, %v696
    %v698 = vadd.f32 %v690, %v695
    %s699 = sld [smem:[#allocation7 + $0x4a]]
    %s700 = sld [smem:[#allocation3 + $0x4a]]
    %s701 = scalar_lea.vmem [#allocation10], %s700
    %v702 = vld [vmem:[%s701] sm:$0x1]
    %v703 = vstv %s699
    %v704 = vmul.f32 %v703, %v702
    %v705 = vadd.f32 %v697, %v704
    %v706 = vadd.f32 %v698, %v703
    %s707 = sld [smem:[#allocation7 + $0x4b]]
    %s708 = sld [smem:[#allocation3 + $0x4b]]
    %s709 = scalar_lea.vmem [#allocation10], %s708
    %v710 = vld [vmem:[%s709] sm:$0x1]
    %v711 = vstv %s707
    %v712 = vmul.f32 %v711, %v710
    %v713 = vadd.f32 %v705, %v712
    %v714 = vadd.f32 %v706, %v711
    %s715 = sld [smem:[#allocation7 + $0x4c]]
    %s716 = sld [smem:[#allocation3 + $0x4c]]
    %s717 = scalar_lea.vmem [#allocation10], %s716
    %v718 = vld [vmem:[%s717] sm:$0x1]
    %v719 = vstv %s715
    %v720 = vmul.f32 %v719, %v718
    %v721 = vadd.f32 %v713, %v720
    %v722 = vadd.f32 %v714, %v719
    %s723 = sld [smem:[#allocation7 + $0x4d]]
    %s724 = sld [smem:[#allocation3 + $0x4d]]
    %s725 = scalar_lea.vmem [#allocation10], %s724
    %v726 = vld [vmem:[%s725] sm:$0x1]
    %v727 = vstv %s723
    %v728 = vmul.f32 %v727, %v726
    %v729 = vadd.f32 %v721, %v728
    %v730 = vadd.f32 %v722, %v727
    %s731 = sld [smem:[#allocation7 + $0x4e]]
    %s732 = sld [smem:[#allocation3 + $0x4e]]
    %s733 = scalar_lea.vmem [#allocation10], %s732
    %v734 = vld [vmem:[%s733] sm:$0x1]
    %v735 = vstv %s731
    %v736 = vmul.f32 %v735, %v734
    %v737 = vadd.f32 %v729, %v736
    %v738 = vadd.f32 %v730, %v735
    %s739 = sld [smem:[#allocation7 + $0x4f]]
    %s740 = sld [smem:[#allocation3 + $0x4f]]
    %s741 = scalar_lea.vmem [#allocation10], %s740
    %v742 = vld [vmem:[%s741] sm:$0x1]
    %v743 = vstv %s739
    %v744 = vmul.f32 %v743, %v742
    %v745 = vadd.f32 %v737, %v744
    %v746 = vadd.f32 %v738, %v743
    %v747 = vmax.f32 %v746, 1.0
    %v748 = vrcp.pop %v747
    %v749 = vmul.f32 %v745, %v748
    %750 = vst [vmem:[#allocation2 + $0x4] sm:$0x1] %v749
    %s751 = sld [smem:[#allocation7 + $0x50]]
    %s752 = sld [smem:[#allocation3 + $0x50]]
    %s753 = scalar_lea.vmem [#allocation10], %s752
    %v754 = vld [vmem:[%s753] sm:$0x1]
    %v755 = vstv %s751
    %v756 = vmul.f32 %v755, %v754
    %v757 = vadd.f32 %v756, 0.0
    %v758 = vadd.f32 %v755, 0.0
    %s759 = sld [smem:[#allocation7 + $0x51]]
    %s760 = sld [smem:[#allocation3 + $0x51]]
    %s761 = scalar_lea.vmem [#allocation10], %s760
    %v762 = vld [vmem:[%s761] sm:$0x1]
    %v763 = vstv %s759
    %v764 = vmul.f32 %v763, %v762
    %v765 = vadd.f32 %v757, %v764
    %v766 = vadd.f32 %v758, %v763
    %s767 = sld [smem:[#allocation7 + $0x52]]
    %s768 = sld [smem:[#allocation3 + $0x52]]
    %s769 = scalar_lea.vmem [#allocation10], %s768
    %v770 = vld [vmem:[%s769] sm:$0x1]
    %v771 = vstv %s767
    %v772 = vmul.f32 %v771, %v770
    %v773 = vadd.f32 %v765, %v772
    %v774 = vadd.f32 %v766, %v771
    %s775 = sld [smem:[#allocation7 + $0x53]]
    %s776 = sld [smem:[#allocation3 + $0x53]]
    %s777 = scalar_lea.vmem [#allocation10], %s776
    %v778 = vld [vmem:[%s777] sm:$0x1]
    %v779 = vstv %s775
    %v780 = vmul.f32 %v779, %v778
    %v781 = vadd.f32 %v773, %v780
    %v782 = vadd.f32 %v774, %v779
    %s783 = sld [smem:[#allocation7 + $0x54]]
    %s784 = sld [smem:[#allocation3 + $0x54]]
    %s785 = scalar_lea.vmem [#allocation10], %s784
    %v786 = vld [vmem:[%s785] sm:$0x1]
    %v787 = vstv %s783
    %v788 = vmul.f32 %v787, %v786
    %v789 = vadd.f32 %v781, %v788
    %v790 = vadd.f32 %v782, %v787
    %s791 = sld [smem:[#allocation7 + $0x55]]
    %s792 = sld [smem:[#allocation3 + $0x55]]
    %s793 = scalar_lea.vmem [#allocation10], %s792
    %v794 = vld [vmem:[%s793] sm:$0x1]
    %v795 = vstv %s791
    %v796 = vmul.f32 %v795, %v794
    %v797 = vadd.f32 %v789, %v796
    %v798 = vadd.f32 %v790, %v795
    %s799 = sld [smem:[#allocation7 + $0x56]]
    %s800 = sld [smem:[#allocation3 + $0x56]]
    %s801 = scalar_lea.vmem [#allocation10], %s800
    %v802 = vld [vmem:[%s801] sm:$0x1]
    %v803 = vstv %s799
    %v804 = vmul.f32 %v803, %v802
    %v805 = vadd.f32 %v797, %v804
    %v806 = vadd.f32 %v798, %v803
    %s807 = sld [smem:[#allocation7 + $0x57]]
    %s808 = sld [smem:[#allocation3 + $0x57]]
    %s809 = scalar_lea.vmem [#allocation10], %s808
    %v810 = vld [vmem:[%s809] sm:$0x1]
    %v811 = vstv %s807
    %v812 = vmul.f32 %v811, %v810
    %v813 = vadd.f32 %v805, %v812
    %v814 = vadd.f32 %v806, %v811
    %s815 = sld [smem:[#allocation7 + $0x58]]
    %s816 = sld [smem:[#allocation3 + $0x58]]
    %s817 = scalar_lea.vmem [#allocation10], %s816
    %v818 = vld [vmem:[%s817] sm:$0x1]
    %v819 = vstv %s815
    %v820 = vmul.f32 %v819, %v818
    %v821 = vadd.f32 %v813, %v820
    %v822 = vadd.f32 %v814, %v819
    %s823 = sld [smem:[#allocation7 + $0x59]]
    %s824 = sld [smem:[#allocation3 + $0x59]]
    %s825 = scalar_lea.vmem [#allocation10], %s824
    %v826 = vld [vmem:[%s825] sm:$0x1]
    %v827 = vstv %s823
    %v828 = vmul.f32 %v827, %v826
    %v829 = vadd.f32 %v821, %v828
    %v830 = vadd.f32 %v822, %v827
    %s831 = sld [smem:[#allocation7 + $0x5a]]
    %s832 = sld [smem:[#allocation3 + $0x5a]]
    %s833 = scalar_lea.vmem [#allocation10], %s832
    %v834 = vld [vmem:[%s833] sm:$0x1]
    %v835 = vstv %s831
    %v836 = vmul.f32 %v835, %v834
    %v837 = vadd.f32 %v829, %v836
    %v838 = vadd.f32 %v830, %v835
    %s839 = sld [smem:[#allocation7 + $0x5b]]
    %s840 = sld [smem:[#allocation3 + $0x5b]]
    %s841 = scalar_lea.vmem [#allocation10], %s840
    %v842 = vld [vmem:[%s841] sm:$0x1]
    %v843 = vstv %s839
    %v844 = vmul.f32 %v843, %v842
    %v845 = vadd.f32 %v837, %v844
    %v846 = vadd.f32 %v838, %v843
    %s847 = sld [smem:[#allocation7 + $0x5c]]
    %s848 = sld [smem:[#allocation3 + $0x5c]]
    %s849 = scalar_lea.vmem [#allocation10], %s848
    %v850 = vld [vmem:[%s849] sm:$0x1]
    %v851 = vstv %s847
    %v852 = vmul.f32 %v851, %v850
    %v853 = vadd.f32 %v845, %v852
    %v854 = vadd.f32 %v846, %v851
    %s855 = sld [smem:[#allocation7 + $0x5d]]
    %s856 = sld [smem:[#allocation3 + $0x5d]]
    %s857 = scalar_lea.vmem [#allocation10], %s856
    %v858 = vld [vmem:[%s857] sm:$0x1]
    %v859 = vstv %s855
    %v860 = vmul.f32 %v859, %v858
    %v861 = vadd.f32 %v853, %v860
    %v862 = vadd.f32 %v854, %v859
    %s863 = sld [smem:[#allocation7 + $0x5e]]
    %s864 = sld [smem:[#allocation3 + $0x5e]]
    %s865 = scalar_lea.vmem [#allocation10], %s864
    %v866 = vld [vmem:[%s865] sm:$0x1]
    %v867 = vstv %s863
    %v868 = vmul.f32 %v867, %v866
    %v869 = vadd.f32 %v861, %v868
    %v870 = vadd.f32 %v862, %v867
    %s871 = sld [smem:[#allocation7 + $0x5f]]
    %s872 = sld [smem:[#allocation3 + $0x5f]]
    %s873 = scalar_lea.vmem [#allocation10], %s872
    %v874 = vld [vmem:[%s873] sm:$0x1]
    %v875 = vstv %s871
    %v876 = vmul.f32 %v875, %v874
    %v877 = vadd.f32 %v869, %v876
    %v878 = vadd.f32 %v870, %v875
    %v879 = vmax.f32 %v878, 1.0
    %v880 = vrcp.pop %v879
    %v881 = vmul.f32 %v877, %v880
    %882 = vst [vmem:[#allocation2 + $0x5] sm:$0x1] %v881
    %s883 = sld [smem:[#allocation7 + $0x60]]
    %s884 = sld [smem:[#allocation3 + $0x60]]
    %s885 = scalar_lea.vmem [#allocation10], %s884
    %v886 = vld [vmem:[%s885] sm:$0x1]
    %v887 = vstv %s883
    %v888 = vmul.f32 %v887, %v886
    %v889 = vadd.f32 %v888, 0.0
    %v890 = vadd.f32 %v887, 0.0
    %s891 = sld [smem:[#allocation7 + $0x61]]
    %s892 = sld [smem:[#allocation3 + $0x61]]
    %s893 = scalar_lea.vmem [#allocation10], %s892
    %v894 = vld [vmem:[%s893] sm:$0x1]
    %v895 = vstv %s891
    %v896 = vmul.f32 %v895, %v894
    %v897 = vadd.f32 %v889, %v896
    %v898 = vadd.f32 %v890, %v895
    %s899 = sld [smem:[#allocation7 + $0x62]]
    %s900 = sld [smem:[#allocation3 + $0x62]]
    %s901 = scalar_lea.vmem [#allocation10], %s900
    %v902 = vld [vmem:[%s901] sm:$0x1]
    %v903 = vstv %s899
    %v904 = vmul.f32 %v903, %v902
    %v905 = vadd.f32 %v897, %v904
    %v906 = vadd.f32 %v898, %v903
    %s907 = sld [smem:[#allocation7 + $0x63]]
    %s908 = sld [smem:[#allocation3 + $0x63]]
    %s909 = scalar_lea.vmem [#allocation10], %s908
    %v910 = vld [vmem:[%s909] sm:$0x1]
    %v911 = vstv %s907
    %v912 = vmul.f32 %v911, %v910
    %v913 = vadd.f32 %v905, %v912
    %v914 = vadd.f32 %v906, %v911
    %s915 = sld [smem:[#allocation7 + $0x64]]
    %s916 = sld [smem:[#allocation3 + $0x64]]
    %s917 = scalar_lea.vmem [#allocation10], %s916
    %v918 = vld [vmem:[%s917] sm:$0x1]
    %v919 = vstv %s915
    %v920 = vmul.f32 %v919, %v918
    %v921 = vadd.f32 %v913, %v920
    %v922 = vadd.f32 %v914, %v919
    %s923 = sld [smem:[#allocation7 + $0x65]]
    %s924 = sld [smem:[#allocation3 + $0x65]]
    %s925 = scalar_lea.vmem [#allocation10], %s924
    %v926 = vld [vmem:[%s925] sm:$0x1]
    %v927 = vstv %s923
    %v928 = vmul.f32 %v927, %v926
    %v929 = vadd.f32 %v921, %v928
    %v930 = vadd.f32 %v922, %v927
    %s931 = sld [smem:[#allocation7 + $0x66]]
    %s932 = sld [smem:[#allocation3 + $0x66]]
    %s933 = scalar_lea.vmem [#allocation10], %s932
    %v934 = vld [vmem:[%s933] sm:$0x1]
    %v935 = vstv %s931
    %v936 = vmul.f32 %v935, %v934
    %v937 = vadd.f32 %v929, %v936
    %v938 = vadd.f32 %v930, %v935
    %s939 = sld [smem:[#allocation7 + $0x67]]
    %s940 = sld [smem:[#allocation3 + $0x67]]
    %s941 = scalar_lea.vmem [#allocation10], %s940
    %v942 = vld [vmem:[%s941] sm:$0x1]
    %v943 = vstv %s939
    %v944 = vmul.f32 %v943, %v942
    %v945 = vadd.f32 %v937, %v944
    %v946 = vadd.f32 %v938, %v943
    %s947 = sld [smem:[#allocation7 + $0x68]]
    %s948 = sld [smem:[#allocation3 + $0x68]]
    %s949 = scalar_lea.vmem [#allocation10], %s948
    %v950 = vld [vmem:[%s949] sm:$0x1]
    %v951 = vstv %s947
    %v952 = vmul.f32 %v951, %v950
    %v953 = vadd.f32 %v945, %v952
    %v954 = vadd.f32 %v946, %v951
    %s955 = sld [smem:[#allocation7 + $0x69]]
    %s956 = sld [smem:[#allocation3 + $0x69]]
    %s957 = scalar_lea.vmem [#allocation10], %s956
    %v958 = vld [vmem:[%s957] sm:$0x1]
    %v959 = vstv %s955
    %v960 = vmul.f32 %v959, %v958
    %v961 = vadd.f32 %v953, %v960
    %v962 = vadd.f32 %v954, %v959
    %s963 = sld [smem:[#allocation7 + $0x6a]]
    %s964 = sld [smem:[#allocation3 + $0x6a]]
    %s965 = scalar_lea.vmem [#allocation10], %s964
    %v966 = vld [vmem:[%s965] sm:$0x1]
    %v967 = vstv %s963
    %v968 = vmul.f32 %v967, %v966
    %v969 = vadd.f32 %v961, %v968
    %v970 = vadd.f32 %v962, %v967
    %s971 = sld [smem:[#allocation7 + $0x6b]]
    %s972 = sld [smem:[#allocation3 + $0x6b]]
    %s973 = scalar_lea.vmem [#allocation10], %s972
    %v974 = vld [vmem:[%s973] sm:$0x1]
    %v975 = vstv %s971
    %v976 = vmul.f32 %v975, %v974
    %v977 = vadd.f32 %v969, %v976
    %v978 = vadd.f32 %v970, %v975
    %s979 = sld [smem:[#allocation7 + $0x6c]]
    %s980 = sld [smem:[#allocation3 + $0x6c]]
    %s981 = scalar_lea.vmem [#allocation10], %s980
    %v982 = vld [vmem:[%s981] sm:$0x1]
    %v983 = vstv %s979
    %v984 = vmul.f32 %v983, %v982
    %v985 = vadd.f32 %v977, %v984
    %v986 = vadd.f32 %v978, %v983
    %s987 = sld [smem:[#allocation7 + $0x6d]]
    %s988 = sld [smem:[#allocation3 + $0x6d]]
    %s989 = scalar_lea.vmem [#allocation10], %s988
    %v990 = vld [vmem:[%s989] sm:$0x1]
    %v991 = vstv %s987
    %v992 = vmul.f32 %v991, %v990
    %v993 = vadd.f32 %v985, %v992
    %v994 = vadd.f32 %v986, %v991
    %s995 = sld [smem:[#allocation7 + $0x6e]]
    %s996 = sld [smem:[#allocation3 + $0x6e]]
    %s997 = scalar_lea.vmem [#allocation10], %s996
    %v998 = vld [vmem:[%s997] sm:$0x1]
    %v999 = vstv %s995
    %v1000 = vmul.f32 %v999, %v998
    %v1001 = vadd.f32 %v993, %v1000
    %v1002 = vadd.f32 %v994, %v999
    %s1003 = sld [smem:[#allocation7 + $0x6f]]
    %s1004 = sld [smem:[#allocation3 + $0x6f]]
    %s1005 = scalar_lea.vmem [#allocation10], %s1004
    %v1006 = vld [vmem:[%s1005] sm:$0x1]
    %v1007 = vstv %s1003
    %v1008 = vmul.f32 %v1007, %v1006
    %v1009 = vadd.f32 %v1001, %v1008
    %v1010 = vadd.f32 %v1002, %v1007
    %v1011 = vmax.f32 %v1010, 1.0
    %v1012 = vrcp.pop %v1011
    %v1013 = vmul.f32 %v1009, %v1012
    %1014 = vst [vmem:[#allocation2 + $0x6] sm:$0x1] %v1013
    %s1015 = sld [smem:[#allocation7 + $0x70]]
    %s1016 = sld [smem:[#allocation3 + $0x70]]
    %s1017 = scalar_lea.vmem [#allocation10], %s1016
    %v1018 = vld [vmem:[%s1017] sm:$0x1]
    %v1019 = vstv %s1015
    %v1020 = vmul.f32 %v1019, %v1018
    %v1021 = vadd.f32 %v1020, 0.0
    %v1022 = vadd.f32 %v1019, 0.0
    %s1023 = sld [smem:[#allocation7 + $0x71]]
    %s1024 = sld [smem:[#allocation3 + $0x71]]
    %s1025 = scalar_lea.vmem [#allocation10], %s1024
    %v1026 = vld [vmem:[%s1025] sm:$0x1]
    %v1027 = vstv %s1023
    %v1028 = vmul.f32 %v1027, %v1026
    %v1029 = vadd.f32 %v1021, %v1028
    %v1030 = vadd.f32 %v1022, %v1027
    %s1031 = sld [smem:[#allocation7 + $0x72]]
    %s1032 = sld [smem:[#allocation3 + $0x72]]
    %s1033 = scalar_lea.vmem [#allocation10], %s1032
    %v1034 = vld [vmem:[%s1033] sm:$0x1]
    %v1035 = vstv %s1031
    %v1036 = vmul.f32 %v1035, %v1034
    %v1037 = vadd.f32 %v1029, %v1036
    %v1038 = vadd.f32 %v1030, %v1035
    %s1039 = sld [smem:[#allocation7 + $0x73]]
    %s1040 = sld [smem:[#allocation3 + $0x73]]
    %s1041 = scalar_lea.vmem [#allocation10], %s1040
    %v1042 = vld [vmem:[%s1041] sm:$0x1]
    %v1043 = vstv %s1039
    %v1044 = vmul.f32 %v1043, %v1042
    %v1045 = vadd.f32 %v1037, %v1044
    %v1046 = vadd.f32 %v1038, %v1043
    %s1047 = sld [smem:[#allocation7 + $0x74]]
    %s1048 = sld [smem:[#allocation3 + $0x74]]
    %s1049 = scalar_lea.vmem [#allocation10], %s1048
    %v1050 = vld [vmem:[%s1049] sm:$0x1]
    %v1051 = vstv %s1047
    %v1052 = vmul.f32 %v1051, %v1050
    %v1053 = vadd.f32 %v1045, %v1052
    %v1054 = vadd.f32 %v1046, %v1051
    %s1055 = sld [smem:[#allocation7 + $0x75]]
    %s1056 = sld [smem:[#allocation3 + $0x75]]
    %s1057 = scalar_lea.vmem [#allocation10], %s1056
    %v1058 = vld [vmem:[%s1057] sm:$0x1]
    %v1059 = vstv %s1055
    %v1060 = vmul.f32 %v1059, %v1058
    %v1061 = vadd.f32 %v1053, %v1060
    %v1062 = vadd.f32 %v1054, %v1059
    %s1063 = sld [smem:[#allocation7 + $0x76]]
    %s1064 = sld [smem:[#allocation3 + $0x76]]
    %s1065 = scalar_lea.vmem [#allocation10], %s1064
    %v1066 = vld [vmem:[%s1065] sm:$0x1]
    %v1067 = vstv %s1063
    %v1068 = vmul.f32 %v1067, %v1066
    %v1069 = vadd.f32 %v1061, %v1068
    %v1070 = vadd.f32 %v1062, %v1067
    %s1071 = sld [smem:[#allocation7 + $0x77]]
    %s1072 = sld [smem:[#allocation3 + $0x77]]
    %s1073 = scalar_lea.vmem [#allocation10], %s1072
    %v1074 = vld [vmem:[%s1073] sm:$0x1]
    %v1075 = vstv %s1071
    %v1076 = vmul.f32 %v1075, %v1074
    %v1077 = vadd.f32 %v1069, %v1076
    %v1078 = vadd.f32 %v1070, %v1075
    %s1079 = sld [smem:[#allocation7 + $0x78]]
    %s1080 = sld [smem:[#allocation3 + $0x78]]
    %s1081 = scalar_lea.vmem [#allocation10], %s1080
    %v1082 = vld [vmem:[%s1081] sm:$0x1]
    %v1083 = vstv %s1079
    %v1084 = vmul.f32 %v1083, %v1082
    %v1085 = vadd.f32 %v1077, %v1084
    %v1086 = vadd.f32 %v1078, %v1083
    %s1087 = sld [smem:[#allocation7 + $0x79]]
    %s1088 = sld [smem:[#allocation3 + $0x79]]
    %s1089 = scalar_lea.vmem [#allocation10], %s1088
    %v1090 = vld [vmem:[%s1089] sm:$0x1]
    %v1091 = vstv %s1087
    %v1092 = vmul.f32 %v1091, %v1090
    %v1093 = vadd.f32 %v1085, %v1092
    %v1094 = vadd.f32 %v1086, %v1091
    %s1095 = sld [smem:[#allocation7 + $0x7a]]
    %s1096 = sld [smem:[#allocation3 + $0x7a]]
    %s1097 = scalar_lea.vmem [#allocation10], %s1096
    %v1098 = vld [vmem:[%s1097] sm:$0x1]
    %v1099 = vstv %s1095
    %v1100 = vmul.f32 %v1099, %v1098
    %v1101 = vadd.f32 %v1093, %v1100
    %v1102 = vadd.f32 %v1094, %v1099
    %s1103 = sld [smem:[#allocation7 + $0x7b]]
    %s1104 = sld [smem:[#allocation3 + $0x7b]]
    %s1105 = scalar_lea.vmem [#allocation10], %s1104
    %v1106 = vld [vmem:[%s1105] sm:$0x1]
    %v1107 = vstv %s1103
    %v1108 = vmul.f32 %v1107, %v1106
    %v1109 = vadd.f32 %v1101, %v1108
    %v1110 = vadd.f32 %v1102, %v1107
    %s1111 = sld [smem:[#allocation7 + $0x7c]]
    %s1112 = sld [smem:[#allocation3 + $0x7c]]
    %s1113 = scalar_lea.vmem [#allocation10], %s1112
    %v1114 = vld [vmem:[%s1113] sm:$0x1]
    %v1115 = vstv %s1111
    %v1116 = vmul.f32 %v1115, %v1114
    %v1117 = vadd.f32 %v1109, %v1116
    %v1118 = vadd.f32 %v1110, %v1115
    %s1119 = sld [smem:[#allocation7 + $0x7d]]
    %s1120 = sld [smem:[#allocation3 + $0x7d]]
    %s1121 = scalar_lea.vmem [#allocation10], %s1120
    %v1122 = vld [vmem:[%s1121] sm:$0x1]
    %v1123 = vstv %s1119
    %v1124 = vmul.f32 %v1123, %v1122
    %v1125 = vadd.f32 %v1117, %v1124
    %v1126 = vadd.f32 %v1118, %v1123
    %s1127 = sld [smem:[#allocation7 + $0x7e]]
    %s1128 = sld [smem:[#allocation3 + $0x7e]]
    %s1129 = scalar_lea.vmem [#allocation10], %s1128
    %v1130 = vld [vmem:[%s1129] sm:$0x1]
    %v1131 = vstv %s1127
    %v1132 = vmul.f32 %v1131, %v1130
    %v1133 = vadd.f32 %v1125, %v1132
    %v1134 = vadd.f32 %v1126, %v1131
    %s1135 = sld [smem:[#allocation7 + $0x7f]]
    %s1136 = sld [smem:[#allocation3 + $0x7f]]
    %s1137 = scalar_lea.vmem [#allocation10], %s1136
    %v1138 = vld [vmem:[%s1137] sm:$0x1]
    %v1139 = vstv %s1135
    %v1140 = vmul.f32 %v1139, %v1138
    %v1141 = vadd.f32 %v1133, %v1140
    %v1142 = vadd.f32 %v1134, %v1139
    %v1143 = vmax.f32 %v1142, 1.0
    %v1144 = vrcp.pop %v1143
    %v1145 = vmul.f32 %v1141, %v1144
    %1146 = vst [vmem:[#allocation2 + $0x7] sm:$0x1] %v1145
    %v1147 = vld [vmem:[#allocation2] sm:$0xff]
    %v1148 = vpack.c.bf16 %v1147, %v1147
    %v1149 = vld [vmem:[#allocation11] sm:$0xf]
    %v1150 = vld [vmem:[#allocation11 + $0x4] sm:$0xf]
    %v1151 = vld [vmem:[#allocation11 + $0x8] sm:$0xf]
    %v1152 = vld [vmem:[#allocation11 + $0xc] sm:$0xf]
    %v1153 = vld [vmem:[#allocation11 + $0x10] sm:$0xf]
    %v1154 = vld [vmem:[#allocation11 + $0x14] sm:$0xf]
    %v1155 = vld [vmem:[#allocation11 + $0x18] sm:$0xf]
    %v1156 = vld [vmem:[#allocation11 + $0x1c] sm:$0xf]
    %v1157 = vld [vmem:[#allocation11 + $0x20] sm:$0xf]
    %v1158 = vld [vmem:[#allocation11 + $0x24] sm:$0xf]
    %v1159 = vld [vmem:[#allocation11 + $0x28] sm:$0xf]
    %v1160 = vld [vmem:[#allocation11 + $0x2c] sm:$0xf]
    %v1161 = vld [vmem:[#allocation11 + $0x30] sm:$0xf]
    %v1162 = vld [vmem:[#allocation11 + $0x34] sm:$0xf]
    %v1163 = vld [vmem:[#allocation11 + $0x38] sm:$0xf]
    %v1164 = vld [vmem:[#allocation11 + $0x3c] sm:$0xf]
    %v1165 = vld [vmem:[%s5] sm:$0x1]
    %v1166 = vlaneseq
    %v1167 = vshrl.u32 %v1166, 7
    %v1168 = vsub.s32 0, %v1167
    %v1169 = vrot.slane %v1165, %v1168
    %v1186 = vunpack.c.l.b16 %v1149
    %v1187 = vunpack.c.l.b16 %v1150
    %v1188 = vunpack.c.l.b16 %v1151
    %v1189 = vunpack.c.l.b16 %v1152
    %v1190 = vunpack.c.l.b16 %v1153
    %v1191 = vunpack.c.l.b16 %v1154
    %v1192 = vunpack.c.l.b16 %v1155
    %v1193 = vunpack.c.l.b16 %v1156
    %v1194 = vunpack.c.l.b16 %v1157
    %v1195 = vunpack.c.l.b16 %v1158
    %v1196 = vunpack.c.l.b16 %v1159
    %v1197 = vunpack.c.l.b16 %v1160
    %v1198 = vunpack.c.l.b16 %v1161
    %v1199 = vunpack.c.l.b16 %v1162
    %v1200 = vunpack.c.l.b16 %v1163
    %v1201 = vunpack.c.l.b16 %v1164
    %v1202 = vpack.c.b16 %v1187, %v1186
    %v1203 = vpack.c.b16 %v1189, %v1188
    %v1204 = vpack.c.b16 %v1191, %v1190
    %v1205 = vpack.c.b16 %v1193, %v1192
    %v1206 = vpack.c.b16 %v1195, %v1194
    %v1207 = vpack.c.b16 %v1197, %v1196
    %v1208 = vpack.c.b16 %v1199, %v1198
    %v1209 = vpack.c.b16 %v1201, %v1200
    %1218 = vmatprep.subr.bf16.mxu0 0
    %1219 = vmatpush1.bf16.msra.mxu0 %v1202
    %1220 = vmatprep.subr.bf16.mxu0 0
    %1221 = vmatpush1.bf16.msra.mxu0 %v1203
    %1222 = vmatprep.subr.bf16.mxu0 0
    %1223 = vmatpush1.bf16.msra.mxu0 %v1204
    %1224 = vmatprep.subr.bf16.mxu0 0
    %1225 = vmatpush1.bf16.msra.mxu0 %v1205
    %1226 = vmatprep.subr.bf16.mxu0 0
    %1227 = vmatpush1.bf16.msra.mxu0 %v1206
    %1228 = vmatprep.subr.bf16.mxu0 0
    %1229 = vmatpush1.bf16.msra.mxu0 %v1207
    %1230 = vmatprep.subr.bf16.mxu0 0
    %1231 = vmatpush1.bf16.msra.mxu0 %v1208
    %1232 = vmatprep.subr.bf16.mxu0 0
    %1233 = vmatpush1.bf16.msra.mxu0 %v1209
    %1234 = vmatprep.subr.bf16.mxu0 0
    %1235 = vmatpush1.bf16.msra.mxu0 0
    %1236 = vmatprep.subr.bf16.mxu0 0
    %1237 = vmatpush1.bf16.msra.mxu0 0
    %1238 = vmatprep.subr.bf16.mxu0 0
    %1239 = vmatpush1.bf16.msra.mxu0 0
    %1240 = vmatprep.subr.bf16.mxu0 0
    %1241 = vmatpush1.bf16.msra.mxu0 0
    %1242 = vmatprep.subr.bf16.mxu0 0
    %1243 = vmatpush1.bf16.msra.mxu0 0
    %1244 = vmatprep.subr.bf16.mxu0 0
    %1245 = vmatpush1.bf16.msra.mxu0 0
    %1246 = vmatprep.subr.bf16.mxu0 0
    %1247 = vmatpush1.bf16.msra.mxu0 0
    %1248 = vmatprep.subr.bf16.mxu0 0
    %1249 = vmatpush1.bf16.msra.mxu0 0
    %1250 = vmatprep.mubr.bf16.mxu0 0
    %1251 = vmatmul.mubr.bf16.gmra.mrb[0].mxu0 %v1148
    %v1252 = vpop.f32.mrb[0].mxu0
    %v1253 = vadd.f32 %v1169, %v1252
    %v1254 = vpop.f32.mrb[0].mxu0
    %v1255 = vpop.f32.mrb[0].mxu0
    %v1256 = vpop.f32.mrb[0].mxu0
    %1257 = vdwg.mxu0
    %1258 = vst [vmem:[#allocation13] sm:$0xff] %v1253
    %v1259 = vlaneseq
    %v1260 = vand.u32 %v1259, 127
    %v1261 = vlaneseq
    %v1262 = vshrl.u32 %v1261, 7
    %s1263 = sld [smem:[#allocation9]]
    %vm1264 = vcmp.eq.s32.totalorder %v1260, 0
    %v1265 = vstv %s1263
    %v1266 = vsel %vm1264, %v1265, 0
    %vm1267 = vcmp.eq.s32.totalorder %v1262, 0
    %v1268 = vsel %vm1267, %v1265, 0
    %s1269 = sld [smem:[#allocation9 + $0x1]]
    %vm1270 = vcmp.eq.s32.totalorder %v1260, 1
    %v1271 = vstv %s1269
    %v1272 = vsel %vm1270, %v1271, 0
    %v1273 = vadd.s32 %v1266, %v1272
    %vm1274 = vcmp.eq.s32.totalorder %v1262, 1
    %v1275 = vsel %vm1274, %v1271, 0
    %v1276 = vadd.s32 %v1268, %v1275
    %s1277 = sld [smem:[#allocation9 + $0x2]]
    %vm1278 = vcmp.eq.s32.totalorder %v1260, 2
    %v1279 = vstv %s1277
    %v1280 = vsel %vm1278, %v1279, 0
    %v1281 = vadd.s32 %v1273, %v1280
    %vm1282 = vcmp.eq.s32.totalorder %v1262, 2
    %v1283 = vsel %vm1282, %v1279, 0
    %v1284 = vadd.s32 %v1276, %v1283
    %s1285 = sld [smem:[#allocation9 + $0x3]]
    %vm1286 = vcmp.eq.s32.totalorder %v1260, 3
    %v1287 = vstv %s1285
    %v1288 = vsel %vm1286, %v1287, 0
    %v1289 = vadd.s32 %v1281, %v1288
    %vm1290 = vcmp.eq.s32.totalorder %v1262, 3
    %v1291 = vsel %vm1290, %v1287, 0
    %v1292 = vadd.s32 %v1284, %v1291
    %s1293 = sld [smem:[#allocation9 + $0x4]]
    %vm1294 = vcmp.eq.s32.totalorder %v1260, 4
    %v1295 = vstv %s1293
    %v1296 = vsel %vm1294, %v1295, 0
    %v1297 = vadd.s32 %v1289, %v1296
    %vm1298 = vcmp.eq.s32.totalorder %v1262, 4
    %v1299 = vsel %vm1298, %v1295, 0
    %v1300 = vadd.s32 %v1292, %v1299
    %s1301 = sld [smem:[#allocation9 + $0x5]]
    %vm1302 = vcmp.eq.s32.totalorder %v1260, 5
    %v1303 = vstv %s1301
    %v1304 = vsel %vm1302, %v1303, 0
    %v1305 = vadd.s32 %v1297, %v1304
    %vm1306 = vcmp.eq.s32.totalorder %v1262, 5
    %v1307 = vsel %vm1306, %v1303, 0
    %v1308 = vadd.s32 %v1300, %v1307
    %s1309 = sld [smem:[#allocation9 + $0x6]]
    %vm1310 = vcmp.eq.s32.totalorder %v1260, 6
    %v1311 = vstv %s1309
    %v1312 = vsel %vm1310, %v1311, 0
    %v1313 = vadd.s32 %v1305, %v1312
    %vm1314 = vcmp.eq.s32.totalorder %v1262, 6
    %v1315 = vsel %vm1314, %v1311, 0
    %v1316 = vadd.s32 %v1308, %v1315
    %s1317 = sld [smem:[#allocation9 + $0x7]]
    %vm1318 = vcmp.eq.s32.totalorder %v1260, 7
    %v1319 = vstv %s1317
    %v1320 = vsel %vm1318, %v1319, 0
    %v1321 = vadd.s32 %v1313, %v1320
    %vm1322 = vcmp.eq.s32.totalorder %v1262, 7
    %v1323 = vsel %vm1322, %v1319, 0
    %v1324 = vadd.s32 %v1316, %v1323
    %vm1325 = vcmp.eq.s32.totalorder %v1324, %v1321
    %v1326 = vsel %vm1325, 1, 0
    %v1327 = vcvt.s32.f32 %v1326
    %v1328 = vmul.f32 %v1253, %v1253
    %1329 = vadd.xlane.f32.xlu0 %v1328
    %v1330 = vpop.xlane.xlu0 %1329
    %v1331 = vmax.f32 %v1330, 1e-24
    %v1332 = vrsqrt.pop %v1331
    %v1333 = vmul.f32 %v1253, %v1332
    %1334 = vmatprep.subr.mxu0 0.0
    %1335 = vmatpush1.xpose.msra.mxu0 %v1333
    %1336 = vmatprep.subr.mxu0 0.0
    %1337 = vmatpush1.xpose.msra.mxu0 0.0
    %1338 = vmatprep.subr.mxu0 0.0
    %1339 = vmatpush1.xpose.msra.mxu0 0.0
    %1340 = vmatprep.subr.mxu0 0.0
    %1341 = vmatpush1.xpose.msra.mxu0 0.0
    %1342 = vmatprep.subr.mxu0 0.0
    %1343 = vmatpush1.xpose.msra.mxu0 0.0
    %1344 = vmatprep.subr.mxu0 0.0
    %1345 = vmatpush1.xpose.msra.mxu0 0.0
    %1346 = vmatprep.subr.mxu0 0.0
    %1347 = vmatpush1.xpose.msra.mxu0 0.0
    %1348 = vmatprep.subr.mxu0 0.0
    %1349 = vmatpush1.xpose.msra.mxu0 0.0
    %1350 = vmatprep.subr.mxu0 0.0
    %1351 = vmatpush1.xpose.msra.mxu0 0.0
    %1352 = vmatprep.subr.mxu0 0.0
    %1353 = vmatpush1.xpose.msra.mxu0 0.0
    %1354 = vmatprep.subr.mxu0 0.0
    %1355 = vmatpush1.xpose.msra.mxu0 0.0
    %1356 = vmatprep.subr.mxu0 0.0
    %1357 = vmatpush1.xpose.msra.mxu0 0.0
    %1358 = vmatprep.subr.mxu0 0.0
    %1359 = vmatpush1.xpose.msra.mxu0 0.0
    %1360 = vmatprep.subr.mxu0 0.0
    %1361 = vmatpush1.xpose.msra.mxu0 0.0
    %1362 = vmatprep.subr.mxu0 0.0
    %1363 = vmatpush1.xpose.msra.mxu0 0.0
    %1364 = vmatprep.subr.mxu0 0.0
    %1365 = vmatpush1.xpose.msra.mxu0 0.0
    %1366 = vmatprep.subr.mxu0 0.0
    %1367 = vmatpush1.xpose.msra.mxu0 0.0
    %1368 = vmatprep.subr.mxu0 0.0
    %1369 = vmatpush1.xpose.msra.mxu0 0.0
    %1370 = vmatprep.subr.mxu0 0.0
    %1371 = vmatpush1.xpose.msra.mxu0 0.0
    %1372 = vmatprep.subr.mxu0 0.0
    %1373 = vmatpush1.xpose.msra.mxu0 0.0
    %1374 = vmatprep.subr.mxu0 0.0
    %1375 = vmatpush1.xpose.msra.mxu0 0.0
    %1376 = vmatprep.subr.mxu0 0.0
    %1377 = vmatpush1.xpose.msra.mxu0 0.0
    %1378 = vmatprep.subr.mxu0 0.0
    %1379 = vmatpush1.xpose.msra.mxu0 0.0
    %1380 = vmatprep.subr.mxu0 0.0
    %1381 = vmatpush1.xpose.msra.mxu0 0.0
    %1382 = vmatprep.subr.mxu0 0.0
    %1383 = vmatpush1.xpose.msra.mxu0 0.0
    %1384 = vmatprep.subr.mxu0 0.0
    %1385 = vmatpush1.xpose.msra.mxu0 0.0
    %1386 = vmatprep.subr.mxu0 0.0
    %1387 = vmatpush1.xpose.msra.mxu0 0.0
    %1388 = vmatprep.subr.mxu0 0.0
    %1389 = vmatpush1.xpose.msra.mxu0 0.0
    %1390 = vmatprep.subr.mxu0 0.0
    %1391 = vmatpush1.xpose.msra.mxu0 0.0
    %1392 = vmatprep.subr.mxu0 0.0
    %1393 = vmatpush1.xpose.msra.mxu0 0.0
    %1394 = vmatprep.subr.mxu0 0.0
    %1395 = vmatpush1.xpose.msra.mxu0 0.0
    %1396 = vmatprep.subr.mxu0 0.0
    %1397 = vmatpush1.xpose.msra.mxu0 0.0
    %1398 = vmatprep.mubr.f32.mxu0 0.0
    %1399 = vmatmul.mubr.f32.gmra.mrb[0].mxu0 %v1333
    %v1400 = vpop.f32.mrb[0].mxu0
    %v1401 = vadd.f32 0.0, %v1400
    %v1402 = vpop.f32.mrb[0].mxu0
    %1403 = vdwg.mxu0
    %v1404 = vmul.f32 %v1401, 14.285714
    %v1405 = vmul.f32 %v1404, %v1327
    %vm1406 = vcmask 64512
    %v1407 = vsel %vm1406, %v1405, 0.0
    %1408 = vadd.xlane.f32.xlu0 %v1407
    %v1409 = vpop.xlane.xlu0 %1408
    %v1410 = vsel %vm1406, %v1327, 0.0
    %1411 = vadd.xlane.f32.xlu0 %v1410
    %v1412 = vpop.xlane.xlu0 %1411
    %v1413 = vmax.f32 %v1412, 1e-06
    %v1414 = vrcp.pop %v1413
    %v1415 = vmul.f32 %v1409, %v1414
    %v1416 = vsub.f32 1.0, %v1327
    %v1417 = vmul.f32 %v1404, %v1416
    %v1418 = vsel %vm1406, %v1417, -inf
    %1419 = vmax.xlane.f32.xlu0 %v1418
    %v1420 = vpop.xlane.xlu0 %1419
    %v1421 = vmax.f32 %v1415, %v1420
    %v1422 = vsub.f32 %v1415, %v1421
    %v1423 = vmul.f32 %v1422, 1.442695
    %v1424 = vpow.pop %v1423
    %v1425 = vsub.f32 %v1417, %v1421
    %v1426 = vmul.f32 %v1425, 1.442695
    %v1427 = vpow.pop %v1426
    %v1428 = vsel %vm1406, %v1427, 0.0
    %1429 = vadd.xlane.f32.xlu0 %v1428
    %v1430 = vpop.xlane.xlu0 %1429
    %v1431 = vadd.f32 %v1424, %v1430
    %v1432 = vlog2.pop %v1431
    %v1433 = vmul.f32 %v1432, 0.6931472
    %v1434 = vadd.f32 %v1421, %v1433
    %v1435 = vsub.f32 %v1434, %v1415
    %v1436 = vrot.slane %v1435, 4
    %v1437 = vadd.f32 %v1435, %v1436
    %v1438 = vrot.slane %v1437, 2
    %v1439 = vadd.f32 %v1437, %v1438
    %v1440 = vrot.slane %v1439, 1
    %v1441 = vadd.f32 %v1439, %v1440
    %v1442 = vmul.f32 %v1441, 0.125
    %v1443 = vld [vmem:[%s5 + $0x1] sm:$0x1]
    %v1444 = vlaneseq
    %v1445 = vshrl.u32 %v1444, 7
    %v1446 = vsub.s32 0, %v1445
    %v1447 = vrot.slane %v1443, %v1446
    %v1448 = vsub.f32 %v1253, %v1447
    %v1449 = vmul.f32 %v1448, %v1448
    %1450 = vadd.xlane.f32.xlu0 %v1449
    %v1451 = vpop.xlane.xlu0 %1450
    %vm1452 = vcmp.eq.s32.totalorder %v1324, 0
    %v1453 = vsel %vm1452, 1, 0
    %v1454 = vcvt.s32.f32 %v1453
    %vm1455 = vcmp.eq.s32.totalorder %v1324, 1
    %v1456 = vsel %vm1455, 1, 0
    %v1457 = vcvt.s32.f32 %v1456
    %v1458 = vrot.slane %v1454, 4
    %v1459 = vadd.f32 %v1454, %v1458
    %v1460 = vrot.slane %v1459, 2
    %v1461 = vadd.f32 %v1459, %v1460
    %v1462 = vrot.slane %v1461, 1
    %v1463 = vadd.f32 %v1461, %v1462
    %v1464 = vmax.f32 %v1463, 1.0
    %v1465 = vrot.slane %v1457, 4
    %v1466 = vadd.f32 %v1457, %v1465
    %v1467 = vrot.slane %v1466, 2
    %v1468 = vadd.f32 %v1466, %v1467
    %v1469 = vrot.slane %v1468, 1
    %v1470 = vadd.f32 %v1468, %v1469
    %v1471 = vmax.f32 %v1470, 1.0
    %v1472 = vmul.f32 %v1451, %v1454
    %v1473 = vrot.slane %v1472, 4
    %v1474 = vadd.f32 %v1472, %v1473
    %v1475 = vrot.slane %v1474, 2
    %v1476 = vadd.f32 %v1474, %v1475
    %v1477 = vrot.slane %v1476, 1
    %v1478 = vadd.f32 %v1476, %v1477
    %v1479 = vrcp.pop %v1464
    %v1480 = vmul.f32 %v1478, %v1479
    %v1481 = vmin.f32 %v1451, 1000000.0
    %v1482 = vmul.f32 %v1481, %v1457
    %v1483 = vrot.slane %v1482, 4
    %v1484 = vadd.f32 %v1482, %v1483
    %v1485 = vrot.slane %v1484, 2
    %v1486 = vadd.f32 %v1484, %v1485
    %v1487 = vrot.slane %v1486, 1
    %v1488 = vadd.f32 %v1486, %v1487
    %v1489 = vrcp.pop %v1471
    %v1490 = vmul.f32 %v1488, %v1489
    %v1491 = vsub.f32 %v1480, %v1490
    %v1492 = vadd.f32 %v1442, %v1491
    %v1493 = vsel %vm1264, %v1492, 0.0
    %v1494 = vsel %vm1270, %v1442, 0.0
    %v1495 = vadd.f32 %v1493, %v1494
    %v1496 = vsel %vm1278, %v1491, 0.0
    %v1497 = vadd.f32 %v1495, %v1496
    %1498 = vst [vmem:[%s7] sm:$0x1] %v1497
    // Predicated region
    $region46: #{forward.1} parent=1 // pred_check
      _
    $region47: #{forward.1} parent=1 // pred_check_branch
      %1500 = sbr.rel (0) target = $region49
    $region48: #{forward.1} parent=1 // pred_region
      %s1502 = ssub.s32 128, 128
      %1503 = vsyncadd [#allocation5], %s1502
      %s1505 = sshll.u32 [#allocation13], 4
      %s1506 = int_to_ptr.vmem [resolvable:$true] %s1505
      %1508 = dma.vmem_to_hbm [thread:$0]  %s1506, 128, %s6, [#allocation5]
    $region49: #{forward.1} parent=1 // pred_fallthru
      _
    // Predicated region
    $region50: #{forward.1} parent=1 // pred_check
      _
    $region51: #{forward.1} parent=1 // pred_check_branch
      %1510 = sbr.rel (0) target = $region53
    $region52: #{forward.1} parent=1 // pred_region
      _
    $region53: #{forward.1} parent=1 // pred_fallthru
      _
    // Predicated region
    $region54: #{forward.1} parent=1 // pred_check
      _
    $region55: #{forward.1} parent=1 // pred_check_branch
      %1512 = sbr.rel (0) target = $region57
    $region56: #{forward.1} parent=1 // pred_region
      %1513 = dma.done [#allocation5], 128
    $region57: #{forward.1} parent=1 // pred_fallthru
      _
    // Predicated region
    $region58: #{forward.1} parent=1 // pred_check
      _
    $region59: #{forward.1} parent=1 // pred_check_branch
      %1515 = sbr.rel (0) target = $region61
    $region60: #{forward.1} parent=1 // pred_region
      _
    $region61: #{forward.1} parent=1 // pred_fallthru
      _
    %1516 = vsyncpa [#allocation4], 1
    %1517 = vsyncpa [#allocation12], 1
    %1518 = vsyncpa [#allocation5], 1
    %1519 = vsyncpa [#allocation6], 1
    %1520 = vsyncpa [#allocation8], 1

</llo_original>
